<compile_context>
chip_gen: v6e
topology: v6e:2x2x1
jax: 0.10.0
libtpu: 0.0.40
codegen_flags: <defaults>
</compile_context>

<pallas_src>
import functools

import jax
import jax.numpy as jnp
from jax import lax
from jax.experimental import pallas as pl
from jax.experimental.pallas import tpu as pltpu


# ----------------------------------------------------------------------------
# helpers
# ----------------------------------------------------------------------------
def _row_tile(n):
    """Row-tile size: multiple of the sublane tile (or the full dim)."""
    if n <= 16:
        return n
    for t in (16, 8):
        if n % t == 0:
            return t
    return n


# ----------------------------------------------------------------------------
# kernel 1: fused  normalize + 4x4 avg-pool + (lift ∘ desc) 1x1 conv
# ----------------------------------------------------------------------------
def _feature_kernel(img_ref, ah_ref, awt_ref, w_ref, b_ref, o_ref):
    # img_ref : (1, Cin, TH*4, W)  raw image tile (0..255)
    # ah_ref  : (TH, TH*4)         row 4x avg-pool matrix (entries 1/4)
    # awt_ref : (W, W4)            col 4x avg-pool matrix (entries 1/4)
    # w_ref   : (Cin, Cout, 1, 1)  fused lift∘desc 1x1-conv weight
    # b_ref   : (Cout, 1, 1)       fused bias
    # o_ref   : (1, Cout, TH, W4)  bf16 feature tile (NCHW)
    a_h = ah_ref[...]
    a_wt = awt_ref[...]
    cin, cout = w_ref.shape[0], w_ref.shape[1]
    th, w4 = a_h.shape[0], a_wt.shape[1]

    acc = jnp.zeros((cout, th, w4), jnp.float32) + b_ref[...]
    for c in range(cin):  # Cin == 3: tiny K, channel mix stays on the VPU
        xc = img_ref[0, c].astype(jnp.float32)                          # (TH*4, W)
        pooled = jnp.dot(a_h, xc, preferred_element_type=jnp.float32)   # (TH, W)
        pooled = jnp.dot(pooled, a_wt, preferred_element_type=jnp.float32)  # (TH, W4)
        # normalization folded after pooling: mean(2*(x/255)-1) == 2*(mean/255)-1
        pooled = pooled * (2.0 / 255.0) - 1.0
        acc = acc + pooled[None, :, :] * w_ref[c]                       # (Cout, TH, W4)
    o_ref[0] = acc.astype(o_ref.dtype)


def extract_features(img, w_eff, b_eff, *, out_dtype=jnp.bfloat16):
    """One fused Pallas pass: normalize + 4x4 avg-pool + fused 1x1 conv."""
    B, Cin, H, W = img.shape
    assert H % 4 == 0 and W % 4 == 0
    H4, W4 = H // 4, W // 4
    Cout = w_eff.shape[1]
    th = _row_tile(H4)
    n_h = H4 // th

    # small constant pooling matrices (averaging via the MXU inside the kernel)
    a_h = ((jnp.arange(4 * th)[None, :] // 4) == jnp.arange(th)[:, None]
           ).astype(jnp.float32) * 0.25                                  # (th, 4*th)
    a_wt = ((jnp.arange(W)[:, None] // 4) == jnp.arange(W4)[None, :]
            ).astype(jnp.float32) * 0.25                                 # (W, W4)
    w4d = w_eff.reshape(Cin, Cout, 1, 1).astype(jnp.float32)
    b3d = b_eff.reshape(Cout, 1, 1).astype(jnp.float32)

    return pl.pallas_call(
        _feature_kernel,
        out_shape=jax.ShapeDtypeStruct((B, Cout, H4, W4), out_dtype),
        grid=(B, n_h),
        in_specs=[
            pl.BlockSpec((1, Cin, 4 * th, W), lambda b, i: (b, 0, i, 0)),
            pl.BlockSpec((th, 4 * th), lambda b, i: (0, 0)),
            pl.BlockSpec((W, W4), lambda b, i: (0, 0)),
            pl.BlockSpec((Cin, Cout, 1, 1), lambda b, i: (0, 0, 0, 0)),
            pl.BlockSpec((Cout, 1, 1), lambda b, i: (0, 0, 0)),
        ],
        out_specs=pl.BlockSpec((1, Cout, th, W4), lambda b, i: (b, 0, i, 0)),
        compiler_params=pltpu.CompilerParams(
            dimension_semantics=("parallel", "parallel")),
    )(img, a_h, a_wt, w4d, b3d)


# ----------------------------------------------------------------------------
# kernel 2: group-wise correlation cost volume (build_gwc_volume)
#   volume[b, g, d, h, w] = mean_c( Fl[b, g, c, h, w] * Fr[b, g, c, h, w-d] )
#   (zero where w < d) — shifted reads/writes via ref slicing, no concat copies.
# ----------------------------------------------------------------------------
def _gwc_kernel(fl_ref, fr_ref, o_ref, *, num_groups, max_disp):
    C, TH, W = fl_ref.shape[1], fl_ref.shape[2], fl_ref.shape[3]
    cpg = C // num_groups
    inv_cpg = 1.0 / cpg
    # TODO(synk): for large D (max_disp//4 >> 8) make d a grid axis so per-d
    # output slabs pipeline out instead of being resident for the whole block.
    for d in range(max_disp):  # static unroll over disparities (D is small)
        fl_s = fl_ref[0, :, :, d:]          # (C, TH, W-d)  ref-sliced reads
        fr_s = fr_ref[0, :, :, : W - d]
        prod = fl_s.astype(jnp.float32) * fr_s.astype(jnp.float32)
        cost = prod.reshape(num_groups, cpg, TH, W - d).sum(axis=1) * inv_cpg
        if d > 0:
            o_ref[0, :, d, :, :d] = jnp.zeros((num_groups, TH, d), o_ref.dtype)
        o_ref[0, :, d, :, d:] = cost.astype(o_ref.dtype)


def build_gwc_volume_pallas(fl, fr, max_disp, num_groups, *, out_dtype=jnp.bfloat16):
    B, C, H4, W4 = fl.shape
    th = _row_tile(H4)
    n_h = H4 // th
    kernel = functools.partial(_gwc_kernel, num_groups=num_groups, max_disp=max_disp)
    return pl.pallas_call(
        kernel,
        out_shape=jax.ShapeDtypeStruct((B, num_groups, max_disp, H4, W4), out_dtype),
        grid=(B, n_h),
        in_specs=[
            pl.BlockSpec((1, C, th, W4), lambda b, i: (b, 0, i, 0)),
            pl.BlockSpec((1, C, th, W4), lambda b, i: (b, 0, i, 0)),
        ],
        out_specs=pl.BlockSpec((1, num_groups, max_disp, th, W4),
                               lambda b, i: (b, 0, 0, i, 0)),
        compiler_params=pltpu.CompilerParams(
            dimension_semantics=("parallel", "parallel")),
    )(fl, fr)


# ----------------------------------------------------------------------------
# kernel 3: classifier Conv3d(G -> 1, 3x3x3, pad=1, no bias) fused with
#           softmax over disparity and soft-argmin regression.
#   Zero padding handled in-kernel by static valid-range slices; taps are
#   accumulated into a VMEM scratch (no padded copy, no 27 materializations).
# ----------------------------------------------------------------------------
def _classifier_kernel(vol_ref, w_ref, o_ref, acc_ref):
    # vol_ref : (1, G, D, H, W) bf16 cost volume for one image
    # w_ref   : (27, G) f32 classifier taps in SMEM, tap index = (kd*3+kh)*3+kw
    # o_ref   : (1, 1, H, W) f32 regressed disparity
    # acc_ref : (D, H, W) f32 scratch — conv3d logits
    G, D, H, W = (vol_ref.shape[1], vol_ref.shape[2],
                  vol_ref.shape[3], vol_ref.shape[4])
    acc_ref[...] = jnp.zeros((D, H, W), jnp.float32)

    # TODO(synk): for production resolutions tile H with a +-1 halo (manual DMA)
    # instead of holding the full per-image volume block in VMEM.
    for kd in range(3):
        od = kd - 1
        d_dst = slice(max(0, -od), D - max(0, od))
        d_src = slice(max(0, od), D - max(0, -od))
        for kh in range(3):
            oh = kh - 1
            h_dst = slice(max(0, -oh), H - max(0, oh))
            h_src = slice(max(0, oh), H - max(0, -oh))
            for kw in range(3):
                ow = kw - 1
                w_dst = slice(max(0, -ow), W - max(0, ow))
                w_src = slice(max(0, ow), W - max(0, -ow))
                tap = vol_ref[0, :, d_src, h_src, w_src].astype(jnp.float32)
                t = (kd * 3 + kh) * 3 + kw
                contrib = tap[0] * w_ref[t, 0]
                for g in range(1, G):
                    contrib = contrib + tap[g] * w_ref[t, g]
                acc_ref[d_dst, h_dst, w_dst] += contrib

    # softmax over disparity (axis 0) + soft-argmin regression
    logits = acc_ref[...]
    m = jnp.max(logits, axis=0, keepdims=True)
    e = jnp.exp(logits - m)
    s = jnp.sum(e, axis=0, keepdims=True)
    p = e * pl.reciprocal(s, approx=True)
    dvals = lax.broadcasted_iota(jnp.float32, (D, H, W), 0)
    o_ref[0, 0] = jnp.sum(p * dvals, axis=0)


def classifier_softmax_regression(volume, w_cls):
    B, G, D, H4, W4 = volume.shape
    # taps as (27, G) scalars in SMEM: w27[(kd*3+kh)*3+kw, g] == w_cls[g,kd,kh,kw]
    w27 = jnp.transpose(w_cls, (1, 2, 3, 0)).reshape(27, G).astype(jnp.float32)
    return pl.pallas_call(
        _classifier_kernel,
        out_shape=jax.ShapeDtypeStruct((B, 1, H4, W4), jnp.float32),
        grid=(B,),
        in_specs=[
            pl.BlockSpec((1, G, D, H4, W4), lambda b: (b, 0, 0, 0, 0)),
            pl.BlockSpec(memory_space=pltpu.MemorySpace.SMEM),
        ],
        out_specs=pl.BlockSpec((1, 1, H4, W4), lambda b: (b, 0, 0, 0)),
        scratch_shapes=[pltpu.VMEM((D, H4, W4), jnp.float32)],
        compiler_params=pltpu.CompilerParams(dimension_semantics=("parallel",)),
    )(volume, w27)


# ----------------------------------------------------------------------------
# forward (defined subset of EGLCRStereo.forward)
# ----------------------------------------------------------------------------
def eglcr_stereo_forward(image1, image2, params, *, max_disp=32, num_groups=8):
    # Fold the stand-in feature lift (3->96) and self.desc (96->96, 1x1) into a
    # single affine map (numerically equivalent up to f32 rounding).
    w_eff = params["w_lift"] @ params["w_desc"]                      # (3, 96)
    b_eff = params["b_lift"] @ params["w_desc"] + params["b_desc"]   # (1, 96)

    # TODO(synk): Feature()/stem_2/stem_4/self.conv (BasicConv_IN) backbone is
    # undefined in the reference; stand-in = 4x4 avg-pool + 1x1 lift, fused with
    # normalization and self.desc into one Pallas pass per image.
    F_l = extract_features(image1, w_eff, b_eff)
    F_r = extract_features(image2, w_eff, b_eff)

    gwc_volume = build_gwc_volume_pallas(F_l, F_r, max_disp // 4, num_groups)

    # TODO(synk): self.regulize (hourglass) depends on undefined BasicConv
    # (3D conv + BN + ReLU blocks); skipped -> identity on the cost volume.
    reg_volume = gwc_volume

    init_disp = classifier_softmax_regression(reg_volume, params["w_cls"])

    # TODO(synk): spx/context_upsample, cnet, GRU update loop, attention and
    # edge heads rely on undefined external modules; not reproduced.
    return init_disp


# ----------------------------------------------------------------------------
# main
# ----------------------------------------------------------------------------
if __name__ == "__main__":
    key = jax.random.PRNGKey(0)
    k_img1, k_img2, k_lift, k_desc, k_bias, k_cls = jax.random.split(key, 6)

    B, H, W = 2, 32, 32
    image1 = jax.random.uniform(k_img1, (B, 3, H, W), jnp.float32, 0.0, 255.0)
    image2 = jax.random.uniform(k_img2, (B, 3, H, W), jnp.float32, 0.0, 255.0)

    params = {
        # stand-in feature lift 3 -> 96
        "w_lift": 0.1 * jax.random.normal(k_lift, (3, 96), jnp.float32),
        "b_lift": jnp.zeros((1, 96), jnp.float32),
        # self.desc = nn.Conv2d(96, 96, kernel_size=1)  (weight^T for x @ W)
        "w_desc": 0.05 * jax.random.normal(k_desc, (96, 96), jnp.float32),
        "b_desc": 0.01 * jax.random.normal(k_bias, (1, 96), jnp.float32),
        # self.classifier = nn.Conv3d(8, 1, 3, 1, 1, bias=False)
        "w_cls": 0.1 * jax.random.normal(k_cls, (8, 3, 3, 3), jnp.float32),
    }

    init_disp = eglcr_stereo_forward(image1, image2, params,
                                     max_disp=32, num_groups=8)
    jax.block_until_ready(init_disp)
    assert init_disp.shape == (B, 1, H // 4, W // 4)
    print("KERNEL_OK")
</pallas_src>

<mosaic_0001>
module attributes {stable_mosaic.version = 11 : i64} {
  func.func @_feature_kernel(%arg0: i32, %arg1: i32, %arg2: memref<1x3x32x32xf32, #tpu.memory_space<vmem>>, %arg3: memref<8x32xf32, #tpu.memory_space<vmem>>, %arg4: memref<32x8xf32, #tpu.memory_space<vmem>>, %arg5: memref<3x96x1x1xf32, #tpu.memory_space<vmem>>, %arg6: memref<96x1x1xf32, #tpu.memory_space<vmem>>, %arg7: memref<1x96x8x8xbf16, #tpu.memory_space<vmem>>) attributes {dimension_semantics = [#tpu.dimension_semantics<parallel>, #tpu.dimension_semantics<parallel>], iteration_bounds = array<i64: 2, 1>, scalar_prefetch = 0 : i64, scratch_operands = 0 : i64, tpu.core_type = #tpu.core_type<tc>, window_params = [{transform_indices = @transform_0, window_bounds = array<i64: 1, 3, 32, 32>}, {pipeline_mode = #tpu.pipeline_mode<synchronous>, transform_indices = @transform_1, window_bounds = array<i64: 8, 32>}, {pipeline_mode = #tpu.pipeline_mode<synchronous>, transform_indices = @transform_2, window_bounds = array<i64: 32, 8>}, {pipeline_mode = #tpu.pipeline_mode<synchronous>, transform_indices = @transform_3, window_bounds = array<i64: 3, 96, 1, 1>}, {pipeline_mode = #tpu.pipeline_mode<synchronous>, transform_indices = @transform_4, window_bounds = array<i64: 96, 1, 1>}, {transform_indices = @transform_5, window_bounds = array<i64: 1, 96, 8, 8>}]} {
    %c0 = arith.constant 0 : index
    %c0_0 = arith.constant 0 : index
    %0 = vector.load %arg3[%c0, %c0_0] : memref<8x32xf32, #tpu.memory_space<vmem>>, vector<8x32xf32>
    %c0_1 = arith.constant 0 : index
    %c0_2 = arith.constant 0 : index
    %1 = vector.load %arg4[%c0_1, %c0_2] : memref<32x8xf32, #tpu.memory_space<vmem>>, vector<32x8xf32>
    %cst = arith.constant 0.000000e+00 : f32
    %2 = vector.broadcast %cst : f32 to vector<96x8x8xf32>
    %c0_3 = arith.constant 0 : index
    %c0_4 = arith.constant 0 : index
    %c0_5 = arith.constant 0 : index
    %3 = vector.load %arg6[%c0_3, %c0_4, %c0_5] : memref<96x1x1xf32, #tpu.memory_space<vmem>>, vector<96x1x1xf32>
    %4 = vector.broadcast %3 : vector<96x1x1xf32> to vector<96x8x8xf32>
    %5 = arith.addf %2, %4 : vector<96x8x8xf32>
    %c0_6 = arith.constant 0 : index
    %c0_7 = arith.constant 0 : index
    %c0_8 = arith.constant 0 : index
    %c0_9 = arith.constant 0 : index
    %6 = vector.load %arg2[%c0_6, %c0_7, %c0_8, %c0_9] : memref<1x3x32x32xf32, #tpu.memory_space<vmem>>, vector<1x1x32x32xf32>
    %7 = vector.shape_cast %6 : vector<1x1x32x32xf32> to vector<32x32xf32>
    %cst_10 = arith.constant dense<0.000000e+00> : vector<8x32xf32>
    %8 = tpu.matmul %0, %7, %cst_10 {dimension_numbers = #tpu.dot_dimension_numbers<[1], [0], [0], [1], [0, 0, 1, 1], [], []>} : vector<8x32xf32>, vector<32x32xf32>, vector<8x32xf32> -> vector<8x32xf32>
    %cst_11 = arith.constant dense<0.000000e+00> : vector<8x8xf32>
    %9 = tpu.matmul %8, %1, %cst_11 {dimension_numbers = #tpu.dot_dimension_numbers<[1], [0], [0], [1], [0, 0, 1, 1], [], []>} : vector<8x32xf32>, vector<32x8xf32>, vector<8x8xf32> -> vector<8x8xf32>
    %cst_12 = arith.constant 0.00784313772 : f32
    %10 = vector.broadcast %cst_12 : f32 to vector<8x8xf32>
    %11 = arith.mulf %9, %10 : vector<8x8xf32>
    %cst_13 = arith.constant 1.000000e+00 : f32
    %12 = vector.broadcast %cst_13 : f32 to vector<8x8xf32>
    %13 = arith.subf %11, %12 : vector<8x8xf32>
    %14 = vector.shape_cast %13 : vector<8x8xf32> to vector<1x8x8xf32>
    %c0_14 = arith.constant 0 : index
    %c0_15 = arith.constant 0 : index
    %c0_16 = arith.constant 0 : index
    %c0_17 = arith.constant 0 : index
    %15 = vector.load %arg5[%c0_14, %c0_15, %c0_16, %c0_17] : memref<3x96x1x1xf32, #tpu.memory_space<vmem>>, vector<1x96x1x1xf32>
    %16 = vector.shape_cast %15 : vector<1x96x1x1xf32> to vector<96x1x1xf32>
    %17 = vector.broadcast %14 : vector<1x8x8xf32> to vector<96x8x8xf32>
    %18 = vector.broadcast %16 : vector<96x1x1xf32> to vector<96x8x8xf32>
    %19 = arith.mulf %17, %18 : vector<96x8x8xf32>
    %20 = arith.addf %5, %19 : vector<96x8x8xf32>
    %c0_18 = arith.constant 0 : index
    %c1 = arith.constant 1 : index
    %c0_19 = arith.constant 0 : index
    %c0_20 = arith.constant 0 : index
    %21 = vector.load %arg2[%c0_18, %c1, %c0_19, %c0_20] : memref<1x3x32x32xf32, #tpu.memory_space<vmem>>, vector<1x1x32x32xf32>
    %22 = vector.shape_cast %21 : vector<1x1x32x32xf32> to vector<32x32xf32>
    %cst_21 = arith.constant dense<0.000000e+00> : vector<8x32xf32>
    %23 = tpu.matmul %0, %22, %cst_21 {dimension_numbers = #tpu.dot_dimension_numbers<[1], [0], [0], [1], [0, 0, 1, 1], [], []>} : vector<8x32xf32>, vector<32x32xf32>, vector<8x32xf32> -> vector<8x32xf32>
    %cst_22 = arith.constant dense<0.000000e+00> : vector<8x8xf32>
    %24 = tpu.matmul %23, %1, %cst_22 {dimension_numbers = #tpu.dot_dimension_numbers<[1], [0], [0], [1], [0, 0, 1, 1], [], []>} : vector<8x32xf32>, vector<32x8xf32>, vector<8x8xf32> -> vector<8x8xf32>
    %cst_23 = arith.constant 0.00784313772 : f32
    %25 = vector.broadcast %cst_23 : f32 to vector<8x8xf32>
    %26 = arith.mulf %24, %25 : vector<8x8xf32>
    %cst_24 = arith.constant 1.000000e+00 : f32
    %27 = vector.broadcast %cst_24 : f32 to vector<8x8xf32>
    %28 = arith.subf %26, %27 : vector<8x8xf32>
    %29 = vector.shape_cast %28 : vector<8x8xf32> to vector<1x8x8xf32>
    %c1_25 = arith.constant 1 : index
    %c0_26 = arith.constant 0 : index
    %c0_27 = arith.constant 0 : index
    %c0_28 = arith.constant 0 : index
    %30 = vector.load %arg5[%c1_25, %c0_26, %c0_27, %c0_28] : memref<3x96x1x1xf32, #tpu.memory_space<vmem>>, vector<1x96x1x1xf32>
    %31 = vector.shape_cast %30 : vector<1x96x1x1xf32> to vector<96x1x1xf32>
    %32 = vector.broadcast %29 : vector<1x8x8xf32> to vector<96x8x8xf32>
    %33 = vector.broadcast %31 : vector<96x1x1xf32> to vector<96x8x8xf32>
    %34 = arith.mulf %32, %33 : vector<96x8x8xf32>
    %35 = arith.addf %20, %34 : vector<96x8x8xf32>
    %c0_29 = arith.constant 0 : index
    %c2 = arith.constant 2 : index
    %c0_30 = arith.constant 0 : index
    %c0_31 = arith.constant 0 : index
    %36 = vector.load %arg2[%c0_29, %c2, %c0_30, %c0_31] : memref<1x3x32x32xf32, #tpu.memory_space<vmem>>, vector<1x1x32x32xf32>
    %37 = vector.shape_cast %36 : vector<1x1x32x32xf32> to vector<32x32xf32>
    %cst_32 = arith.constant dense<0.000000e+00> : vector<8x32xf32>
    %38 = tpu.matmul %0, %37, %cst_32 {dimension_numbers = #tpu.dot_dimension_numbers<[1], [0], [0], [1], [0, 0, 1, 1], [], []>} : vector<8x32xf32>, vector<32x32xf32>, vector<8x32xf32> -> vector<8x32xf32>
    %cst_33 = arith.constant dense<0.000000e+00> : vector<8x8xf32>
    %39 = tpu.matmul %38, %1, %cst_33 {dimension_numbers = #tpu.dot_dimension_numbers<[1], [0], [0], [1], [0, 0, 1, 1], [], []>} : vector<8x32xf32>, vector<32x8xf32>, vector<8x8xf32> -> vector<8x8xf32>
    %cst_34 = arith.constant 0.00784313772 : f32
    %40 = vector.broadcast %cst_34 : f32 to vector<8x8xf32>
    %41 = arith.mulf %39, %40 : vector<8x8xf32>
    %cst_35 = arith.constant 1.000000e+00 : f32
    %42 = vector.broadcast %cst_35 : f32 to vector<8x8xf32>
    %43 = arith.subf %41, %42 : vector<8x8xf32>
    %44 = vector.shape_cast %43 : vector<8x8xf32> to vector<1x8x8xf32>
    %c2_36 = arith.constant 2 : index
    %c0_37 = arith.constant 0 : index
    %c0_38 = arith.constant 0 : index
    %c0_39 = arith.constant 0 : index
    %45 = vector.load %arg5[%c2_36, %c0_37, %c0_38, %c0_39] : memref<3x96x1x1xf32, #tpu.memory_space<vmem>>, vector<1x96x1x1xf32>
    %46 = vector.shape_cast %45 : vector<1x96x1x1xf32> to vector<96x1x1xf32>
    %47 = vector.broadcast %44 : vector<1x8x8xf32> to vector<96x8x8xf32>
    %48 = vector.broadcast %46 : vector<96x1x1xf32> to vector<96x8x8xf32>
    %49 = arith.mulf %47, %48 : vector<96x8x8xf32>
    %50 = arith.addf %35, %49 : vector<96x8x8xf32>
    %51 = arith.truncf %50 : vector<96x8x8xf32> to vector<96x8x8xbf16>
    %c0_40 = arith.constant 0 : index
    %c0_41 = arith.constant 0 : index
    %c0_42 = arith.constant 0 : index
    %c0_43 = arith.constant 0 : index
    %52 = vector.load %arg7[%c0_40, %c0_41, %c0_42, %c0_43] : memref<1x96x8x8xbf16, #tpu.memory_space<vmem>>, vector<1x96x8x8xbf16>
    %53 = vector.shape_cast %52 : vector<1x96x8x8xbf16> to vector<96x8x8xbf16>
    %54 = vector.shape_cast %51 : vector<96x8x8xbf16> to vector<1x96x8x8xbf16>
    tpu.vector_store %arg7[%c0_40, %c0_41, %c0_42, %c0_43], %54 {strides = array<i32>} : memref<1x96x8x8xbf16, #tpu.memory_space<vmem>>, vector<1x96x8x8xbf16>,
    return
  }
  func.func @transform_0(%arg0: i32, %arg1: i32) -> (i32, i32, i32, i32) {
    %c0_i32 = arith.constant 0 : i32
    %c0_i32_0 = arith.constant 0 : i32
    %c0_i32_1 = arith.constant 0 : i32
    return %arg0, %c0_i32, %arg1, %c0_i32_0 : i32, i32, i32, i32
  }
  func.func @transform_1(%arg0: i32, %arg1: i32) -> (i32, i32) {
    %c0_i32 = arith.constant 0 : i32
    %c0_i32_0 = arith.constant 0 : i32
    %c0_i32_1 = arith.constant 0 : i32
    return %c0_i32, %c0_i32_0 : i32, i32
  }
  func.func @transform_2(%arg0: i32, %arg1: i32) -> (i32, i32) {
    %c0_i32 = arith.constant 0 : i32
    %c0_i32_0 = arith.constant 0 : i32
    %c0_i32_1 = arith.constant 0 : i32
    return %c0_i32, %c0_i32_0 : i32, i32
  }
  func.func @transform_3(%arg0: i32, %arg1: i32) -> (i32, i32, i32, i32) {
    %c0_i32 = arith.constant 0 : i32
    %c0_i32_0 = arith.constant 0 : i32
    %c0_i32_1 = arith.constant 0 : i32
    %c0_i32_2 = arith.constant 0 : i32
    %c0_i32_3 = arith.constant 0 : i32
    return %c0_i32, %c0_i32_0, %c0_i32_1, %c0_i32_2 : i32, i32, i32, i32
  }
  func.func @transform_4(%arg0: i32, %arg1: i32) -> (i32, i32, i32) {
    %c0_i32 = arith.constant 0 : i32
    %c0_i32_0 = arith.constant 0 : i32
    %c0_i32_1 = arith.constant 0 : i32
    %c0_i32_2 = arith.constant 0 : i32
    return %c0_i32, %c0_i32_0, %c0_i32_1 : i32, i32, i32
  }
  func.func @transform_5(%arg0: i32, %arg1: i32) -> (i32, i32, i32, i32) {
    %c0_i32 = arith.constant 0 : i32
    %c0_i32_0 = arith.constant 0 : i32
    %c0_i32_1 = arith.constant 0 : i32
    return %arg0, %c0_i32, %arg1, %c0_i32_0 : i32, i32, i32, i32
  }
}

</mosaic_0001>

<llo_original>
// kernel: tpu_custom_call.1
$region0: #{tpu_custom_call.1}
  #allocation0 [shape = 'u32[]', space=smem, size = 0x4, offset = 0x4, fixed_abs, tag = 'smem constant byte address 0x4 - core index']
  #allocation1 [shape = 'u32[144,128]{1,0:T(1,128)}', space=vmem, size = 0x12000, scoped, tag = 'internal scratch']
  %s0 = inlined_call_operand.vmem [shape: f32[2,3,32,32], index: 0, kind: input, shape index: {}]
  %s1 = inlined_call_operand.vmem [shape: f32[8,32], index: 1, kind: input, shape index: {}]
  %s2 = inlined_call_operand.vmem [shape: f32[32,8], index: 2, kind: input, shape index: {}]
  %s3 = inlined_call_operand.vmem [shape: f32[3,96,1,1], index: 3, kind: input, shape index: {}]
  %s4 = inlined_call_operand.vmem [shape: f32[96,1,1], index: 4, kind: input, shape index: {}]
  %s5 = inlined_call_operand.vmem [shape: bf16[2,96,8,8], index: 5, kind: output, shape index: {}]
  %s6 = sld [smem:[#allocation0]]
  $region53: #{tpu_custom_call.1} parent=0
    _
  %s8 = ssub.s32 1, %s6
  %s9 = scalar_select 0, %s8, %s6
  loop: start=0, step=1, limit=4
  $region2: #{tpu_custom_call.1} parent=0 // loop_pre_header
    _
  $region3: #{tpu_custom_call.1} parent=0 // loop_header
    %s11 = sphi 0, %s15
    %p12 = scmp.ge.s32.totalorder %s11, 4
    %s18 = sphi 0, %s30
    %s19 = sphi 0, %s26
    %s20 = sphi 0, %s18
    %s21 = sphi 0, %s19
    %s22 = sphi 0, %s20
    %s23 = sphi 0, %s21
    %s35 = sphi 0, %s37
    %s38 = sphi 0, %s35
    %s39 = sphi 0, %s38
    %s55 = sphi 0, %s39
    %s59 = sphi 0, %s59
    %s61 = sphi 0, %s59
    %s62 = sphi 0, %s61
    %s76 = sphi 0, %s62
    %s80 = sphi 0, %s80
    %s82 = sphi 0, %s80
    %s83 = sphi 0, %s82
    %s97 = sphi 0, %s83
    %s101 = sphi 0, %s101
    %s103 = sphi 0, %s101
    %s104 = sphi 0, %s103
    %s118 = sphi 0, %s104
    %s122 = sphi 0, %s122
    %s124 = sphi 0, %s122
    %s125 = sphi 0, %s124
    %s139 = sphi 0, %s125
    %s147 = sphi 0, %s149
    %s150 = sphi 0, %s147
    %s151 = sphi 0, %s150
    %s167 = sphi 0, %s151
  $region4: #{tpu_custom_call.1} parent=0 // loop_header_branch
    %14 = sbr.rel (%p12) target = $region8
  $region5: #{tpu_custom_call.1} parent=0 // loop_body
    %s16 = ssub.s32 %s11, 1
    %s17 = ssub.s32 %s11, 2
    %s24 = sadd.s32 1, %s19
    %p25 = scmp.ge.s32.totalorder %s24, 1
    %s26 = scalar_select %p25, 0, %s24
    %s27 = sadd.s32 1, %s18
    %s28 = scalar_select %p25, %s27, %s18
    %p29 = scmp.ge.s32.totalorder %s28, 2
    %s30 = scalar_select %p29, 0, %s28
    %s31 = ssub.s32 %s18, %s30
    %s32 = ssub.s32 %s19, %s26
    %s33 = sor.u32 %s31, %s32
    %p34 = scmp.eq.s32.totalorder %s33, 0
    %s36 = sadd.s32 %s35, 1
    %s37 = scalar_select %p34, %s35, %s36
    %p40 = pneg %p34
    %p41 = scmp.eq.s32.totalorder %s11, 1
    %p42 = por %p40, %p41
    %p43 = scmp.ne.s32.totalorder %s35, %s38
    %p44 = scmp.eq.s32.totalorder %s11, 0
    %p45 = por %p43, %p44
    %p46 = scmp.ne.s32.totalorder %s35, %s38
    %p47 = scmp.eq.s32.totalorder %s16, 1
    %p48 = por %p46, %p47
    %p49 = scmp.ne.s32.totalorder %s38, %s39
    %p50 = scmp.eq.s32.totalorder %s16, 0
    %p51 = por %p49, %p50
    %p52 = scmp.ne.s32.totalorder %s38, %s39
    %p53 = scmp.eq.s32.totalorder %s17, 1
    %p54 = por %p52, %p53
    %p56 = scmp.ne.s32.totalorder %s39, %s55
    %p57 = scmp.eq.s32.totalorder %s17, 0
    %p58 = por %p56, %p57
    %s60 = sadd.s32 %s59, 1
    %p63 = scmp.eq.s32.totalorder %s11, 1
    %p64 = scmp.ne.s32.totalorder %s59, %s61
    %p65 = scmp.eq.s32.totalorder %s11, 0
    %p66 = por %p64, %p65
    %p67 = scmp.ne.s32.totalorder %s59, %s61
    %p68 = scmp.eq.s32.totalorder %s16, 1
    %p69 = por %p67, %p68
    %p70 = scmp.ne.s32.totalorder %s61, %s62
    %p71 = scmp.eq.s32.totalorder %s16, 0
    %p72 = por %p70, %p71
    %p73 = scmp.ne.s32.totalorder %s61, %s62
    %p74 = scmp.eq.s32.totalorder %s17, 1
    %p75 = por %p73, %p74
    %p77 = scmp.ne.s32.totalorder %s62, %s76
    %p78 = scmp.eq.s32.totalorder %s17, 0
    %p79 = por %p77, %p78
    %s81 = sadd.s32 %s80, 1
    %p84 = scmp.eq.s32.totalorder %s11, 1
    %p85 = scmp.ne.s32.totalorder %s80, %s82
    %p86 = scmp.eq.s32.totalorder %s11, 0
    %p87 = por %p85, %p86
    %p88 = scmp.ne.s32.totalorder %s80, %s82
    %p89 = scmp.eq.s32.totalorder %s16, 1
    %p90 = por %p88, %p89
    %p91 = scmp.ne.s32.totalorder %s82, %s83
    %p92 = scmp.eq.s32.totalorder %s16, 0
    %p93 = por %p91, %p92
    %p94 = scmp.ne.s32.totalorder %s82, %s83
    %p95 = scmp.eq.s32.totalorder %s17, 1
    %p96 = por %p94, %p95
    %p98 = scmp.ne.s32.totalorder %s83, %s97
    %p99 = scmp.eq.s32.totalorder %s17, 0
    %p100 = por %p98, %p99
    %s102 = sadd.s32 %s101, 1
    %p105 = scmp.eq.s32.totalorder %s11, 1
    %p106 = scmp.ne.s32.totalorder %s101, %s103
    %p107 = scmp.eq.s32.totalorder %s11, 0
    %p108 = por %p106, %p107
    %p109 = scmp.ne.s32.totalorder %s101, %s103
    %p110 = scmp.eq.s32.totalorder %s16, 1
    %p111 = por %p109, %p110
    %p112 = scmp.ne.s32.totalorder %s103, %s104
    %p113 = scmp.eq.s32.totalorder %s16, 0
    %p114 = por %p112, %p113
    %p115 = scmp.ne.s32.totalorder %s103, %s104
    %p116 = scmp.eq.s32.totalorder %s17, 1
    %p117 = por %p115, %p116
    %p119 = scmp.ne.s32.totalorder %s104, %s118
    %p120 = scmp.eq.s32.totalorder %s17, 0
    %p121 = por %p119, %p120
    %s123 = sadd.s32 %s122, 1
    %p126 = scmp.eq.s32.totalorder %s11, 1
    %p127 = scmp.ne.s32.totalorder %s122, %s124
    %p128 = scmp.eq.s32.totalorder %s11, 0
    %p129 = por %p127, %p128
    %p130 = scmp.ne.s32.totalorder %s122, %s124
    %p131 = scmp.eq.s32.totalorder %s16, 1
    %p132 = por %p130, %p131
    %p133 = scmp.ne.s32.totalorder %s124, %s125
    %p134 = scmp.eq.s32.totalorder %s16, 0
    %p135 = por %p133, %p134
    %p136 = scmp.ne.s32.totalorder %s124, %s125
    %p137 = scmp.eq.s32.totalorder %s17, 1
    %p138 = por %p136, %p137
    %p140 = scmp.ne.s32.totalorder %s125, %s139
    %p141 = scmp.eq.s32.totalorder %s17, 0
    %p142 = por %p140, %p141
    %s143 = ssub.s32 %s18, %s30
    %s144 = ssub.s32 %s19, %s26
    %s145 = sor.u32 %s143, %s144
    %p146 = scmp.eq.s32.totalorder %s145, 0
    %s148 = sadd.s32 %s147, 1
    %s149 = scalar_select %p146, %s147, %s148
    %p152 = pneg %p146
    %p153 = scmp.eq.s32.totalorder %s11, 1
    %p154 = por %p152, %p153
    %p155 = scmp.ne.s32.totalorder %s147, %s150
    %p156 = scmp.eq.s32.totalorder %s11, 0
    %p157 = por %p155, %p156
    %p158 = scmp.ne.s32.totalorder %s147, %s150
    %p159 = scmp.eq.s32.totalorder %s16, 1
    %p160 = por %p158, %p159
    %p161 = scmp.ne.s32.totalorder %s150, %s151
    %p162 = scmp.eq.s32.totalorder %s16, 0
    %p163 = por %p161, %p162
    %p164 = scmp.ne.s32.totalorder %s150, %s151
    %p165 = scmp.eq.s32.totalorder %s17, 1
    %p166 = por %p164, %p165
    %p168 = scmp.ne.s32.totalorder %s151, %s167
    %p169 = scmp.eq.s32.totalorder %s17, 0
    %p170 = por %p168, %p169
    %p171 = scmp.le.s32.totalorder 1, %s11
    %p172 = scmp.lt.s32.totalorder %s11, 3
    %p173 = pnand %p171, %p172
    %p174 = pneg %p173
    // Predicated region
    $region9: #{tpu_custom_call.1} parent=5 // pred_check
      _
    $region10: #{tpu_custom_call.1} parent=5 // pred_check_branch
      %176 = sbr.rel (%p173) target = $region12
    $region11: #{tpu_custom_call.1} parent=5 // pred_region
      %s177 = ssub.s32 %s11, 1
      // Predicated region
      $region13: #{tpu_custom_call.1} parent=11 // pred_check
        %p178 = pneg %p72
      $region14: #{tpu_custom_call.1} parent=11 // pred_check_branch
        %180 = sbr.rel (%p178) target = $region16
      $region15: #{tpu_custom_call.1} parent=11 // pred_region
        _
      $region16: #{tpu_custom_call.1} parent=11 // pred_fallthru
        _
      // Predicated region
      $region17: #{tpu_custom_call.1} parent=11 // pred_check
        %p181 = pneg %p93
      $region18: #{tpu_custom_call.1} parent=11 // pred_check_branch
        %183 = sbr.rel (%p181) target = $region20
      $region19: #{tpu_custom_call.1} parent=11 // pred_region
        _
      $region20: #{tpu_custom_call.1} parent=11 // pred_fallthru
        _
      // Predicated region
      $region21: #{tpu_custom_call.1} parent=11 // pred_check
        %p184 = pneg %p114
      $region22: #{tpu_custom_call.1} parent=11 // pred_check_branch
        %186 = sbr.rel (%p184) target = $region24
      $region23: #{tpu_custom_call.1} parent=11 // pred_region
        _
      $region24: #{tpu_custom_call.1} parent=11 // pred_fallthru
        _
      // Predicated region
      $region25: #{tpu_custom_call.1} parent=11 // pred_check
        %p187 = pneg %p135
      $region26: #{tpu_custom_call.1} parent=11 // pred_check_branch
        %189 = sbr.rel (%p187) target = $region28
      $region27: #{tpu_custom_call.1} parent=11 // pred_region
        _
      $region28: #{tpu_custom_call.1} parent=11 // pred_fallthru
        _
    $region12: #{tpu_custom_call.1} parent=5 // pred_fallthru
      _
    %p190 = scmp.lt.s32.totalorder %s11, 2
    // Predicated region
    $region29: #{tpu_custom_call.1} parent=5 // pred_check
      %p191 = pneg %p190
    $region30: #{tpu_custom_call.1} parent=5 // pred_check_branch
      %193 = sbr.rel (%p191) target = $region32
    $region31: #{tpu_custom_call.1} parent=5 // pred_region
      // Predicated region
      $region33: #{tpu_custom_call.1} parent=31 // pred_check
        %p194 = pneg %p45
      $region34: #{tpu_custom_call.1} parent=31 // pred_check_branch
        %196 = sbr.rel (%p194) target = $region36
      $region35: #{tpu_custom_call.1} parent=31 // pred_region
        %s197 = smul.u32 4, %s19
        %p198 = scmp.lt.s32.totalorder %s18, 1
        %s199 = scalar_select %p198, %s18, 1
        %p200 = scmp.lt.s32.totalorder %s197, 3
        %s201 = scalar_select %p200, %s197, 3
        %s202 = smul.addr %s199, 12
        %s203 = sadd.s32 %s201, %s202
        %s204 = smul.addr %s203, 8
        %s205 = scalar_lea.vmem %s0, %s204
        %s206 = smul.u32 4, %s19
      $region36: #{tpu_custom_call.1} parent=31 // pred_fallthru
        _
    $region32: #{tpu_custom_call.1} parent=5 // pred_fallthru
      _
    %p207 = scmp.le.s32.totalorder 1, %s11
    %p208 = scmp.lt.s32.totalorder %s11, 3
    %p209 = pnand %p207, %p208
    %p210 = pneg %p209
    // Predicated region
    $region37: #{tpu_custom_call.1} parent=5 // pred_check
      _
    $region38: #{tpu_custom_call.1} parent=5 // pred_check_branch
      %212 = sbr.rel (%p209) target = $region40
    $region39: #{tpu_custom_call.1} parent=5 // pred_region
      %s213 = ssub.s32 %s11, 1
      %s214 = smul.u32 4, %s21
      %p215 = scmp.lt.s32.totalorder %s20, 1
      %s216 = scalar_select %p215, %s20, 1
      %p217 = scmp.lt.s32.totalorder %s214, 3
      %s218 = scalar_select %p217, %s214, 3
      %s219 = smul.addr %s216, 12
      %s220 = sadd.s32 %s218, %s219
      %s221 = smul.addr %s220, 8
      %s222 = scalar_lea.vmem %s0, %s221
      %p223 = pneg %p51
      %p224 = pneg %p48
      %p225 = pneg %p72
      %p226 = pneg %p69
      %p227 = pneg %p93
      %p228 = pneg %p90
      %p229 = pneg %p114
      %p230 = pneg %p111
      %p231 = pneg %p135
      %p232 = pneg %p132
      %p233 = pneg %p163
      %p234 = pneg %p160
      %p235 = scmp.lt.s32.totalorder %s20, 1
      %s236 = scalar_select %p235, %s20, 1
      %p237 = scmp.lt.s32.totalorder %s21, 0
      %s238 = scalar_select %p237, %s21, 0
      %s239 = smul.addr %s236, 96
      %s240 = sadd.s32 %s238, %s239
      %s241 = smul.addr %s240, 4
      %s242 = scalar_lea.vmem %s5, %s241
      %s243 = smul.u32 4, %s21
      %p244 = scmp.lt.s32.totalorder %s20, 1
      %s245 = scalar_select %p244, %s20, 1
      %p246 = scmp.lt.s32.totalorder %s243, 3
      %s247 = scalar_select %p246, %s243, 3
      %s248 = smul.addr %s245, 12
      %s249 = sadd.s32 %s247, %s248
      %s250 = smul.addr %s249, 8
      %s251 = scalar_lea.vmem %s0, %s250
      %s252 = smul.u32 4, %s21
      %p253 = scmp.lt.s32.totalorder %s20, 1
      %s254 = scalar_select %p253, %s20, 1
      %p255 = scmp.lt.s32.totalorder %s21, 0
      %s256 = scalar_select %p255, %s21, 0
      %s257 = smul.addr %s254, 96
      %s258 = sadd.s32 %s256, %s257
      %s259 = smul.addr %s258, 4
      %s260 = scalar_lea.vmem %s5, %s259
      %v261 = vld [vmem:[%s1] sm:$0xff]
      %v262 = vld [vmem:[%s2] sm:$0xff]
      %v263 = vld [vmem:[%s2 + $0x8] sm:$0xff]
      %v264 = vld [vmem:[%s2 + $0x10] sm:$0xff]
      %v265 = vld [vmem:[%s2 + $0x18] sm:$0xff]
      %v266 = vld [vmem:[%s4] sm:$0x1]
      %v267 = vld [vmem:[%s4 + $0x1] sm:$0x1]
      %v268 = vld [vmem:[%s4 + $0x2] sm:$0x1]
      %v269 = vld [vmem:[%s4 + $0x3] sm:$0x1]
      %v270 = vld [vmem:[%s4 + $0x4] sm:$0x1]
      %v271 = vld [vmem:[%s4 + $0x5] sm:$0x1]
      %v272 = vld [vmem:[%s4 + $0x6] sm:$0x1]
      %v273 = vld [vmem:[%s4 + $0x7] sm:$0x1]
      %v274 = vld [vmem:[%s4 + $0x8] sm:$0x1]
      %v275 = vld [vmem:[%s4 + $0x9] sm:$0x1]
      %v276 = vld [vmem:[%s4 + $0xa] sm:$0x1]
      %v277 = vld [vmem:[%s4 + $0xb] sm:$0x1]
      %v278 = vld [vmem:[%s4 + $0xc] sm:$0x1]
      %v279 = vld [vmem:[%s4 + $0xd] sm:$0x1]
      %v280 = vld [vmem:[%s4 + $0xe] sm:$0x1]
      %v281 = vld [vmem:[%s4 + $0xf] sm:$0x1]
      %v282 = vld [vmem:[%s4 + $0x10] sm:$0x1]
      %v283 = vld [vmem:[%s4 + $0x11] sm:$0x1]
      %v284 = vld [vmem:[%s4 + $0x12] sm:$0x1]
      %v285 = vld [vmem:[%s4 + $0x13] sm:$0x1]
      %v286 = vld [vmem:[%s4 + $0x14] sm:$0x1]
      %v287 = vld [vmem:[%s4 + $0x15] sm:$0x1]
      %v288 = vld [vmem:[%s4 + $0x16] sm:$0x1]
      %v289 = vld [vmem:[%s4 + $0x17] sm:$0x1]
      %v290 = vld [vmem:[%s4 + $0x18] sm:$0x1]
      %v291 = vld [vmem:[%s4 + $0x19] sm:$0x1]
      %v292 = vld [vmem:[%s4 + $0x1a] sm:$0x1]
      %v293 = vld [vmem:[%s4 + $0x1b] sm:$0x1]
      %v294 = vld [vmem:[%s4 + $0x1c] sm:$0x1]
      %v295 = vld [vmem:[%s4 + $0x1d] sm:$0x1]
      %v296 = vld [vmem:[%s4 + $0x1e] sm:$0x1]
      %v297 = vld [vmem:[%s4 + $0x1f] sm:$0x1]
      %v298 = vld [vmem:[%s4 + $0x20] sm:$0x1]
      %v299 = vld [vmem:[%s4 + $0x21] sm:$0x1]
      %v300 = vld [vmem:[%s4 + $0x22] sm:$0x1]
      %v301 = vld [vmem:[%s4 + $0x23] sm:$0x1]
      %v302 = vld [vmem:[%s4 + $0x24] sm:$0x1]
      %v303 = vld [vmem:[%s4 + $0x25] sm:$0x1]
      %v304 = vld [vmem:[%s4 + $0x26] sm:$0x1]
      %v305 = vld [vmem:[%s4 + $0x27] sm:$0x1]
      %v306 = vld [vmem:[%s4 + $0x28] sm:$0x1]
      %v307 = vld [vmem:[%s4 + $0x29] sm:$0x1]
      %v308 = vld [vmem:[%s4 + $0x2a] sm:$0x1]
      %v309 = vld [vmem:[%s4 + $0x2b] sm:$0x1]
      %v310 = vld [vmem:[%s4 + $0x2c] sm:$0x1]
      %v311 = vld [vmem:[%s4 + $0x2d] sm:$0x1]
      %v312 = vld [vmem:[%s4 + $0x2e] sm:$0x1]
      %v313 = vld [vmem:[%s4 + $0x2f] sm:$0x1]
      %v314 = vld [vmem:[%s4 + $0x30] sm:$0x1]
      %v315 = vld [vmem:[%s4 + $0x31] sm:$0x1]
      %v316 = vld [vmem:[%s4 + $0x32] sm:$0x1]
      %v317 = vld [vmem:[%s4 + $0x33] sm:$0x1]
      %v318 = vld [vmem:[%s4 + $0x34] sm:$0x1]
      %v319 = vld [vmem:[%s4 + $0x35] sm:$0x1]
      %v320 = vld [vmem:[%s4 + $0x36] sm:$0x1]
      %v321 = vld [vmem:[%s4 + $0x37] sm:$0x1]
      %v322 = vld [vmem:[%s4 + $0x38] sm:$0x1]
      %v323 = vld [vmem:[%s4 + $0x39] sm:$0x1]
      %v324 = vld [vmem:[%s4 + $0x3a] sm:$0x1]
      %v325 = vld [vmem:[%s4 + $0x3b] sm:$0x1]
      %v326 = vld [vmem:[%s4 + $0x3c] sm:$0x1]
      %v327 = vld [vmem:[%s4 + $0x3d] sm:$0x1]
      %v328 = vld [vmem:[%s4 + $0x3e] sm:$0x1]
      %v329 = vld [vmem:[%s4 + $0x3f] sm:$0x1]
      %v330 = vld [vmem:[%s4 + $0x40] sm:$0x1]
      %v331 = vld [vmem:[%s4 + $0x41] sm:$0x1]
      %v332 = vld [vmem:[%s4 + $0x42] sm:$0x1]
      %v333 = vld [vmem:[%s4 + $0x43] sm:$0x1]
      %v334 = vld [vmem:[%s4 + $0x44] sm:$0x1]
      %v335 = vld [vmem:[%s4 + $0x45] sm:$0x1]
      %v336 = vld [vmem:[%s4 + $0x46] sm:$0x1]
      %v337 = vld [vmem:[%s4 + $0x47] sm:$0x1]
      %v338 = vld [vmem:[%s4 + $0x48] sm:$0x1]
      %v339 = vld [vmem:[%s4 + $0x49] sm:$0x1]
      %v340 = vld [vmem:[%s4 + $0x4a] sm:$0x1]
      %v341 = vld [vmem:[%s4 + $0x4b] sm:$0x1]
      %v342 = vld [vmem:[%s4 + $0x4c] sm:$0x1]
      %v343 = vld [vmem:[%s4 + $0x4d] sm:$0x1]
      %v344 = vld [vmem:[%s4 + $0x4e] sm:$0x1]
      %v345 = vld [vmem:[%s4 + $0x4f] sm:$0x1]
      %v346 = vld [vmem:[%s4 + $0x50] sm:$0x1]
      %v347 = vld [vmem:[%s4 + $0x51] sm:$0x1]
      %v348 = vld [vmem:[%s4 + $0x52] sm:$0x1]
      %v349 = vld [vmem:[%s4 + $0x53] sm:$0x1]
      %v350 = vld [vmem:[%s4 + $0x54] sm:$0x1]
      %v351 = vld [vmem:[%s4 + $0x55] sm:$0x1]
      %v352 = vld [vmem:[%s4 + $0x56] sm:$0x1]
      %v353 = vld [vmem:[%s4 + $0x57] sm:$0x1]
      %v354 = vld [vmem:[%s4 + $0x58] sm:$0x1]
      %v355 = vld [vmem:[%s4 + $0x59] sm:$0x1]
      %v356 = vld [vmem:[%s4 + $0x5a] sm:$0x1]
      %v357 = vld [vmem:[%s4 + $0x5b] sm:$0x1]
      %v358 = vld [vmem:[%s4 + $0x5c] sm:$0x1]
      %v359 = vld [vmem:[%s4 + $0x5d] sm:$0x1]
      %v360 = vld [vmem:[%s4 + $0x5e] sm:$0x1]
      %v361 = vld [vmem:[%s4 + $0x5f] sm:$0x1]
      %v458 = vlaneseq
      %v459 = vshrl.u32 %v458, 7
      %v460 = vsub.s32 0, %v459
      %v461 = vrot.slane %v266, %v460
      %v462 = vlaneseq
      %v463 = vshrl.u32 %v462, 7
      %v464 = vsub.s32 0, %v463
      %v465 = vrot.slane %v267, %v464
      %v466 = vlaneseq
      %v467 = vshrl.u32 %v466, 7
      %v468 = vsub.s32 0, %v467
      %v469 = vrot.slane %v268, %v468
      %v470 = vlaneseq
      %v471 = vshrl.u32 %v470, 7
      %v472 = vsub.s32 0, %v471
      %v473 = vrot.slane %v269, %v472
      %v474 = vlaneseq
      %v475 = vshrl.u32 %v474, 7
      %v476 = vsub.s32 0, %v475
      %v477 = vrot.slane %v270, %v476
      %v478 = vlaneseq
      %v479 = vshrl.u32 %v478, 7
      %v480 = vsub.s32 0, %v479
      %v481 = vrot.slane %v271, %v480
      %v482 = vlaneseq
      %v483 = vshrl.u32 %v482, 7
      %v484 = vsub.s32 0, %v483
      %v485 = vrot.slane %v272, %v484
      %v486 = vlaneseq
      %v487 = vshrl.u32 %v486, 7
      %v488 = vsub.s32 0, %v487
      %v489 = vrot.slane %v273, %v488
      %v490 = vlaneseq
      %v491 = vshrl.u32 %v490, 7
      %v492 = vsub.s32 0, %v491
      %v493 = vrot.slane %v274, %v492
      %v494 = vlaneseq
      %v495 = vshrl.u32 %v494, 7
      %v496 = vsub.s32 0, %v495
      %v497 = vrot.slane %v275, %v496
      %v498 = vlaneseq
      %v499 = vshrl.u32 %v498, 7
      %v500 = vsub.s32 0, %v499
      %v501 = vrot.slane %v276, %v500
      %v502 = vlaneseq
      %v503 = vshrl.u32 %v502, 7
      %v504 = vsub.s32 0, %v503
      %v505 = vrot.slane %v277, %v504
      %v506 = vlaneseq
      %v507 = vshrl.u32 %v506, 7
      %v508 = vsub.s32 0, %v507
      %v509 = vrot.slane %v278, %v508
      %v510 = vlaneseq
      %v511 = vshrl.u32 %v510, 7
      %v512 = vsub.s32 0, %v511
      %v513 = vrot.slane %v279, %v512
      %v514 = vlaneseq
      %v515 = vshrl.u32 %v514, 7
      %v516 = vsub.s32 0, %v515
      %v517 = vrot.slane %v280, %v516
      %v518 = vlaneseq
      %v519 = vshrl.u32 %v518, 7
      %v520 = vsub.s32 0, %v519
      %v521 = vrot.slane %v281, %v520
      %v522 = vlaneseq
      %v523 = vshrl.u32 %v522, 7
      %v524 = vsub.s32 0, %v523
      %v525 = vrot.slane %v282, %v524
      %v526 = vlaneseq
      %v527 = vshrl.u32 %v526, 7
      %v528 = vsub.s32 0, %v527
      %v529 = vrot.slane %v283, %v528
      %v530 = vlaneseq
      %v531 = vshrl.u32 %v530, 7
      %v532 = vsub.s32 0, %v531
      %v533 = vrot.slane %v284, %v532
      %v534 = vlaneseq
      %v535 = vshrl.u32 %v534, 7
      %v536 = vsub.s32 0, %v535
      %v537 = vrot.slane %v285, %v536
      %v538 = vlaneseq
      %v539 = vshrl.u32 %v538, 7
      %v540 = vsub.s32 0, %v539
      %v541 = vrot.slane %v286, %v540
      %v542 = vlaneseq
      %v543 = vshrl.u32 %v542, 7
      %v544 = vsub.s32 0, %v543
      %v545 = vrot.slane %v287, %v544
      %v546 = vlaneseq
      %v547 = vshrl.u32 %v546, 7
      %v548 = vsub.s32 0, %v547
      %v549 = vrot.slane %v288, %v548
      %v550 = vlaneseq
      %v551 = vshrl.u32 %v550, 7
      %v552 = vsub.s32 0, %v551
      %v553 = vrot.slane %v289, %v552
      %v554 = vlaneseq
      %v555 = vshrl.u32 %v554, 7
      %v556 = vsub.s32 0, %v555
      %v557 = vrot.slane %v290, %v556
      %v558 = vlaneseq
      %v559 = vshrl.u32 %v558, 7
      %v560 = vsub.s32 0, %v559
      %v561 = vrot.slane %v291, %v560
      %v562 = vlaneseq
      %v563 = vshrl.u32 %v562, 7
      %v564 = vsub.s32 0, %v563
      %v565 = vrot.slane %v292, %v564
      %v566 = vlaneseq
      %v567 = vshrl.u32 %v566, 7
      %v568 = vsub.s32 0, %v567
      %v569 = vrot.slane %v293, %v568
      %v570 = vlaneseq
      %v571 = vshrl.u32 %v570, 7
      %v572 = vsub.s32 0, %v571
      %v573 = vrot.slane %v294, %v572
      %v574 = vlaneseq
      %v575 = vshrl.u32 %v574, 7
      %v576 = vsub.s32 0, %v575
      %v577 = vrot.slane %v295, %v576
      %v578 = vlaneseq
      %v579 = vshrl.u32 %v578, 7
      %v580 = vsub.s32 0, %v579
      %v581 = vrot.slane %v296, %v580
      %v582 = vlaneseq
      %v583 = vshrl.u32 %v582, 7
      %v584 = vsub.s32 0, %v583
      %v585 = vrot.slane %v297, %v584
      %v586 = vlaneseq
      %v587 = vshrl.u32 %v586, 7
      %v588 = vsub.s32 0, %v587
      %v589 = vrot.slane %v298, %v588
      %v590 = vlaneseq
      %v591 = vshrl.u32 %v590, 7
      %v592 = vsub.s32 0, %v591
      %v593 = vrot.slane %v299, %v592
      %v594 = vlaneseq
      %v595 = vshrl.u32 %v594, 7
      %v596 = vsub.s32 0, %v595
      %v597 = vrot.slane %v300, %v596
      %v598 = vlaneseq
      %v599 = vshrl.u32 %v598, 7
      %v600 = vsub.s32 0, %v599
      %v601 = vrot.slane %v301, %v600
      %v602 = vlaneseq
      %v603 = vshrl.u32 %v602, 7
      %v604 = vsub.s32 0, %v603
      %v605 = vrot.slane %v302, %v604
      %v606 = vlaneseq
      %v607 = vshrl.u32 %v606, 7
      %v608 = vsub.s32 0, %v607
      %v609 = vrot.slane %v303, %v608
      %v610 = vlaneseq
      %v611 = vshrl.u32 %v610, 7
      %v612 = vsub.s32 0, %v611
      %v613 = vrot.slane %v304, %v612
      %v614 = vlaneseq
      %v615 = vshrl.u32 %v614, 7
      %v616 = vsub.s32 0, %v615
      %v617 = vrot.slane %v305, %v616
      %v618 = vlaneseq
      %v619 = vshrl.u32 %v618, 7
      %v620 = vsub.s32 0, %v619
      %v621 = vrot.slane %v306, %v620
      %v622 = vlaneseq
      %v623 = vshrl.u32 %v622, 7
      %v624 = vsub.s32 0, %v623
      %v625 = vrot.slane %v307, %v624
      %v626 = vlaneseq
      %v627 = vshrl.u32 %v626, 7
      %v628 = vsub.s32 0, %v627
      %v629 = vrot.slane %v308, %v628
      %v630 = vlaneseq
      %v631 = vshrl.u32 %v630, 7
      %v632 = vsub.s32 0, %v631
      %v633 = vrot.slane %v309, %v632
      %v634 = vlaneseq
      %v635 = vshrl.u32 %v634, 7
      %v636 = vsub.s32 0, %v635
      %v637 = vrot.slane %v310, %v636
      %v638 = vlaneseq
      %v639 = vshrl.u32 %v638, 7
      %v640 = vsub.s32 0, %v639
      %v641 = vrot.slane %v311, %v640
      %v642 = vlaneseq
      %v643 = vshrl.u32 %v642, 7
      %v644 = vsub.s32 0, %v643
      %v645 = vrot.slane %v312, %v644
      %v646 = vlaneseq
      %v647 = vshrl.u32 %v646, 7
      %v648 = vsub.s32 0, %v647
      %v649 = vrot.slane %v313, %v648
      %v650 = vlaneseq
      %v651 = vshrl.u32 %v650, 7
      %v652 = vsub.s32 0, %v651
      %v653 = vrot.slane %v314, %v652
      %v654 = vlaneseq
      %v655 = vshrl.u32 %v654, 7
      %v656 = vsub.s32 0, %v655
      %v657 = vrot.slane %v315, %v656
      %v658 = vlaneseq
      %v659 = vshrl.u32 %v658, 7
      %v660 = vsub.s32 0, %v659
      %v661 = vrot.slane %v316, %v660
      %v662 = vlaneseq
      %v663 = vshrl.u32 %v662, 7
      %v664 = vsub.s32 0, %v663
      %v665 = vrot.slane %v317, %v664
      %v666 = vlaneseq
      %v667 = vshrl.u32 %v666, 7
      %v668 = vsub.s32 0, %v667
      %v669 = vrot.slane %v318, %v668
      %v670 = vlaneseq
      %v671 = vshrl.u32 %v670, 7
      %v672 = vsub.s32 0, %v671
      %v673 = vrot.slane %v319, %v672
      %v674 = vlaneseq
      %v675 = vshrl.u32 %v674, 7
      %v676 = vsub.s32 0, %v675
      %v677 = vrot.slane %v320, %v676
      %v678 = vlaneseq
      %v679 = vshrl.u32 %v678, 7
      %v680 = vsub.s32 0, %v679
      %v681 = vrot.slane %v321, %v680
      %v682 = vlaneseq
      %v683 = vshrl.u32 %v682, 7
      %v684 = vsub.s32 0, %v683
      %v685 = vrot.slane %v322, %v684
      %v686 = vlaneseq
      %v687 = vshrl.u32 %v686, 7
      %v688 = vsub.s32 0, %v687
      %v689 = vrot.slane %v323, %v688
      %v690 = vlaneseq
      %v691 = vshrl.u32 %v690, 7
      %v692 = vsub.s32 0, %v691
      %v693 = vrot.slane %v324, %v692
      %v694 = vlaneseq
      %v695 = vshrl.u32 %v694, 7
      %v696 = vsub.s32 0, %v695
      %v697 = vrot.slane %v325, %v696
      %v698 = vlaneseq
      %v699 = vshrl.u32 %v698, 7
      %v700 = vsub.s32 0, %v699
      %v701 = vrot.slane %v326, %v700
      %v702 = vlaneseq
      %v703 = vshrl.u32 %v702, 7
      %v704 = vsub.s32 0, %v703
      %v705 = vrot.slane %v327, %v704
      %v706 = vlaneseq
      %v707 = vshrl.u32 %v706, 7
      %v708 = vsub.s32 0, %v707
      %v709 = vrot.slane %v328, %v708
      %v710 = vlaneseq
      %v711 = vshrl.u32 %v710, 7
      %v712 = vsub.s32 0, %v711
      %v713 = vrot.slane %v329, %v712
      %v714 = vlaneseq
      %v715 = vshrl.u32 %v714, 7
      %v716 = vsub.s32 0, %v715
      %v717 = vrot.slane %v330, %v716
      %v718 = vlaneseq
      %v719 = vshrl.u32 %v718, 7
      %v720 = vsub.s32 0, %v719
      %v721 = vrot.slane %v331, %v720
      %v722 = vlaneseq
      %v723 = vshrl.u32 %v722, 7
      %v724 = vsub.s32 0, %v723
      %v725 = vrot.slane %v332, %v724
      %v726 = vlaneseq
      %v727 = vshrl.u32 %v726, 7
      %v728 = vsub.s32 0, %v727
      %v729 = vrot.slane %v333, %v728
      %v730 = vlaneseq
      %v731 = vshrl.u32 %v730, 7
      %v732 = vsub.s32 0, %v731
      %v733 = vrot.slane %v334, %v732
      %v734 = vlaneseq
      %v735 = vshrl.u32 %v734, 7
      %v736 = vsub.s32 0, %v735
      %v737 = vrot.slane %v335, %v736
      %v738 = vlaneseq
      %v739 = vshrl.u32 %v738, 7
      %v740 = vsub.s32 0, %v739
      %v741 = vrot.slane %v336, %v740
      %v742 = vlaneseq
      %v743 = vshrl.u32 %v742, 7
      %v744 = vsub.s32 0, %v743
      %v745 = vrot.slane %v337, %v744
      %v746 = vlaneseq
      %v747 = vshrl.u32 %v746, 7
      %v748 = vsub.s32 0, %v747
      %v749 = vrot.slane %v338, %v748
      %v750 = vlaneseq
      %v751 = vshrl.u32 %v750, 7
      %v752 = vsub.s32 0, %v751
      %v753 = vrot.slane %v339, %v752
      %v754 = vlaneseq
      %v755 = vshrl.u32 %v754, 7
      %v756 = vsub.s32 0, %v755
      %v757 = vrot.slane %v340, %v756
      %v758 = vlaneseq
      %v759 = vshrl.u32 %v758, 7
      %v760 = vsub.s32 0, %v759
      %v761 = vrot.slane %v341, %v760
      %v762 = vlaneseq
      %v763 = vshrl.u32 %v762, 7
      %v764 = vsub.s32 0, %v763
      %v765 = vrot.slane %v342, %v764
      %v766 = vlaneseq
      %v767 = vshrl.u32 %v766, 7
      %v768 = vsub.s32 0, %v767
      %v769 = vrot.slane %v343, %v768
      %v770 = vlaneseq
      %v771 = vshrl.u32 %v770, 7
      %v772 = vsub.s32 0, %v771
      %v773 = vrot.slane %v344, %v772
      %v774 = vlaneseq
      %v775 = vshrl.u32 %v774, 7
      %v776 = vsub.s32 0, %v775
      %v777 = vrot.slane %v345, %v776
      %v778 = vlaneseq
      %v779 = vshrl.u32 %v778, 7
      %v780 = vsub.s32 0, %v779
      %v781 = vrot.slane %v346, %v780
      %v782 = vlaneseq
      %v783 = vshrl.u32 %v782, 7
      %v784 = vsub.s32 0, %v783
      %v785 = vrot.slane %v347, %v784
      %v786 = vlaneseq
      %v787 = vshrl.u32 %v786, 7
      %v788 = vsub.s32 0, %v787
      %v789 = vrot.slane %v348, %v788
      %v790 = vlaneseq
      %v791 = vshrl.u32 %v790, 7
      %v792 = vsub.s32 0, %v791
      %v793 = vrot.slane %v349, %v792
      %v794 = vlaneseq
      %v795 = vshrl.u32 %v794, 7
      %v796 = vsub.s32 0, %v795
      %v797 = vrot.slane %v350, %v796
      %v798 = vlaneseq
      %v799 = vshrl.u32 %v798, 7
      %v800 = vsub.s32 0, %v799
      %v801 = vrot.slane %v351, %v800
      %v802 = vlaneseq
      %v803 = vshrl.u32 %v802, 7
      %v804 = vsub.s32 0, %v803
      %v805 = vrot.slane %v352, %v804
      %v806 = vlaneseq
      %v807 = vshrl.u32 %v806, 7
      %v808 = vsub.s32 0, %v807
      %v809 = vrot.slane %v353, %v808
      %v810 = vlaneseq
      %v811 = vshrl.u32 %v810, 7
      %v812 = vsub.s32 0, %v811
      %v813 = vrot.slane %v354, %v812
      %v814 = vlaneseq
      %v815 = vshrl.u32 %v814, 7
      %v816 = vsub.s32 0, %v815
      %v817 = vrot.slane %v355, %v816
      %v818 = vlaneseq
      %v819 = vshrl.u32 %v818, 7
      %v820 = vsub.s32 0, %v819
      %v821 = vrot.slane %v356, %v820
      %v822 = vlaneseq
      %v823 = vshrl.u32 %v822, 7
      %v824 = vsub.s32 0, %v823
      %v825 = vrot.slane %v357, %v824
      %v826 = vlaneseq
      %v827 = vshrl.u32 %v826, 7
      %v828 = vsub.s32 0, %v827
      %v829 = vrot.slane %v358, %v828
      %v830 = vlaneseq
      %v831 = vshrl.u32 %v830, 7
      %v832 = vsub.s32 0, %v831
      %v833 = vrot.slane %v359, %v832
      %v834 = vlaneseq
      %v835 = vshrl.u32 %v834, 7
      %v836 = vsub.s32 0, %v835
      %v837 = vrot.slane %v360, %v836
      %v838 = vlaneseq
      %v839 = vshrl.u32 %v838, 7
      %v840 = vsub.s32 0, %v839
      %v841 = vrot.slane %v361, %v840
      %842 = vset.pattern.permute.xlu0 0
      %843 = vperm.xlu0 %842, %v461
      %v844 = vpop.permute.xlu0 %843
      %846 = vset.pattern.permute.xlu0 0
      %847 = vperm.xlu0 %846, %v465
      %v848 = vpop.permute.xlu0 %847
      %850 = vset.pattern.permute.xlu0 0
      %851 = vperm.xlu0 %850, %v469
      %v852 = vpop.permute.xlu0 %851
      %854 = vset.pattern.permute.xlu0 0
      %855 = vperm.xlu0 %854, %v473
      %v856 = vpop.permute.xlu0 %855
      %858 = vset.pattern.permute.xlu0 0
      %859 = vperm.xlu0 %858, %v477
      %v860 = vpop.permute.xlu0 %859
      %862 = vset.pattern.permute.xlu0 0
      %863 = vperm.xlu0 %862, %v481
      %v864 = vpop.permute.xlu0 %863
      %866 = vset.pattern.permute.xlu0 0
      %867 = vperm.xlu0 %866, %v485
      %v868 = vpop.permute.xlu0 %867
      %870 = vset.pattern.permute.xlu0 0
      %871 = vperm.xlu0 %870, %v489
      %v872 = vpop.permute.xlu0 %871
      %874 = vset.pattern.permute.xlu0 0
      %875 = vperm.xlu0 %874, %v493
      %v876 = vpop.permute.xlu0 %875
      %878 = vset.pattern.permute.xlu0 0
      %879 = vperm.xlu0 %878, %v497
      %v880 = vpop.permute.xlu0 %879
      %882 = vset.pattern.permute.xlu0 0
      %883 = vperm.xlu0 %882, %v501
      %v884 = vpop.permute.xlu0 %883
      %886 = vset.pattern.permute.xlu0 0
      %887 = vperm.xlu0 %886, %v505
      %v888 = vpop.permute.xlu0 %887
      %890 = vset.pattern.permute.xlu0 0
      %891 = vperm.xlu0 %890, %v509
      %v892 = vpop.permute.xlu0 %891
      %894 = vset.pattern.permute.xlu0 0
      %895 = vperm.xlu0 %894, %v513
      %v896 = vpop.permute.xlu0 %895
      %898 = vset.pattern.permute.xlu0 0
      %899 = vperm.xlu0 %898, %v517
      %v900 = vpop.permute.xlu0 %899
      %902 = vset.pattern.permute.xlu0 0
      %903 = vperm.xlu0 %902, %v521
      %v904 = vpop.permute.xlu0 %903
      %906 = vset.pattern.permute.xlu0 0
      %907 = vperm.xlu0 %906, %v525
      %v908 = vpop.permute.xlu0 %907
      %910 = vset.pattern.permute.xlu0 0
      %911 = vperm.xlu0 %910, %v529
      %v912 = vpop.permute.xlu0 %911
      %914 = vset.pattern.permute.xlu0 0
      %915 = vperm.xlu0 %914, %v533
      %v916 = vpop.permute.xlu0 %915
      %918 = vset.pattern.permute.xlu0 0
      %919 = vperm.xlu0 %918, %v537
      %v920 = vpop.permute.xlu0 %919
      %922 = vset.pattern.permute.xlu0 0
      %923 = vperm.xlu0 %922, %v541
      %v924 = vpop.permute.xlu0 %923
      %926 = vset.pattern.permute.xlu0 0
      %927 = vperm.xlu0 %926, %v545
      %v928 = vpop.permute.xlu0 %927
      %930 = vset.pattern.permute.xlu0 0
      %931 = vperm.xlu0 %930, %v549
      %v932 = vpop.permute.xlu0 %931
      %934 = vset.pattern.permute.xlu0 0
      %935 = vperm.xlu0 %934, %v553
      %v936 = vpop.permute.xlu0 %935
      %938 = vset.pattern.permute.xlu0 0
      %939 = vperm.xlu0 %938, %v557
      %v940 = vpop.permute.xlu0 %939
      %942 = vset.pattern.permute.xlu0 0
      %943 = vperm.xlu0 %942, %v561
      %v944 = vpop.permute.xlu0 %943
      %946 = vset.pattern.permute.xlu0 0
      %947 = vperm.xlu0 %946, %v565
      %v948 = vpop.permute.xlu0 %947
      %950 = vset.pattern.permute.xlu0 0
      %951 = vperm.xlu0 %950, %v569
      %v952 = vpop.permute.xlu0 %951
      %954 = vset.pattern.permute.xlu0 0
      %955 = vperm.xlu0 %954, %v573
      %v956 = vpop.permute.xlu0 %955
      %958 = vset.pattern.permute.xlu0 0
      %959 = vperm.xlu0 %958, %v577
      %v960 = vpop.permute.xlu0 %959
      %962 = vset.pattern.permute.xlu0 0
      %963 = vperm.xlu0 %962, %v581
      %v964 = vpop.permute.xlu0 %963
      %966 = vset.pattern.permute.xlu0 0
      %967 = vperm.xlu0 %966, %v585
      %v968 = vpop.permute.xlu0 %967
      %970 = vset.pattern.permute.xlu0 0
      %971 = vperm.xlu0 %970, %v589
      %v972 = vpop.permute.xlu0 %971
      %974 = vset.pattern.permute.xlu0 0
      %975 = vperm.xlu0 %974, %v593
      %v976 = vpop.permute.xlu0 %975
      %978 = vset.pattern.permute.xlu0 0
      %979 = vperm.xlu0 %978, %v597
      %v980 = vpop.permute.xlu0 %979
      %982 = vset.pattern.permute.xlu0 0
      %983 = vperm.xlu0 %982, %v601
      %v984 = vpop.permute.xlu0 %983
      %986 = vset.pattern.permute.xlu0 0
      %987 = vperm.xlu0 %986, %v605
      %v988 = vpop.permute.xlu0 %987
      %990 = vset.pattern.permute.xlu0 0
      %991 = vperm.xlu0 %990, %v609
      %v992 = vpop.permute.xlu0 %991
      %994 = vset.pattern.permute.xlu0 0
      %995 = vperm.xlu0 %994, %v613
      %v996 = vpop.permute.xlu0 %995
      %998 = vset.pattern.permute.xlu0 0
      %999 = vperm.xlu0 %998, %v617
      %v1000 = vpop.permute.xlu0 %999
      %1002 = vset.pattern.permute.xlu0 0
      %1003 = vperm.xlu0 %1002, %v621
      %v1004 = vpop.permute.xlu0 %1003
      %1006 = vset.pattern.permute.xlu0 0
      %1007 = vperm.xlu0 %1006, %v625
      %v1008 = vpop.permute.xlu0 %1007
      %1010 = vset.pattern.permute.xlu0 0
      %1011 = vperm.xlu0 %1010, %v629
      %v1012 = vpop.permute.xlu0 %1011
      %1014 = vset.pattern.permute.xlu0 0
      %1015 = vperm.xlu0 %1014, %v633
      %v1016 = vpop.permute.xlu0 %1015
      %1018 = vset.pattern.permute.xlu0 0
      %1019 = vperm.xlu0 %1018, %v637
      %v1020 = vpop.permute.xlu0 %1019
      %1022 = vset.pattern.permute.xlu0 0
      %1023 = vperm.xlu0 %1022, %v641
      %v1024 = vpop.permute.xlu0 %1023
      %1026 = vset.pattern.permute.xlu0 0
      %1027 = vperm.xlu0 %1026, %v645
      %v1028 = vpop.permute.xlu0 %1027
      %1030 = vset.pattern.permute.xlu0 0
      %1031 = vperm.xlu0 %1030, %v649
      %v1032 = vpop.permute.xlu0 %1031
      %1034 = vset.pattern.permute.xlu0 0
      %1035 = vperm.xlu0 %1034, %v653
      %v1036 = vpop.permute.xlu0 %1035
      %1038 = vset.pattern.permute.xlu0 0
      %1039 = vperm.xlu0 %1038, %v657
      %v1040 = vpop.permute.xlu0 %1039
      %1042 = vset.pattern.permute.xlu0 0
      %1043 = vperm.xlu0 %1042, %v661
      %v1044 = vpop.permute.xlu0 %1043
      %1046 = vset.pattern.permute.xlu0 0
      %1047 = vperm.xlu0 %1046, %v665
      %v1048 = vpop.permute.xlu0 %1047
      %1050 = vset.pattern.permute.xlu0 0
      %1051 = vperm.xlu0 %1050, %v669
      %v1052 = vpop.permute.xlu0 %1051
      %1054 = vset.pattern.permute.xlu0 0
      %1055 = vperm.xlu0 %1054, %v673
      %v1056 = vpop.permute.xlu0 %1055
      %1058 = vset.pattern.permute.xlu0 0
      %1059 = vperm.xlu0 %1058, %v677
      %v1060 = vpop.permute.xlu0 %1059
      %1062 = vset.pattern.permute.xlu0 0
      %1063 = vperm.xlu0 %1062, %v681
      %v1064 = vpop.permute.xlu0 %1063
      %1066 = vset.pattern.permute.xlu0 0
      %1067 = vperm.xlu0 %1066, %v685
      %v1068 = vpop.permute.xlu0 %1067
      %1070 = vset.pattern.permute.xlu0 0
      %1071 = vperm.xlu0 %1070, %v689
      %v1072 = vpop.permute.xlu0 %1071
      %1074 = vset.pattern.permute.xlu0 0
      %1075 = vperm.xlu0 %1074, %v693
      %v1076 = vpop.permute.xlu0 %1075
      %1078 = vset.pattern.permute.xlu0 0
      %1079 = vperm.xlu0 %1078, %v697
      %v1080 = vpop.permute.xlu0 %1079
      %1082 = vset.pattern.permute.xlu0 0
      %1083 = vperm.xlu0 %1082, %v701
      %v1084 = vpop.permute.xlu0 %1083
      %1086 = vset.pattern.permute.xlu0 0
      %1087 = vperm.xlu0 %1086, %v705
      %v1088 = vpop.permute.xlu0 %1087
      %1090 = vset.pattern.permute.xlu0 0
      %1091 = vperm.xlu0 %1090, %v709
      %v1092 = vpop.permute.xlu0 %1091
      %1094 = vset.pattern.permute.xlu0 0
      %1095 = vperm.xlu0 %1094, %v713
      %v1096 = vpop.permute.xlu0 %1095
      %1098 = vset.pattern.permute.xlu0 0
      %1099 = vperm.xlu0 %1098, %v717
      %v1100 = vpop.permute.xlu0 %1099
      %1102 = vset.pattern.permute.xlu0 0
      %1103 = vperm.xlu0 %1102, %v721
      %v1104 = vpop.permute.xlu0 %1103
      %1106 = vset.pattern.permute.xlu0 0
      %1107 = vperm.xlu0 %1106, %v725
      %v1108 = vpop.permute.xlu0 %1107
      %1110 = vset.pattern.permute.xlu0 0
      %1111 = vperm.xlu0 %1110, %v729
      %v1112 = vpop.permute.xlu0 %1111
      %1114 = vset.pattern.permute.xlu0 0
      %1115 = vperm.xlu0 %1114, %v733
      %v1116 = vpop.permute.xlu0 %1115
      %1118 = vset.pattern.permute.xlu0 0
      %1119 = vperm.xlu0 %1118, %v737
      %v1120 = vpop.permute.xlu0 %1119
      %1122 = vset.pattern.permute.xlu0 0
      %1123 = vperm.xlu0 %1122, %v741
      %v1124 = vpop.permute.xlu0 %1123
      %1126 = vset.pattern.permute.xlu0 0
      %1127 = vperm.xlu0 %1126, %v745
      %v1128 = vpop.permute.xlu0 %1127
      %1130 = vset.pattern.permute.xlu0 0
      %1131 = vperm.xlu0 %1130, %v749
      %v1132 = vpop.permute.xlu0 %1131
      %1134 = vset.pattern.permute.xlu0 0
      %1135 = vperm.xlu0 %1134, %v753
      %v1136 = vpop.permute.xlu0 %1135
      %1138 = vset.pattern.permute.xlu0 0
      %1139 = vperm.xlu0 %1138, %v757
      %v1140 = vpop.permute.xlu0 %1139
      %1142 = vset.pattern.permute.xlu0 0
      %1143 = vperm.xlu0 %1142, %v761
      %v1144 = vpop.permute.xlu0 %1143
      %1146 = vset.pattern.permute.xlu0 0
      %1147 = vperm.xlu0 %1146, %v765
      %v1148 = vpop.permute.xlu0 %1147
      %1150 = vset.pattern.permute.xlu0 0
      %1151 = vperm.xlu0 %1150, %v769
      %v1152 = vpop.permute.xlu0 %1151
      %1154 = vset.pattern.permute.xlu0 0
      %1155 = vperm.xlu0 %1154, %v773
      %v1156 = vpop.permute.xlu0 %1155
      %1158 = vset.pattern.permute.xlu0 0
      %1159 = vperm.xlu0 %1158, %v777
      %v1160 = vpop.permute.xlu0 %1159
      %1162 = vset.pattern.permute.xlu0 0
      %1163 = vperm.xlu0 %1162, %v781
      %v1164 = vpop.permute.xlu0 %1163
      %1166 = vset.pattern.permute.xlu0 0
      %1167 = vperm.xlu0 %1166, %v785
      %v1168 = vpop.permute.xlu0 %1167
      %1170 = vset.pattern.permute.xlu0 0
      %1171 = vperm.xlu0 %1170, %v789
      %v1172 = vpop.permute.xlu0 %1171
      %1174 = vset.pattern.permute.xlu0 0
      %1175 = vperm.xlu0 %1174, %v793
      %v1176 = vpop.permute.xlu0 %1175
      %1178 = vset.pattern.permute.xlu0 0
      %1179 = vperm.xlu0 %1178, %v797
      %v1180 = vpop.permute.xlu0 %1179
      %1182 = vset.pattern.permute.xlu0 0
      %1183 = vperm.xlu0 %1182, %v801
      %v1184 = vpop.permute.xlu0 %1183
      %1186 = vset.pattern.permute.xlu0 0
      %1187 = vperm.xlu0 %1186, %v805
      %v1188 = vpop.permute.xlu0 %1187
      %1190 = vset.pattern.permute.xlu0 0
      %1191 = vperm.xlu0 %1190, %v809
      %v1192 = vpop.permute.xlu0 %1191
      %1194 = vset.pattern.permute.xlu0 0
      %1195 = vperm.xlu0 %1194, %v813
      %v1196 = vpop.permute.xlu0 %1195
      %1198 = vset.pattern.permute.xlu0 0
      %1199 = vperm.xlu0 %1198, %v817
      %v1200 = vpop.permute.xlu0 %1199
      %1202 = vset.pattern.permute.xlu0 0
      %1203 = vperm.xlu0 %1202, %v821
      %v1204 = vpop.permute.xlu0 %1203
      %1206 = vset.pattern.permute.xlu0 0
      %1207 = vperm.xlu0 %1206, %v825
      %v1208 = vpop.permute.xlu0 %1207
      %1210 = vset.pattern.permute.xlu0 0
      %1211 = vperm.xlu0 %1210, %v829
      %v1212 = vpop.permute.xlu0 %1211
      %1214 = vset.pattern.permute.xlu0 0
      %1215 = vperm.xlu0 %1214, %v833
      %v1216 = vpop.permute.xlu0 %1215
      %1218 = vset.pattern.permute.xlu0 0
      %1219 = vperm.xlu0 %1218, %v837
      %v1220 = vpop.permute.xlu0 %1219
      %1222 = vset.pattern.permute.xlu0 0
      %1223 = vperm.xlu0 %1222, %v841
      %v1224 = vpop.permute.xlu0 %1223
      %v1226 = vadd.f32 %v844, 0.0
      %v1227 = vadd.f32 %v848, 0.0
      %v1228 = vadd.f32 %v852, 0.0
      %v1229 = vadd.f32 %v856, 0.0
      %v1230 = vadd.f32 %v860, 0.0
      %v1231 = vadd.f32 %v864, 0.0
      %v1232 = vadd.f32 %v868, 0.0
      %v1233 = vadd.f32 %v872, 0.0
      %v1234 = vadd.f32 %v876, 0.0
      %v1235 = vadd.f32 %v880, 0.0
      %v1236 = vadd.f32 %v884, 0.0
      %v1237 = vadd.f32 %v888, 0.0
      %v1238 = vadd.f32 %v892, 0.0
      %v1239 = vadd.f32 %v896, 0.0
      %v1240 = vadd.f32 %v900, 0.0
      %v1241 = vadd.f32 %v904, 0.0
      %v1242 = vadd.f32 %v908, 0.0
      %v1243 = vadd.f32 %v912, 0.0
      %v1244 = vadd.f32 %v916, 0.0
      %v1245 = vadd.f32 %v920, 0.0
      %v1246 = vadd.f32 %v924, 0.0
      %v1247 = vadd.f32 %v928, 0.0
      %v1248 = vadd.f32 %v932, 0.0
      %v1249 = vadd.f32 %v936, 0.0
      %v1250 = vadd.f32 %v940, 0.0
      %v1251 = vadd.f32 %v944, 0.0
      %v1252 = vadd.f32 %v948, 0.0
      %v1253 = vadd.f32 %v952, 0.0
      %v1254 = vadd.f32 %v956, 0.0
      %v1255 = vadd.f32 %v960, 0.0
      %v1256 = vadd.f32 %v964, 0.0
      %v1257 = vadd.f32 %v968, 0.0
      %v1258 = vadd.f32 %v972, 0.0
      %v1259 = vadd.f32 %v976, 0.0
      %v1260 = vadd.f32 %v980, 0.0
      %v1261 = vadd.f32 %v984, 0.0
      %v1262 = vadd.f32 %v988, 0.0
      %v1263 = vadd.f32 %v992, 0.0
      %v1264 = vadd.f32 %v996, 0.0
      %v1265 = vadd.f32 %v1000, 0.0
      %v1266 = vadd.f32 %v1004, 0.0
      %v1267 = vadd.f32 %v1008, 0.0
      %v1268 = vadd.f32 %v1012, 0.0
      %v1269 = vadd.f32 %v1016, 0.0
      %v1270 = vadd.f32 %v1020, 0.0
      %v1271 = vadd.f32 %v1024, 0.0
      %v1272 = vadd.f32 %v1028, 0.0
      %v1273 = vadd.f32 %v1032, 0.0
      %v1274 = vadd.f32 %v1036, 0.0
      %v1275 = vadd.f32 %v1040, 0.0
      %v1276 = vadd.f32 %v1044, 0.0
      %v1277 = vadd.f32 %v1048, 0.0
      %v1278 = vadd.f32 %v1052, 0.0
      %v1279 = vadd.f32 %v1056, 0.0
      %v1280 = vadd.f32 %v1060, 0.0
      %v1281 = vadd.f32 %v1064, 0.0
      %v1282 = vadd.f32 %v1068, 0.0
      %v1283 = vadd.f32 %v1072, 0.0
      %v1284 = vadd.f32 %v1076, 0.0
      %v1285 = vadd.f32 %v1080, 0.0
      %v1286 = vadd.f32 %v1084, 0.0
      %v1287 = vadd.f32 %v1088, 0.0
      %v1288 = vadd.f32 %v1092, 0.0
      %v1289 = vadd.f32 %v1096, 0.0
      %v1290 = vadd.f32 %v1100, 0.0
      %v1291 = vadd.f32 %v1104, 0.0
      %v1292 = vadd.f32 %v1108, 0.0
      %v1293 = vadd.f32 %v1112, 0.0
      %v1294 = vadd.f32 %v1116, 0.0
      %v1295 = vadd.f32 %v1120, 0.0
      %v1296 = vadd.f32 %v1124, 0.0
      %v1297 = vadd.f32 %v1128, 0.0
      %v1298 = vadd.f32 %v1132, 0.0
      %v1299 = vadd.f32 %v1136, 0.0
      %v1300 = vadd.f32 %v1140, 0.0
      %v1301 = vadd.f32 %v1144, 0.0
      %v1302 = vadd.f32 %v1148, 0.0
      %v1303 = vadd.f32 %v1152, 0.0
      %v1304 = vadd.f32 %v1156, 0.0
      %v1305 = vadd.f32 %v1160, 0.0
      %v1306 = vadd.f32 %v1164, 0.0
      %v1307 = vadd.f32 %v1168, 0.0
      %v1308 = vadd.f32 %v1172, 0.0
      %v1309 = vadd.f32 %v1176, 0.0
      %v1310 = vadd.f32 %v1180, 0.0
      %v1311 = vadd.f32 %v1184, 0.0
      %v1312 = vadd.f32 %v1188, 0.0
      %v1313 = vadd.f32 %v1192, 0.0
      %v1314 = vadd.f32 %v1196, 0.0
      %v1315 = vadd.f32 %v1200, 0.0
      %v1316 = vadd.f32 %v1204, 0.0
      %v1317 = vadd.f32 %v1208, 0.0
      %v1318 = vadd.f32 %v1212, 0.0
      %v1319 = vadd.f32 %v1216, 0.0
      %v1320 = vadd.f32 %v1220, 0.0
      %v1321 = vadd.f32 %v1224, 0.0
      %v1322 = vld [vmem:[%s251] sm:$0xff]
      %v1323 = vld [vmem:[%s251 + $0x8] sm:$0xff]
      %v1324 = vld [vmem:[%s251 + $0x10] sm:$0xff]
      %v1325 = vld [vmem:[%s251 + $0x18] sm:$0xff]
      %vm1326 = vcmask 261120
      %v1328 = vsel %vm1326, %v261, 0
      %1330 = vmatprep.subr.mxu0 0.0
      %1331 = vmatpush1.msra.mxu0 0.0
      %1332 = vmatprep.subr.mxu0 0.0
      %1333 = vmatpush1.msra.mxu0 0.0
      %1334 = vmatprep.subr.mxu0 0.0
      %1335 = vmatpush1.msra.mxu0 0.0
      %1336 = vmatprep.subr.mxu0 0.0
      %1337 = vmatpush1.msra.mxu0 0.0
      %1338 = vmatprep.subr.mxu0 0.0
      %1339 = vmatpush1.msra.mxu0 0.0
      %1340 = vmatprep.subr.mxu0 0.0
      %1341 = vmatpush1.msra.mxu0 0.0
      %1342 = vmatprep.subr.mxu0 0.0
      %1343 = vmatpush1.msra.mxu0 0.0
      %1344 = vmatprep.subr.mxu0 0.0
      %1345 = vmatpush1.msra.mxu0 0.0
      %1346 = vmatprep.subr.mxu0 0.0
      %1347 = vmatpush1.msra.mxu0 0.0
      %1348 = vmatprep.subr.mxu0 0.0
      %1349 = vmatpush1.msra.mxu0 0.0
      %1350 = vmatprep.subr.mxu0 0.0
      %1351 = vmatpush1.msra.mxu0 0.0
      %1352 = vmatprep.subr.mxu0 0.0
      %1353 = vmatpush1.msra.mxu0 0.0
      %1354 = vmatprep.subr.mxu0 0.0
      %1355 = vmatpush1.msra.mxu0 %v1325
      %1356 = vmatprep.subr.mxu0 0.0
      %1357 = vmatpush1.msra.mxu0 %v1324
      %1358 = vmatprep.subr.mxu0 0.0
      %1359 = vmatpush1.msra.mxu0 %v1323
      %1360 = vmatprep.subr.mxu0 0.0
      %1361 = vmatpush1.msra.mxu0 %v1322
      %1362 = vmatprep.subr.mxu0 0.0
      %1363 = vmatpush2.msra.mxu0 0.0
      %1364 = vmatprep.subr.mxu0 0.0
      %1365 = vmatpush2.msra.mxu0 0.0
      %1366 = vmatprep.subr.mxu0 0.0
      %1367 = vmatpush2.msra.mxu0 0.0
      %1368 = vmatprep.subr.mxu0 0.0
      %1369 = vmatpush2.msra.mxu0 0.0
      %1370 = vmatprep.subr.mxu0 0.0
      %1371 = vmatpush2.msra.mxu0 0.0
      %1372 = vmatprep.subr.mxu0 0.0
      %1373 = vmatpush2.msra.mxu0 0.0
      %1374 = vmatprep.subr.mxu0 0.0
      %1375 = vmatpush2.msra.mxu0 0.0
      %1376 = vmatprep.subr.mxu0 0.0
      %1377 = vmatpush2.msra.mxu0 0.0
      %1378 = vmatprep.subr.mxu0 0.0
      %1379 = vmatpush2.msra.mxu0 0.0
      %1380 = vmatprep.subr.mxu0 0.0
      %1381 = vmatpush2.msra.mxu0 0.0
      %1382 = vmatprep.subr.mxu0 0.0
      %1383 = vmatpush2.msra.mxu0 0.0
      %1384 = vmatprep.subr.mxu0 0.0
      %1385 = vmatpush2.msra.mxu0 0.0
      %1386 = vmatprep.subr.mxu0 0.0
      %1387 = vmatpush2.msra.mxu0 0.0
      %1388 = vmatprep.subr.mxu0 0.0
      %1389 = vmatpush2.msra.mxu0 0.0
      %1390 = vmatprep.subr.mxu0 0.0
      %1391 = vmatpush2.msra.mxu0 0.0
      %1392 = vmatprep.subr.mxu0 0.0
      %1393 = vmatpush2.msra.mxu0 0.0
      %1394 = vmatprep.mubr.f32.mxu0 0.0
      %1395 = vmatmul.mubr.f32.gmra.mxu0 %v1328
      %v1396 = vpop.f32.mrf.mxu0
      %v1397 = vadd.f32 0.0, %v1396
      %v1398 = vpop.f32.mrf.mxu0
      %1399 = vdwg.mxu0
      %v1401 = vsel %vm1326, %v1397, 0
      %1403 = vmatprep.subr.mxu0 0.0
      %1404 = vmatpush1.msra.mxu0 0.0
      %1405 = vmatprep.subr.mxu0 0.0
      %1406 = vmatpush1.msra.mxu0 0.0
      %1407 = vmatprep.subr.mxu0 0.0
      %1408 = vmatpush1.msra.mxu0 0.0
      %1409 = vmatprep.subr.mxu0 0.0
      %1410 = vmatpush1.msra.mxu0 0.0
      %1411 = vmatprep.subr.mxu0 0.0
      %1412 = vmatpush1.msra.mxu0 0.0
      %1413 = vmatprep.subr.mxu0 0.0
      %1414 = vmatpush1.msra.mxu0 0.0
      %1415 = vmatprep.subr.mxu0 0.0
      %1416 = vmatpush1.msra.mxu0 0.0
      %1417 = vmatprep.subr.mxu0 0.0
      %1418 = vmatpush1.msra.mxu0 0.0
      %1419 = vmatprep.subr.mxu0 0.0
      %1420 = vmatpush1.msra.mxu0 0.0
      %1421 = vmatprep.subr.mxu0 0.0
      %1422 = vmatpush1.msra.mxu0 0.0
      %1423 = vmatprep.subr.mxu0 0.0
      %1424 = vmatpush1.msra.mxu0 0.0
      %1425 = vmatprep.subr.mxu0 0.0
      %1426 = vmatpush1.msra.mxu0 0.0
      %1427 = vmatprep.subr.mxu0 0.0
      %1428 = vmatpush1.msra.mxu0 %v265
      %1429 = vmatprep.subr.mxu0 0.0
      %1430 = vmatpush1.msra.mxu0 %v264
      %1431 = vmatprep.subr.mxu0 0.0
      %1432 = vmatpush1.msra.mxu0 %v263
      %1433 = vmatprep.subr.mxu0 0.0
      %1434 = vmatpush1.msra.mxu0 %v262
      %1435 = vmatprep.subr.mxu0 0.0
      %1436 = vmatpush2.msra.mxu0 0.0
      %1437 = vmatprep.subr.mxu0 0.0
      %1438 = vmatpush2.msra.mxu0 0.0
      %1439 = vmatprep.subr.mxu0 0.0
      %1440 = vmatpush2.msra.mxu0 0.0
      %1441 = vmatprep.subr.mxu0 0.0
      %1442 = vmatpush2.msra.mxu0 0.0
      %1443 = vmatprep.subr.mxu0 0.0
      %1444 = vmatpush2.msra.mxu0 0.0
      %1445 = vmatprep.subr.mxu0 0.0
      %1446 = vmatpush2.msra.mxu0 0.0
      %1447 = vmatprep.subr.mxu0 0.0
      %1448 = vmatpush2.msra.mxu0 0.0
      %1449 = vmatprep.subr.mxu0 0.0
      %1450 = vmatpush2.msra.mxu0 0.0
      %1451 = vmatprep.subr.mxu0 0.0
      %1452 = vmatpush2.msra.mxu0 0.0
      %1453 = vmatprep.subr.mxu0 0.0
      %1454 = vmatpush2.msra.mxu0 0.0
      %1455 = vmatprep.subr.mxu0 0.0
      %1456 = vmatpush2.msra.mxu0 0.0
      %1457 = vmatprep.subr.mxu0 0.0
      %1458 = vmatpush2.msra.mxu0 0.0
      %1459 = vmatprep.subr.mxu0 0.0
      %1460 = vmatpush2.msra.mxu0 0.0
      %1461 = vmatprep.subr.mxu0 0.0
      %1462 = vmatpush2.msra.mxu0 0.0
      %1463 = vmatprep.subr.mxu0 0.0
      %1464 = vmatpush2.msra.mxu0 0.0
      %1465 = vmatprep.subr.mxu0 0.0
      %1466 = vmatpush2.msra.mxu0 0.0
      %1467 = vmatprep.mubr.f32.mxu0 0.0
      %1468 = vmatmul.mubr.f32.gmra.mxu0 %v1401
      %v1469 = vpop.f32.mrf.mxu0
      %v1470 = vadd.f32 0.0, %v1469
      %v1471 = vpop.f32.mrf.mxu0
      %1472 = vdwg.mxu0
      %v1473 = vmul.f32 %v1470, 0.007843138
      %v1474 = vsub.f32 %v1473, 1.0
      %v1475 = vld [vmem:[%s3] sm:$0x1]
      %v1476 = vld [vmem:[%s3 + $0x1] sm:$0x1]
      %v1477 = vld [vmem:[%s3 + $0x2] sm:$0x1]
      %v1478 = vld [vmem:[%s3 + $0x3] sm:$0x1]
      %v1479 = vld [vmem:[%s3 + $0x4] sm:$0x1]
      %v1480 = vld [vmem:[%s3 + $0x5] sm:$0x1]
      %v1481 = vld [vmem:[%s3 + $0x6] sm:$0x1]
      %v1482 = vld [vmem:[%s3 + $0x7] sm:$0x1]
      %v1483 = vld [vmem:[%s3 + $0x8] sm:$0x1]
      %v1484 = vld [vmem:[%s3 + $0x9] sm:$0x1]
      %v1485 = vld [vmem:[%s3 + $0xa] sm:$0x1]
      %v1486 = vld [vmem:[%s3 + $0xb] sm:$0x1]
      %v1487 = vld [vmem:[%s3 + $0xc] sm:$0x1]
      %v1488 = vld [vmem:[%s3 + $0xd] sm:$0x1]
      %v1489 = vld [vmem:[%s3 + $0xe] sm:$0x1]
      %v1490 = vld [vmem:[%s3 + $0xf] sm:$0x1]
      %v1491 = vld [vmem:[%s3 + $0x10] sm:$0x1]
      %v1492 = vld [vmem:[%s3 + $0x11] sm:$0x1]
      %v1493 = vld [vmem:[%s3 + $0x12] sm:$0x1]
      %v1494 = vld [vmem:[%s3 + $0x13] sm:$0x1]
      %v1495 = vld [vmem:[%s3 + $0x14] sm:$0x1]
      %v1496 = vld [vmem:[%s3 + $0x15] sm:$0x1]
      %v1497 = vld [vmem:[%s3 + $0x16] sm:$0x1]
      %v1498 = vld [vmem:[%s3 + $0x17] sm:$0x1]
      %v1499 = vld [vmem:[%s3 + $0x18] sm:$0x1]
      %v1500 = vld [vmem:[%s3 + $0x19] sm:$0x1]
      %v1501 = vld [vmem:[%s3 + $0x1a] sm:$0x1]
      %v1502 = vld [vmem:[%s3 + $0x1b] sm:$0x1]
      %v1503 = vld [vmem:[%s3 + $0x1c] sm:$0x1]
      %v1504 = vld [vmem:[%s3 + $0x1d] sm:$0x1]
      %v1505 = vld [vmem:[%s3 + $0x1e] sm:$0x1]
      %v1506 = vld [vmem:[%s3 + $0x1f] sm:$0x1]
      %v1507 = vld [vmem:[%s3 + $0x20] sm:$0x1]
      %v1508 = vld [vmem:[%s3 + $0x21] sm:$0x1]
      %v1509 = vld [vmem:[%s3 + $0x22] sm:$0x1]
      %v1510 = vld [vmem:[%s3 + $0x23] sm:$0x1]
      %v1511 = vld [vmem:[%s3 + $0x24] sm:$0x1]
      %v1512 = vld [vmem:[%s3 + $0x25] sm:$0x1]
      %v1513 = vld [vmem:[%s3 + $0x26] sm:$0x1]
      %v1514 = vld [vmem:[%s3 + $0x27] sm:$0x1]
      %v1515 = vld [vmem:[%s3 + $0x28] sm:$0x1]
      %v1516 = vld [vmem:[%s3 + $0x29] sm:$0x1]
      %v1517 = vld [vmem:[%s3 + $0x2a] sm:$0x1]
      %v1518 = vld [vmem:[%s3 + $0x2b] sm:$0x1]
      %v1519 = vld [vmem:[%s3 + $0x2c] sm:$0x1]
      %v1520 = vld [vmem:[%s3 + $0x2d] sm:$0x1]
      %v1521 = vld [vmem:[%s3 + $0x2e] sm:$0x1]
      %v1522 = vld [vmem:[%s3 + $0x2f] sm:$0x1]
      %v1523 = vld [vmem:[%s3 + $0x30] sm:$0x1]
      %v1524 = vld [vmem:[%s3 + $0x31] sm:$0x1]
      %v1525 = vld [vmem:[%s3 + $0x32] sm:$0x1]
      %v1526 = vld [vmem:[%s3 + $0x33] sm:$0x1]
      %v1527 = vld [vmem:[%s3 + $0x34] sm:$0x1]
      %v1528 = vld [vmem:[%s3 + $0x35] sm:$0x1]
      %v1529 = vld [vmem:[%s3 + $0x36] sm:$0x1]
      %v1530 = vld [vmem:[%s3 + $0x37] sm:$0x1]
      %v1531 = vld [vmem:[%s3 + $0x38] sm:$0x1]
      %v1532 = vld [vmem:[%s3 + $0x39] sm:$0x1]
      %v1533 = vld [vmem:[%s3 + $0x3a] sm:$0x1]
      %v1534 = vld [vmem:[%s3 + $0x3b] sm:$0x1]
      %v1535 = vld [vmem:[%s3 + $0x3c] sm:$0x1]
      %v1536 = vld [vmem:[%s3 + $0x3d] sm:$0x1]
      %v1537 = vld [vmem:[%s3 + $0x3e] sm:$0x1]
      %v1538 = vld [vmem:[%s3 + $0x3f] sm:$0x1]
      %v1539 = vld [vmem:[%s3 + $0x40] sm:$0x1]
      %v1540 = vld [vmem:[%s3 + $0x41] sm:$0x1]
      %v1541 = vld [vmem:[%s3 + $0x42] sm:$0x1]
      %v1542 = vld [vmem:[%s3 + $0x43] sm:$0x1]
      %v1543 = vld [vmem:[%s3 + $0x44] sm:$0x1]
      %v1544 = vld [vmem:[%s3 + $0x45] sm:$0x1]
      %v1545 = vld [vmem:[%s3 + $0x46] sm:$0x1]
      %v1546 = vld [vmem:[%s3 + $0x47] sm:$0x1]
      %v1547 = vld [vmem:[%s3 + $0x48] sm:$0x1]
      %v1548 = vld [vmem:[%s3 + $0x49] sm:$0x1]
      %v1549 = vld [vmem:[%s3 + $0x4a] sm:$0x1]
      %v1550 = vld [vmem:[%s3 + $0x4b] sm:$0x1]
      %v1551 = vld [vmem:[%s3 + $0x4c] sm:$0x1]
      %v1552 = vld [vmem:[%s3 + $0x4d] sm:$0x1]
      %v1553 = vld [vmem:[%s3 + $0x4e] sm:$0x1]
      %v1554 = vld [vmem:[%s3 + $0x4f] sm:$0x1]
      %v1555 = vld [vmem:[%s3 + $0x50] sm:$0x1]
      %v1556 = vld [vmem:[%s3 + $0x51] sm:$0x1]
      %v1557 = vld [vmem:[%s3 + $0x52] sm:$0x1]
      %v1558 = vld [vmem:[%s3 + $0x53] sm:$0x1]
      %v1559 = vld [vmem:[%s3 + $0x54] sm:$0x1]
      %v1560 = vld [vmem:[%s3 + $0x55] sm:$0x1]
      %v1561 = vld [vmem:[%s3 + $0x56] sm:$0x1]
      %v1562 = vld [vmem:[%s3 + $0x57] sm:$0x1]
      %v1563 = vld [vmem:[%s3 + $0x58] sm:$0x1]
      %v1564 = vld [vmem:[%s3 + $0x59] sm:$0x1]
      %v1565 = vld [vmem:[%s3 + $0x5a] sm:$0x1]
      %v1566 = vld [vmem:[%s3 + $0x5b] sm:$0x1]
      %v1567 = vld [vmem:[%s3 + $0x5c] sm:$0x1]
      %v1568 = vld [vmem:[%s3 + $0x5d] sm:$0x1]
      %v1569 = vld [vmem:[%s3 + $0x5e] sm:$0x1]
      %v1570 = vld [vmem:[%s3 + $0x5f] sm:$0x1]
      %v1667 = vlaneseq
      %v1668 = vshrl.u32 %v1667, 7
      %v1669 = vsub.s32 0, %v1668
      %v1670 = vrot.slane %v1475, %v1669
      %v1671 = vlaneseq
      %v1672 = vshrl.u32 %v1671, 7
      %v1673 = vsub.s32 0, %v1672
      %v1674 = vrot.slane %v1476, %v1673
      %v1675 = vlaneseq
      %v1676 = vshrl.u32 %v1675, 7
      %v1677 = vsub.s32 0, %v1676
      %v1678 = vrot.slane %v1477, %v1677
      %v1679 = vlaneseq
      %v1680 = vshrl.u32 %v1679, 7
      %v1681 = vsub.s32 0, %v1680
      %v1682 = vrot.slane %v1478, %v1681
      %v1683 = vlaneseq
      %v1684 = vshrl.u32 %v1683, 7
      %v1685 = vsub.s32 0, %v1684
      %v1686 = vrot.slane %v1479, %v1685
      %v1687 = vlaneseq
      %v1688 = vshrl.u32 %v1687, 7
      %v1689 = vsub.s32 0, %v1688
      %v1690 = vrot.slane %v1480, %v1689
      %v1691 = vlaneseq
      %v1692 = vshrl.u32 %v1691, 7
      %v1693 = vsub.s32 0, %v1692
      %v1694 = vrot.slane %v1481, %v1693
      %v1695 = vlaneseq
      %v1696 = vshrl.u32 %v1695, 7
      %v1697 = vsub.s32 0, %v1696
      %v1698 = vrot.slane %v1482, %v1697
      %v1699 = vlaneseq
      %v1700 = vshrl.u32 %v1699, 7
      %v1701 = vsub.s32 0, %v1700
      %v1702 = vrot.slane %v1483, %v1701
      %v1703 = vlaneseq
      %v1704 = vshrl.u32 %v1703, 7
      %v1705 = vsub.s32 0, %v1704
      %v1706 = vrot.slane %v1484, %v1705
      %v1707 = vlaneseq
      %v1708 = vshrl.u32 %v1707, 7
      %v1709 = vsub.s32 0, %v1708
      %v1710 = vrot.slane %v1485, %v1709
      %v1711 = vlaneseq
      %v1712 = vshrl.u32 %v1711, 7
      %v1713 = vsub.s32 0, %v1712
      %v1714 = vrot.slane %v1486, %v1713
      %v1715 = vlaneseq
      %v1716 = vshrl.u32 %v1715, 7
      %v1717 = vsub.s32 0, %v1716
      %v1718 = vrot.slane %v1487, %v1717
      %v1719 = vlaneseq
      %v1720 = vshrl.u32 %v1719, 7
      %v1721 = vsub.s32 0, %v1720
      %v1722 = vrot.slane %v1488, %v1721
      %v1723 = vlaneseq
      %v1724 = vshrl.u32 %v1723, 7
      %v1725 = vsub.s32 0, %v1724
      %v1726 = vrot.slane %v1489, %v1725
      %v1727 = vlaneseq
      %v1728 = vshrl.u32 %v1727, 7
      %v1729 = vsub.s32 0, %v1728
      %v1730 = vrot.slane %v1490, %v1729
      %v1731 = vlaneseq
      %v1732 = vshrl.u32 %v1731, 7
      %v1733 = vsub.s32 0, %v1732
      %v1734 = vrot.slane %v1491, %v1733
      %v1735 = vlaneseq
      %v1736 = vshrl.u32 %v1735, 7
      %v1737 = vsub.s32 0, %v1736
      %v1738 = vrot.slane %v1492, %v1737
      %v1739 = vlaneseq
      %v1740 = vshrl.u32 %v1739, 7
      %v1741 = vsub.s32 0, %v1740
      %v1742 = vrot.slane %v1493, %v1741
      %v1743 = vlaneseq
      %v1744 = vshrl.u32 %v1743, 7
      %v1745 = vsub.s32 0, %v1744
      %v1746 = vrot.slane %v1494, %v1745
      %v1747 = vlaneseq
      %v1748 = vshrl.u32 %v1747, 7
      %v1749 = vsub.s32 0, %v1748
      %v1750 = vrot.slane %v1495, %v1749
      %v1751 = vlaneseq
      %v1752 = vshrl.u32 %v1751, 7
      %v1753 = vsub.s32 0, %v1752
      %v1754 = vrot.slane %v1496, %v1753
      %v1755 = vlaneseq
      %v1756 = vshrl.u32 %v1755, 7
      %v1757 = vsub.s32 0, %v1756
      %v1758 = vrot.slane %v1497, %v1757
      %v1759 = vlaneseq
      %v1760 = vshrl.u32 %v1759, 7
      %v1761 = vsub.s32 0, %v1760
      %v1762 = vrot.slane %v1498, %v1761
      %v1763 = vlaneseq
      %v1764 = vshrl.u32 %v1763, 7
      %v1765 = vsub.s32 0, %v1764
      %v1766 = vrot.slane %v1499, %v1765
      %v1767 = vlaneseq
      %v1768 = vshrl.u32 %v1767, 7
      %v1769 = vsub.s32 0, %v1768
      %v1770 = vrot.slane %v1500, %v1769
      %v1771 = vlaneseq
      %v1772 = vshrl.u32 %v1771, 7
      %v1773 = vsub.s32 0, %v1772
      %v1774 = vrot.slane %v1501, %v1773
      %v1775 = vlaneseq
      %v1776 = vshrl.u32 %v1775, 7
      %v1777 = vsub.s32 0, %v1776
      %v1778 = vrot.slane %v1502, %v1777
      %v1779 = vlaneseq
      %v1780 = vshrl.u32 %v1779, 7
      %v1781 = vsub.s32 0, %v1780
      %v1782 = vrot.slane %v1503, %v1781
      %v1783 = vlaneseq
      %v1784 = vshrl.u32 %v1783, 7
      %v1785 = vsub.s32 0, %v1784
      %v1786 = vrot.slane %v1504, %v1785
      %v1787 = vlaneseq
      %v1788 = vshrl.u32 %v1787, 7
      %v1789 = vsub.s32 0, %v1788
      %v1790 = vrot.slane %v1505, %v1789
      %v1791 = vlaneseq
      %v1792 = vshrl.u32 %v1791, 7
      %v1793 = vsub.s32 0, %v1792
      %v1794 = vrot.slane %v1506, %v1793
      %v1795 = vlaneseq
      %v1796 = vshrl.u32 %v1795, 7
      %v1797 = vsub.s32 0, %v1796
      %v1798 = vrot.slane %v1507, %v1797
      %v1799 = vlaneseq
      %v1800 = vshrl.u32 %v1799, 7
      %v1801 = vsub.s32 0, %v1800
      %v1802 = vrot.slane %v1508, %v1801
      %v1803 = vlaneseq
      %v1804 = vshrl.u32 %v1803, 7
      %v1805 = vsub.s32 0, %v1804
      %v1806 = vrot.slane %v1509, %v1805
      %v1807 = vlaneseq
      %v1808 = vshrl.u32 %v1807, 7
      %v1809 = vsub.s32 0, %v1808
      %v1810 = vrot.slane %v1510, %v1809
      %v1811 = vlaneseq
      %v1812 = vshrl.u32 %v1811, 7
      %v1813 = vsub.s32 0, %v1812
      %v1814 = vrot.slane %v1511, %v1813
      %v1815 = vlaneseq
      %v1816 = vshrl.u32 %v1815, 7
      %v1817 = vsub.s32 0, %v1816
      %v1818 = vrot.slane %v1512, %v1817
      %v1819 = vlaneseq
      %v1820 = vshrl.u32 %v1819, 7
      %v1821 = vsub.s32 0, %v1820
      %v1822 = vrot.slane %v1513, %v1821
      %v1823 = vlaneseq
      %v1824 = vshrl.u32 %v1823, 7
      %v1825 = vsub.s32 0, %v1824
      %v1826 = vrot.slane %v1514, %v1825
      %v1827 = vlaneseq
      %v1828 = vshrl.u32 %v1827, 7
      %v1829 = vsub.s32 0, %v1828
      %v1830 = vrot.slane %v1515, %v1829
      %v1831 = vlaneseq
      %v1832 = vshrl.u32 %v1831, 7
      %v1833 = vsub.s32 0, %v1832
      %v1834 = vrot.slane %v1516, %v1833
      %v1835 = vlaneseq
      %v1836 = vshrl.u32 %v1835, 7
      %v1837 = vsub.s32 0, %v1836
      %v1838 = vrot.slane %v1517, %v1837
      %v1839 = vlaneseq
      %v1840 = vshrl.u32 %v1839, 7
      %v1841 = vsub.s32 0, %v1840
      %v1842 = vrot.slane %v1518, %v1841
      %v1843 = vlaneseq
      %v1844 = vshrl.u32 %v1843, 7
      %v1845 = vsub.s32 0, %v1844
      %v1846 = vrot.slane %v1519, %v1845
      %v1847 = vlaneseq
      %v1848 = vshrl.u32 %v1847, 7
      %v1849 = vsub.s32 0, %v1848
      %v1850 = vrot.slane %v1520, %v1849
      %v1851 = vlaneseq
      %v1852 = vshrl.u32 %v1851, 7
      %v1853 = vsub.s32 0, %v1852
      %v1854 = vrot.slane %v1521, %v1853
      %v1855 = vlaneseq
      %v1856 = vshrl.u32 %v1855, 7
      %v1857 = vsub.s32 0, %v1856
      %v1858 = vrot.slane %v1522, %v1857
      %v1859 = vlaneseq
      %v1860 = vshrl.u32 %v1859, 7
      %v1861 = vsub.s32 0, %v1860
      %v1862 = vrot.slane %v1523, %v1861
      %v1863 = vlaneseq
      %v1864 = vshrl.u32 %v1863, 7
      %v1865 = vsub.s32 0, %v1864
      %v1866 = vrot.slane %v1524, %v1865
      %v1867 = vlaneseq
      %v1868 = vshrl.u32 %v1867, 7
      %v1869 = vsub.s32 0, %v1868
      %v1870 = vrot.slane %v1525, %v1869
      %v1871 = vlaneseq
      %v1872 = vshrl.u32 %v1871, 7
      %v1873 = vsub.s32 0, %v1872
      %v1874 = vrot.slane %v1526, %v1873
      %v1875 = vlaneseq
      %v1876 = vshrl.u32 %v1875, 7
      %v1877 = vsub.s32 0, %v1876
      %v1878 = vrot.slane %v1527, %v1877
      %v1879 = vlaneseq
      %v1880 = vshrl.u32 %v1879, 7
      %v1881 = vsub.s32 0, %v1880
      %v1882 = vrot.slane %v1528, %v1881
      %v1883 = vlaneseq
      %v1884 = vshrl.u32 %v1883, 7
      %v1885 = vsub.s32 0, %v1884
      %v1886 = vrot.slane %v1529, %v1885
      %v1887 = vlaneseq
      %v1888 = vshrl.u32 %v1887, 7
      %v1889 = vsub.s32 0, %v1888
      %v1890 = vrot.slane %v1530, %v1889
      %v1891 = vlaneseq
      %v1892 = vshrl.u32 %v1891, 7
      %v1893 = vsub.s32 0, %v1892
      %v1894 = vrot.slane %v1531, %v1893
      %v1895 = vlaneseq
      %v1896 = vshrl.u32 %v1895, 7
      %v1897 = vsub.s32 0, %v1896
      %v1898 = vrot.slane %v1532, %v1897
      %v1899 = vlaneseq
      %v1900 = vshrl.u32 %v1899, 7
      %v1901 = vsub.s32 0, %v1900
      %v1902 = vrot.slane %v1533, %v1901
      %v1903 = vlaneseq
      %v1904 = vshrl.u32 %v1903, 7
      %v1905 = vsub.s32 0, %v1904
      %v1906 = vrot.slane %v1534, %v1905
      %v1907 = vlaneseq
      %v1908 = vshrl.u32 %v1907, 7
      %v1909 = vsub.s32 0, %v1908
      %v1910 = vrot.slane %v1535, %v1909
      %v1911 = vlaneseq
      %v1912 = vshrl.u32 %v1911, 7
      %v1913 = vsub.s32 0, %v1912
      %v1914 = vrot.slane %v1536, %v1913
      %v1915 = vlaneseq
      %v1916 = vshrl.u32 %v1915, 7
      %v1917 = vsub.s32 0, %v1916
      %v1918 = vrot.slane %v1537, %v1917
      %v1919 = vlaneseq
      %v1920 = vshrl.u32 %v1919, 7
      %v1921 = vsub.s32 0, %v1920
      %v1922 = vrot.slane %v1538, %v1921
      %v1923 = vlaneseq
      %v1924 = vshrl.u32 %v1923, 7
      %v1925 = vsub.s32 0, %v1924
      %v1926 = vrot.slane %v1539, %v1925
      %v1927 = vlaneseq
      %v1928 = vshrl.u32 %v1927, 7
      %v1929 = vsub.s32 0, %v1928
      %v1930 = vrot.slane %v1540, %v1929
      %v1931 = vlaneseq
      %v1932 = vshrl.u32 %v1931, 7
      %v1933 = vsub.s32 0, %v1932
      %v1934 = vrot.slane %v1541, %v1933
      %v1935 = vlaneseq
      %v1936 = vshrl.u32 %v1935, 7
      %v1937 = vsub.s32 0, %v1936
      %v1938 = vrot.slane %v1542, %v1937
      %v1939 = vlaneseq
      %v1940 = vshrl.u32 %v1939, 7
      %v1941 = vsub.s32 0, %v1940
      %v1942 = vrot.slane %v1543, %v1941
      %v1943 = vlaneseq
      %v1944 = vshrl.u32 %v1943, 7
      %v1945 = vsub.s32 0, %v1944
      %v1946 = vrot.slane %v1544, %v1945
      %v1947 = vlaneseq
      %v1948 = vshrl.u32 %v1947, 7
      %v1949 = vsub.s32 0, %v1948
      %v1950 = vrot.slane %v1545, %v1949
      %v1951 = vlaneseq
      %v1952 = vshrl.u32 %v1951, 7
      %v1953 = vsub.s32 0, %v1952
      %v1954 = vrot.slane %v1546, %v1953
      %v1955 = vlaneseq
      %v1956 = vshrl.u32 %v1955, 7
      %v1957 = vsub.s32 0, %v1956
      %v1958 = vrot.slane %v1547, %v1957
      %v1959 = vlaneseq
      %v1960 = vshrl.u32 %v1959, 7
      %v1961 = vsub.s32 0, %v1960
      %v1962 = vrot.slane %v1548, %v1961
      %v1963 = vlaneseq
      %v1964 = vshrl.u32 %v1963, 7
      %v1965 = vsub.s32 0, %v1964
      %v1966 = vrot.slane %v1549, %v1965
      %v1967 = vlaneseq
      %v1968 = vshrl.u32 %v1967, 7
      %v1969 = vsub.s32 0, %v1968
      %v1970 = vrot.slane %v1550, %v1969
      %v1971 = vlaneseq
      %v1972 = vshrl.u32 %v1971, 7
      %v1973 = vsub.s32 0, %v1972
      %v1974 = vrot.slane %v1551, %v1973
      %v1975 = vlaneseq
      %v1976 = vshrl.u32 %v1975, 7
      %v1977 = vsub.s32 0, %v1976
      %v1978 = vrot.slane %v1552, %v1977
      %v1979 = vlaneseq
      %v1980 = vshrl.u32 %v1979, 7
      %v1981 = vsub.s32 0, %v1980
      %v1982 = vrot.slane %v1553, %v1981
      %v1983 = vlaneseq
      %v1984 = vshrl.u32 %v1983, 7
      %v1985 = vsub.s32 0, %v1984
      %v1986 = vrot.slane %v1554, %v1985
      %v1987 = vlaneseq
      %v1988 = vshrl.u32 %v1987, 7
      %v1989 = vsub.s32 0, %v1988
      %v1990 = vrot.slane %v1555, %v1989
      %v1991 = vlaneseq
      %v1992 = vshrl.u32 %v1991, 7
      %v1993 = vsub.s32 0, %v1992
      %v1994 = vrot.slane %v1556, %v1993
      %v1995 = vlaneseq
      %v1996 = vshrl.u32 %v1995, 7
      %v1997 = vsub.s32 0, %v1996
      %v1998 = vrot.slane %v1557, %v1997
      %v1999 = vlaneseq
      %v2000 = vshrl.u32 %v1999, 7
      %v2001 = vsub.s32 0, %v2000
      %v2002 = vrot.slane %v1558, %v2001
      %v2003 = vlaneseq
      %v2004 = vshrl.u32 %v2003, 7
      %v2005 = vsub.s32 0, %v2004
      %v2006 = vrot.slane %v1559, %v2005
      %v2007 = vlaneseq
      %v2008 = vshrl.u32 %v2007, 7
      %v2009 = vsub.s32 0, %v2008
      %v2010 = vrot.slane %v1560, %v2009
      %v2011 = vlaneseq
      %v2012 = vshrl.u32 %v2011, 7
      %v2013 = vsub.s32 0, %v2012
      %v2014 = vrot.slane %v1561, %v2013
      %v2015 = vlaneseq
      %v2016 = vshrl.u32 %v2015, 7
      %v2017 = vsub.s32 0, %v2016
      %v2018 = vrot.slane %v1562, %v2017
      %v2019 = vlaneseq
      %v2020 = vshrl.u32 %v2019, 7
      %v2021 = vsub.s32 0, %v2020
      %v2022 = vrot.slane %v1563, %v2021
      %v2023 = vlaneseq
      %v2024 = vshrl.u32 %v2023, 7
      %v2025 = vsub.s32 0, %v2024
      %v2026 = vrot.slane %v1564, %v2025
      %v2027 = vlaneseq
      %v2028 = vshrl.u32 %v2027, 7
      %v2029 = vsub.s32 0, %v2028
      %v2030 = vrot.slane %v1565, %v2029
      %v2031 = vlaneseq
      %v2032 = vshrl.u32 %v2031, 7
      %v2033 = vsub.s32 0, %v2032
      %v2034 = vrot.slane %v1566, %v2033
      %v2035 = vlaneseq
      %v2036 = vshrl.u32 %v2035, 7
      %v2037 = vsub.s32 0, %v2036
      %v2038 = vrot.slane %v1567, %v2037
      %v2039 = vlaneseq
      %v2040 = vshrl.u32 %v2039, 7
      %v2041 = vsub.s32 0, %v2040
      %v2042 = vrot.slane %v1568, %v2041
      %v2043 = vlaneseq
      %v2044 = vshrl.u32 %v2043, 7
      %v2045 = vsub.s32 0, %v2044
      %v2046 = vrot.slane %v1569, %v2045
      %v2047 = vlaneseq
      %v2048 = vshrl.u32 %v2047, 7
      %v2049 = vsub.s32 0, %v2048
      %v2050 = vrot.slane %v1570, %v2049
      %2051 = vset.pattern.permute.xlu0 0
      %2052 = vperm.xlu0 %2051, %v1670
      %v2053 = vpop.permute.xlu0 %2052
      %2055 = vset.pattern.permute.xlu0 0
      %2056 = vperm.xlu0 %2055, %v1674
      %v2057 = vpop.permute.xlu0 %2056
      %2059 = vset.pattern.permute.xlu0 0
      %2060 = vperm.xlu0 %2059, %v1678
      %v2061 = vpop.permute.xlu0 %2060
      %2063 = vset.pattern.permute.xlu0 0
      %2064 = vperm.xlu0 %2063, %v1682
      %v2065 = vpop.permute.xlu0 %2064
      %2067 = vset.pattern.permute.xlu0 0
      %2068 = vperm.xlu0 %2067, %v1686
      %v2069 = vpop.permute.xlu0 %2068
      %2071 = vset.pattern.permute.xlu0 0
      %2072 = vperm.xlu0 %2071, %v1690
      %v2073 = vpop.permute.xlu0 %2072
      %2075 = vset.pattern.permute.xlu0 0
      %2076 = vperm.xlu0 %2075, %v1694
      %v2077 = vpop.permute.xlu0 %2076
      %2079 = vset.pattern.permute.xlu0 0
      %2080 = vperm.xlu0 %2079, %v1698
      %v2081 = vpop.permute.xlu0 %2080
      %2083 = vset.pattern.permute.xlu0 0
      %2084 = vperm.xlu0 %2083, %v1702
      %v2085 = vpop.permute.xlu0 %2084
      %2087 = vset.pattern.permute.xlu0 0
      %2088 = vperm.xlu0 %2087, %v1706
      %v2089 = vpop.permute.xlu0 %2088
      %2091 = vset.pattern.permute.xlu0 0
      %2092 = vperm.xlu0 %2091, %v1710
      %v2093 = vpop.permute.xlu0 %2092
      %2095 = vset.pattern.permute.xlu0 0
      %2096 = vperm.xlu0 %2095, %v1714
      %v2097 = vpop.permute.xlu0 %2096
      %2099 = vset.pattern.permute.xlu0 0
      %2100 = vperm.xlu0 %2099, %v1718
      %v2101 = vpop.permute.xlu0 %2100
      %2103 = vset.pattern.permute.xlu0 0
      %2104 = vperm.xlu0 %2103, %v1722
      %v2105 = vpop.permute.xlu0 %2104
      %2107 = vset.pattern.permute.xlu0 0
      %2108 = vperm.xlu0 %2107, %v1726
      %v2109 = vpop.permute.xlu0 %2108
      %2111 = vset.pattern.permute.xlu0 0
      %2112 = vperm.xlu0 %2111, %v1730
      %v2113 = vpop.permute.xlu0 %2112
      %2115 = vset.pattern.permute.xlu0 0
      %2116 = vperm.xlu0 %2115, %v1734
      %v2117 = vpop.permute.xlu0 %2116
      %2119 = vset.pattern.permute.xlu0 0
      %2120 = vperm.xlu0 %2119, %v1738
      %v2121 = vpop.permute.xlu0 %2120
      %2123 = vset.pattern.permute.xlu0 0
      %2124 = vperm.xlu0 %2123, %v1742
      %v2125 = vpop.permute.xlu0 %2124
      %2127 = vset.pattern.permute.xlu0 0
      %2128 = vperm.xlu0 %2127, %v1746
      %v2129 = vpop.permute.xlu0 %2128
      %2131 = vset.pattern.permute.xlu0 0
      %2132 = vperm.xlu0 %2131, %v1750
      %v2133 = vpop.permute.xlu0 %2132
      %2135 = vset.pattern.permute.xlu0 0
      %2136 = vperm.xlu0 %2135, %v1754
      %v2137 = vpop.permute.xlu0 %2136
      %2139 = vset.pattern.permute.xlu0 0
      %2140 = vperm.xlu0 %2139, %v1758
      %v2141 = vpop.permute.xlu0 %2140
      %2143 = vset.pattern.permute.xlu0 0
      %2144 = vperm.xlu0 %2143, %v1762
      %v2145 = vpop.permute.xlu0 %2144
      %2147 = vset.pattern.permute.xlu0 0
      %2148 = vperm.xlu0 %2147, %v1766
      %v2149 = vpop.permute.xlu0 %2148
      %2151 = vset.pattern.permute.xlu0 0
      %2152 = vperm.xlu0 %2151, %v1770
      %v2153 = vpop.permute.xlu0 %2152
      %2155 = vset.pattern.permute.xlu0 0
      %2156 = vperm.xlu0 %2155, %v1774
      %v2157 = vpop.permute.xlu0 %2156
      %2159 = vset.pattern.permute.xlu0 0
      %2160 = vperm.xlu0 %2159, %v1778
      %v2161 = vpop.permute.xlu0 %2160
      %2163 = vset.pattern.permute.xlu0 0
      %2164 = vperm.xlu0 %2163, %v1782
      %v2165 = vpop.permute.xlu0 %2164
      %2167 = vset.pattern.permute.xlu0 0
      %2168 = vperm.xlu0 %2167, %v1786
      %v2169 = vpop.permute.xlu0 %2168
      %2171 = vset.pattern.permute.xlu0 0
      %2172 = vperm.xlu0 %2171, %v1790
      %v2173 = vpop.permute.xlu0 %2172
      %2175 = vset.pattern.permute.xlu0 0
      %2176 = vperm.xlu0 %2175, %v1794
      %v2177 = vpop.permute.xlu0 %2176
      %2179 = vset.pattern.permute.xlu0 0
      %2180 = vperm.xlu0 %2179, %v1798
      %v2181 = vpop.permute.xlu0 %2180
      %2183 = vset.pattern.permute.xlu0 0
      %2184 = vperm.xlu0 %2183, %v1802
      %v2185 = vpop.permute.xlu0 %2184
      %2187 = vset.pattern.permute.xlu0 0
      %2188 = vperm.xlu0 %2187, %v1806
      %v2189 = vpop.permute.xlu0 %2188
      %2191 = vset.pattern.permute.xlu0 0
      %2192 = vperm.xlu0 %2191, %v1810
      %v2193 = vpop.permute.xlu0 %2192
      %2195 = vset.pattern.permute.xlu0 0
      %2196 = vperm.xlu0 %2195, %v1814
      %v2197 = vpop.permute.xlu0 %2196
      %2199 = vset.pattern.permute.xlu0 0
      %2200 = vperm.xlu0 %2199, %v1818
      %v2201 = vpop.permute.xlu0 %2200
      %2203 = vset.pattern.permute.xlu0 0
      %2204 = vperm.xlu0 %2203, %v1822
      %v2205 = vpop.permute.xlu0 %2204
      %2207 = vset.pattern.permute.xlu0 0
      %2208 = vperm.xlu0 %2207, %v1826
      %v2209 = vpop.permute.xlu0 %2208
      %2211 = vset.pattern.permute.xlu0 0
      %2212 = vperm.xlu0 %2211, %v1830
      %v2213 = vpop.permute.xlu0 %2212
      %2215 = vset.pattern.permute.xlu0 0
      %2216 = vperm.xlu0 %2215, %v1834
      %v2217 = vpop.permute.xlu0 %2216
      %2219 = vset.pattern.permute.xlu0 0
      %2220 = vperm.xlu0 %2219, %v1838
      %v2221 = vpop.permute.xlu0 %2220
      %2223 = vset.pattern.permute.xlu0 0
      %2224 = vperm.xlu0 %2223, %v1842
      %v2225 = vpop.permute.xlu0 %2224
      %2227 = vset.pattern.permute.xlu0 0
      %2228 = vperm.xlu0 %2227, %v1846
      %v2229 = vpop.permute.xlu0 %2228
      %2231 = vset.pattern.permute.xlu0 0
      %2232 = vperm.xlu0 %2231, %v1850
      %v2233 = vpop.permute.xlu0 %2232
      %2235 = vset.pattern.permute.xlu0 0
      %2236 = vperm.xlu0 %2235, %v1854
      %v2237 = vpop.permute.xlu0 %2236
      %2239 = vset.pattern.permute.xlu0 0
      %2240 = vperm.xlu0 %2239, %v1858
      %v2241 = vpop.permute.xlu0 %2240
      %2243 = vset.pattern.permute.xlu0 0
      %2244 = vperm.xlu0 %2243, %v1862
      %v2245 = vpop.permute.xlu0 %2244
      %2247 = vset.pattern.permute.xlu0 0
      %2248 = vperm.xlu0 %2247, %v1866
      %v2249 = vpop.permute.xlu0 %2248
      %2251 = vset.pattern.permute.xlu0 0
      %2252 = vperm.xlu0 %2251, %v1870
      %v2253 = vpop.permute.xlu0 %2252
      %2255 = vset.pattern.permute.xlu0 0
      %2256 = vperm.xlu0 %2255, %v1874
      %v2257 = vpop.permute.xlu0 %2256
      %2259 = vset.pattern.permute.xlu0 0
      %2260 = vperm.xlu0 %2259, %v1878
      %v2261 = vpop.permute.xlu0 %2260
      %2263 = vset.pattern.permute.xlu0 0
      %2264 = vperm.xlu0 %2263, %v1882
      %v2265 = vpop.permute.xlu0 %2264
      %2267 = vset.pattern.permute.xlu0 0
      %2268 = vperm.xlu0 %2267, %v1886
      %v2269 = vpop.permute.xlu0 %2268
      %2271 = vset.pattern.permute.xlu0 0
      %2272 = vperm.xlu0 %2271, %v1890
      %v2273 = vpop.permute.xlu0 %2272
      %2275 = vset.pattern.permute.xlu0 0
      %2276 = vperm.xlu0 %2275, %v1894
      %v2277 = vpop.permute.xlu0 %2276
      %2279 = vset.pattern.permute.xlu0 0
      %2280 = vperm.xlu0 %2279, %v1898
      %v2281 = vpop.permute.xlu0 %2280
      %2283 = vset.pattern.permute.xlu0 0
      %2284 = vperm.xlu0 %2283, %v1902
      %v2285 = vpop.permute.xlu0 %2284
      %2287 = vset.pattern.permute.xlu0 0
      %2288 = vperm.xlu0 %2287, %v1906
      %v2289 = vpop.permute.xlu0 %2288
      %2291 = vset.pattern.permute.xlu0 0
      %2292 = vperm.xlu0 %2291, %v1910
      %v2293 = vpop.permute.xlu0 %2292
      %2295 = vset.pattern.permute.xlu0 0
      %2296 = vperm.xlu0 %2295, %v1914
      %v2297 = vpop.permute.xlu0 %2296
      %2299 = vset.pattern.permute.xlu0 0
      %2300 = vperm.xlu0 %2299, %v1918
      %v2301 = vpop.permute.xlu0 %2300
      %2303 = vset.pattern.permute.xlu0 0
      %2304 = vperm.xlu0 %2303, %v1922
      %v2305 = vpop.permute.xlu0 %2304
      %2307 = vset.pattern.permute.xlu0 0
      %2308 = vperm.xlu0 %2307, %v1926
      %v2309 = vpop.permute.xlu0 %2308
      %2311 = vset.pattern.permute.xlu0 0
      %2312 = vperm.xlu0 %2311, %v1930
      %v2313 = vpop.permute.xlu0 %2312
      %2315 = vset.pattern.permute.xlu0 0
      %2316 = vperm.xlu0 %2315, %v1934
      %v2317 = vpop.permute.xlu0 %2316
      %2319 = vset.pattern.permute.xlu0 0
      %2320 = vperm.xlu0 %2319, %v1938
      %v2321 = vpop.permute.xlu0 %2320
      %2323 = vset.pattern.permute.xlu0 0
      %2324 = vperm.xlu0 %2323, %v1942
      %v2325 = vpop.permute.xlu0 %2324
      %2327 = vset.pattern.permute.xlu0 0
      %2328 = vperm.xlu0 %2327, %v1946
      %v2329 = vpop.permute.xlu0 %2328
      %2331 = vset.pattern.permute.xlu0 0
      %2332 = vperm.xlu0 %2331, %v1950
      %v2333 = vpop.permute.xlu0 %2332
      %2335 = vset.pattern.permute.xlu0 0
      %2336 = vperm.xlu0 %2335, %v1954
      %v2337 = vpop.permute.xlu0 %2336
      %2339 = vset.pattern.permute.xlu0 0
      %2340 = vperm.xlu0 %2339, %v1958
      %v2341 = vpop.permute.xlu0 %2340
      %2343 = vset.pattern.permute.xlu0 0
      %2344 = vperm.xlu0 %2343, %v1962
      %v2345 = vpop.permute.xlu0 %2344
      %2347 = vset.pattern.permute.xlu0 0
      %2348 = vperm.xlu0 %2347, %v1966
      %v2349 = vpop.permute.xlu0 %2348
      %2351 = vset.pattern.permute.xlu0 0
      %2352 = vperm.xlu0 %2351, %v1970
      %v2353 = vpop.permute.xlu0 %2352
      %2355 = vset.pattern.permute.xlu0 0
      %2356 = vperm.xlu0 %2355, %v1974
      %v2357 = vpop.permute.xlu0 %2356
      %2359 = vset.pattern.permute.xlu0 0
      %2360 = vperm.xlu0 %2359, %v1978
      %v2361 = vpop.permute.xlu0 %2360
      %2363 = vset.pattern.permute.xlu0 0
      %2364 = vperm.xlu0 %2363, %v1982
      %v2365 = vpop.permute.xlu0 %2364
      %2367 = vset.pattern.permute.xlu0 0
      %2368 = vperm.xlu0 %2367, %v1986
      %v2369 = vpop.permute.xlu0 %2368
      %2371 = vset.pattern.permute.xlu0 0
      %2372 = vperm.xlu0 %2371, %v1990
      %v2373 = vpop.permute.xlu0 %2372
      %2375 = vset.pattern.permute.xlu0 0
      %2376 = vperm.xlu0 %2375, %v1994
      %v2377 = vpop.permute.xlu0 %2376
      %2379 = vset.pattern.permute.xlu0 0
      %2380 = vperm.xlu0 %2379, %v1998
      %v2381 = vpop.permute.xlu0 %2380
      %2383 = vset.pattern.permute.xlu0 0
      %2384 = vperm.xlu0 %2383, %v2002
      %v2385 = vpop.permute.xlu0 %2384
      %2387 = vset.pattern.permute.xlu0 0
      %2388 = vperm.xlu0 %2387, %v2006
      %v2389 = vpop.permute.xlu0 %2388
      %2391 = vset.pattern.permute.xlu0 0
      %2392 = vperm.xlu0 %2391, %v2010
      %v2393 = vpop.permute.xlu0 %2392
      %2395 = vset.pattern.permute.xlu0 0
      %2396 = vperm.xlu0 %2395, %v2014
      %v2397 = vpop.permute.xlu0 %2396
      %2399 = vset.pattern.permute.xlu0 0
      %2400 = vperm.xlu0 %2399, %v2018
      %v2401 = vpop.permute.xlu0 %2400
      %2403 = vset.pattern.permute.xlu0 0
      %2404 = vperm.xlu0 %2403, %v2022
      %v2405 = vpop.permute.xlu0 %2404
      %2407 = vset.pattern.permute.xlu0 0
      %2408 = vperm.xlu0 %2407, %v2026
      %v2409 = vpop.permute.xlu0 %2408
      %2411 = vset.pattern.permute.xlu0 0
      %2412 = vperm.xlu0 %2411, %v2030
      %v2413 = vpop.permute.xlu0 %2412
      %2415 = vset.pattern.permute.xlu0 0
      %2416 = vperm.xlu0 %2415, %v2034
      %v2417 = vpop.permute.xlu0 %2416
      %2419 = vset.pattern.permute.xlu0 0
      %2420 = vperm.xlu0 %2419, %v2038
      %v2421 = vpop.permute.xlu0 %2420
      %2423 = vset.pattern.permute.xlu0 0
      %2424 = vperm.xlu0 %2423, %v2042
      %v2425 = vpop.permute.xlu0 %2424
      %2427 = vset.pattern.permute.xlu0 0
      %2428 = vperm.xlu0 %2427, %v2046
      %v2429 = vpop.permute.xlu0 %2428
      %2431 = vset.pattern.permute.xlu0 0
      %2432 = vperm.xlu0 %2431, %v2050
      %v2433 = vpop.permute.xlu0 %2432
      %v2435 = vmul.f32 %v1474, %v2053
      %v2436 = vmul.f32 %v1474, %v2057
      %v2437 = vmul.f32 %v1474, %v2061
      %v2438 = vmul.f32 %v1474, %v2065
      %v2439 = vmul.f32 %v1474, %v2069
      %v2440 = vmul.f32 %v1474, %v2073
      %v2441 = vmul.f32 %v1474, %v2077
      %v2442 = vmul.f32 %v1474, %v2081
      %v2443 = vmul.f32 %v1474, %v2085
      %v2444 = vmul.f32 %v1474, %v2089
      %v2445 = vmul.f32 %v1474, %v2093
      %v2446 = vmul.f32 %v1474, %v2097
      %v2447 = vmul.f32 %v1474, %v2101
      %v2448 = vmul.f32 %v1474, %v2105
      %v2449 = vmul.f32 %v1474, %v2109
      %v2450 = vmul.f32 %v1474, %v2113
      %v2451 = vmul.f32 %v1474, %v2117
      %v2452 = vmul.f32 %v1474, %v2121
      %v2453 = vmul.f32 %v1474, %v2125
      %v2454 = vmul.f32 %v1474, %v2129
      %v2455 = vmul.f32 %v1474, %v2133
      %v2456 = vmul.f32 %v1474, %v2137
      %v2457 = vmul.f32 %v1474, %v2141
      %v2458 = vmul.f32 %v1474, %v2145
      %v2459 = vmul.f32 %v1474, %v2149
      %v2460 = vmul.f32 %v1474, %v2153
      %v2461 = vmul.f32 %v1474, %v2157
      %v2462 = vmul.f32 %v1474, %v2161
      %v2463 = vmul.f32 %v1474, %v2165
      %v2464 = vmul.f32 %v1474, %v2169
      %v2465 = vmul.f32 %v1474, %v2173
      %v2466 = vmul.f32 %v1474, %v2177
      %v2467 = vmul.f32 %v1474, %v2181
      %v2468 = vmul.f32 %v1474, %v2185
      %v2469 = vmul.f32 %v1474, %v2189
      %v2470 = vmul.f32 %v1474, %v2193
      %v2471 = vmul.f32 %v1474, %v2197
      %v2472 = vmul.f32 %v1474, %v2201
      %v2473 = vmul.f32 %v1474, %v2205
      %v2474 = vmul.f32 %v1474, %v2209
      %v2475 = vmul.f32 %v1474, %v2213
      %v2476 = vmul.f32 %v1474, %v2217
      %v2477 = vmul.f32 %v1474, %v2221
      %v2478 = vmul.f32 %v1474, %v2225
      %v2479 = vmul.f32 %v1474, %v2229
      %v2480 = vmul.f32 %v1474, %v2233
      %v2481 = vmul.f32 %v1474, %v2237
      %v2482 = vmul.f32 %v1474, %v2241
      %v2483 = vmul.f32 %v1474, %v2245
      %v2484 = vmul.f32 %v1474, %v2249
      %v2485 = vmul.f32 %v1474, %v2253
      %v2486 = vmul.f32 %v1474, %v2257
      %v2487 = vmul.f32 %v1474, %v2261
      %v2488 = vmul.f32 %v1474, %v2265
      %v2489 = vmul.f32 %v1474, %v2269
      %v2490 = vmul.f32 %v1474, %v2273
      %v2491 = vmul.f32 %v1474, %v2277
      %v2492 = vmul.f32 %v1474, %v2281
      %v2493 = vmul.f32 %v1474, %v2285
      %v2494 = vmul.f32 %v1474, %v2289
      %v2495 = vmul.f32 %v1474, %v2293
      %v2496 = vmul.f32 %v1474, %v2297
      %v2497 = vmul.f32 %v1474, %v2301
      %v2498 = vmul.f32 %v1474, %v2305
      %v2499 = vmul.f32 %v1474, %v2309
      %v2500 = vmul.f32 %v1474, %v2313
      %v2501 = vmul.f32 %v1474, %v2317
      %v2502 = vmul.f32 %v1474, %v2321
      %v2503 = vmul.f32 %v1474, %v2325
      %v2504 = vmul.f32 %v1474, %v2329
      %v2505 = vmul.f32 %v1474, %v2333
      %v2506 = vmul.f32 %v1474, %v2337
      %v2507 = vmul.f32 %v1474, %v2341
      %v2508 = vmul.f32 %v1474, %v2345
      %v2509 = vmul.f32 %v1474, %v2349
      %v2510 = vmul.f32 %v1474, %v2353
      %v2511 = vmul.f32 %v1474, %v2357
      %v2512 = vmul.f32 %v1474, %v2361
      %v2513 = vmul.f32 %v1474, %v2365
      %v2514 = vmul.f32 %v1474, %v2369
      %v2515 = vmul.f32 %v1474, %v2373
      %v2516 = vmul.f32 %v1474, %v2377
      %v2517 = vmul.f32 %v1474, %v2381
      %v2518 = vmul.f32 %v1474, %v2385
      %v2519 = vmul.f32 %v1474, %v2389
      %v2520 = vmul.f32 %v1474, %v2393
      %v2521 = vmul.f32 %v1474, %v2397
      %v2522 = vmul.f32 %v1474, %v2401
      %v2523 = vmul.f32 %v1474, %v2405
      %v2524 = vmul.f32 %v1474, %v2409
      %v2525 = vmul.f32 %v1474, %v2413
      %v2526 = vmul.f32 %v1474, %v2417
      %v2527 = vmul.f32 %v1474, %v2421
      %v2528 = vmul.f32 %v1474, %v2425
      %v2529 = vmul.f32 %v1474, %v2429
      %v2530 = vmul.f32 %v1474, %v2433
      %v2531 = vadd.f32 %v1226, %v2435
      %v2532 = vadd.f32 %v1227, %v2436
      %v2533 = vadd.f32 %v1228, %v2437
      %v2534 = vadd.f32 %v1229, %v2438
      %v2535 = vadd.f32 %v1230, %v2439
      %v2536 = vadd.f32 %v1231, %v2440
      %v2537 = vadd.f32 %v1232, %v2441
      %v2538 = vadd.f32 %v1233, %v2442
      %v2539 = vadd.f32 %v1234, %v2443
      %v2540 = vadd.f32 %v1235, %v2444
      %v2541 = vadd.f32 %v1236, %v2445
      %v2542 = vadd.f32 %v1237, %v2446
      %v2543 = vadd.f32 %v1238, %v2447
      %v2544 = vadd.f32 %v1239, %v2448
      %v2545 = vadd.f32 %v1240, %v2449
      %v2546 = vadd.f32 %v1241, %v2450
      %v2547 = vadd.f32 %v1242, %v2451
      %v2548 = vadd.f32 %v1243, %v2452
      %v2549 = vadd.f32 %v1244, %v2453
      %v2550 = vadd.f32 %v1245, %v2454
      %v2551 = vadd.f32 %v1246, %v2455
      %v2552 = vadd.f32 %v1247, %v2456
      %v2553 = vadd.f32 %v1248, %v2457
      %v2554 = vadd.f32 %v1249, %v2458
      %v2555 = vadd.f32 %v1250, %v2459
      %v2556 = vadd.f32 %v1251, %v2460
      %v2557 = vadd.f32 %v1252, %v2461
      %v2558 = vadd.f32 %v1253, %v2462
      %v2559 = vadd.f32 %v1254, %v2463
      %v2560 = vadd.f32 %v1255, %v2464
      %v2561 = vadd.f32 %v1256, %v2465
      %v2562 = vadd.f32 %v1257, %v2466
      %v2563 = vadd.f32 %v1258, %v2467
      %v2564 = vadd.f32 %v1259, %v2468
      %v2565 = vadd.f32 %v1260, %v2469
      %v2566 = vadd.f32 %v1261, %v2470
      %v2567 = vadd.f32 %v1262, %v2471
      %v2568 = vadd.f32 %v1263, %v2472
      %v2569 = vadd.f32 %v1264, %v2473
      %v2570 = vadd.f32 %v1265, %v2474
      %v2571 = vadd.f32 %v1266, %v2475
      %v2572 = vadd.f32 %v1267, %v2476
      %v2573 = vadd.f32 %v1268, %v2477
      %v2574 = vadd.f32 %v1269, %v2478
      %v2575 = vadd.f32 %v1270, %v2479
      %v2576 = vadd.f32 %v1271, %v2480
      %v2577 = vadd.f32 %v1272, %v2481
      %v2578 = vadd.f32 %v1273, %v2482
      %v2579 = vadd.f32 %v1274, %v2483
      %v2580 = vadd.f32 %v1275, %v2484
      %v2581 = vadd.f32 %v1276, %v2485
      %v2582 = vadd.f32 %v1277, %v2486
      %v2583 = vadd.f32 %v1278, %v2487
      %v2584 = vadd.f32 %v1279, %v2488
      %v2585 = vadd.f32 %v1280, %v2489
      %v2586 = vadd.f32 %v1281, %v2490
      %v2587 = vadd.f32 %v1282, %v2491
      %v2588 = vadd.f32 %v1283, %v2492
      %v2589 = vadd.f32 %v1284, %v2493
      %v2590 = vadd.f32 %v1285, %v2494
      %v2591 = vadd.f32 %v1286, %v2495
      %v2592 = vadd.f32 %v1287, %v2496
      %v2593 = vadd.f32 %v1288, %v2497
      %v2594 = vadd.f32 %v1289, %v2498
      %v2595 = vadd.f32 %v1290, %v2499
      %v2596 = vadd.f32 %v1291, %v2500
      %v2597 = vadd.f32 %v1292, %v2501
      %v2598 = vadd.f32 %v1293, %v2502
      %v2599 = vadd.f32 %v1294, %v2503
      %v2600 = vadd.f32 %v1295, %v2504
      %v2601 = vadd.f32 %v1296, %v2505
      %v2602 = vadd.f32 %v1297, %v2506
      %v2603 = vadd.f32 %v1298, %v2507
      %v2604 = vadd.f32 %v1299, %v2508
      %v2605 = vadd.f32 %v1300, %v2509
      %v2606 = vadd.f32 %v1301, %v2510
      %v2607 = vadd.f32 %v1302, %v2511
      %v2608 = vadd.f32 %v1303, %v2512
      %v2609 = vadd.f32 %v1304, %v2513
      %v2610 = vadd.f32 %v1305, %v2514
      %v2611 = vadd.f32 %v1306, %v2515
      %v2612 = vadd.f32 %v1307, %v2516
      %v2613 = vadd.f32 %v1308, %v2517
      %v2614 = vadd.f32 %v1309, %v2518
      %v2615 = vadd.f32 %v1310, %v2519
      %v2616 = vadd.f32 %v1311, %v2520
      %v2617 = vadd.f32 %v1312, %v2521
      %v2618 = vadd.f32 %v1313, %v2522
      %v2619 = vadd.f32 %v1314, %v2523
      %v2620 = vadd.f32 %v1315, %v2524
      %v2621 = vadd.f32 %v1316, %v2525
      %v2622 = vadd.f32 %v1317, %v2526
      %v2623 = vadd.f32 %v1318, %v2527
      %v2624 = vadd.f32 %v1319, %v2528
      %v2625 = vadd.f32 %v1320, %v2529
      %v2626 = vadd.f32 %v1321, %v2530
      %s2627 = scalar_lea.vmem %s251, 32
      %v2628 = vld [vmem:[%s2627] sm:$0xff]
      %v2629 = vld [vmem:[%s2627 + $0x8] sm:$0xff]
      %v2630 = vld [vmem:[%s2627 + $0x10] sm:$0xff]
      %v2631 = vld [vmem:[%s2627 + $0x18] sm:$0xff]
      %2632 = vmatprep.subr.mxu0 0.0
      %2633 = vmatpush1.msra.mxu0 0.0
      %2634 = vmatprep.subr.mxu0 0.0
      %2635 = vmatpush1.msra.mxu0 0.0
      %2636 = vmatprep.subr.mxu0 0.0
      %2637 = vmatpush1.msra.mxu0 0.0
      %2638 = vmatprep.subr.mxu0 0.0
      %2639 = vmatpush1.msra.mxu0 0.0
      %2640 = vmatprep.subr.mxu0 0.0
      %2641 = vmatpush1.msra.mxu0 0.0
      %2642 = vmatprep.subr.mxu0 0.0
      %2643 = vmatpush1.msra.mxu0 0.0
      %2644 = vmatprep.subr.mxu0 0.0
      %2645 = vmatpush1.msra.mxu0 0.0
      %2646 = vmatprep.subr.mxu0 0.0
      %2647 = vmatpush1.msra.mxu0 0.0
      %2648 = vmatprep.subr.mxu0 0.0
      %2649 = vmatpush1.msra.mxu0 0.0
      %2650 = vmatprep.subr.mxu0 0.0
      %2651 = vmatpush1.msra.mxu0 0.0
      %2652 = vmatprep.subr.mxu0 0.0
      %2653 = vmatpush1.msra.mxu0 0.0
      %2654 = vmatprep.subr.mxu0 0.0
      %2655 = vmatpush1.msra.mxu0 0.0
      %2656 = vmatprep.subr.mxu0 0.0
      %2657 = vmatpush1.msra.mxu0 %v2631
      %2658 = vmatprep.subr.mxu0 0.0
      %2659 = vmatpush1.msra.mxu0 %v2630
      %2660 = vmatprep.subr.mxu0 0.0
      %2661 = vmatpush1.msra.mxu0 %v2629
      %2662 = vmatprep.subr.mxu0 0.0
      %2663 = vmatpush1.msra.mxu0 %v2628
      %2664 = vmatprep.subr.mxu0 0.0
      %2665 = vmatpush2.msra.mxu0 0.0
      %2666 = vmatprep.subr.mxu0 0.0
      %2667 = vmatpush2.msra.mxu0 0.0
      %2668 = vmatprep.subr.mxu0 0.0
      %2669 = vmatpush2.msra.mxu0 0.0
      %2670 = vmatprep.subr.mxu0 0.0
      %2671 = vmatpush2.msra.mxu0 0.0
      %2672 = vmatprep.subr.mxu0 0.0
      %2673 = vmatpush2.msra.mxu0 0.0
      %2674 = vmatprep.subr.mxu0 0.0
      %2675 = vmatpush2.msra.mxu0 0.0
      %2676 = vmatprep.subr.mxu0 0.0
      %2677 = vmatpush2.msra.mxu0 0.0
      %2678 = vmatprep.subr.mxu0 0.0
      %2679 = vmatpush2.msra.mxu0 0.0
      %2680 = vmatprep.subr.mxu0 0.0
      %2681 = vmatpush2.msra.mxu0 0.0
      %2682 = vmatprep.subr.mxu0 0.0
      %2683 = vmatpush2.msra.mxu0 0.0
      %2684 = vmatprep.subr.mxu0 0.0
      %2685 = vmatpush2.msra.mxu0 0.0
      %2686 = vmatprep.subr.mxu0 0.0
      %2687 = vmatpush2.msra.mxu0 0.0
      %2688 = vmatprep.subr.mxu0 0.0
      %2689 = vmatpush2.msra.mxu0 0.0
      %2690 = vmatprep.subr.mxu0 0.0
      %2691 = vmatpush2.msra.mxu0 0.0
      %2692 = vmatprep.subr.mxu0 0.0
      %2693 = vmatpush2.msra.mxu0 0.0
      %2694 = vmatprep.subr.mxu0 0.0
      %2695 = vmatpush2.msra.mxu0 0.0
      %2696 = vmatprep.mubr.f32.mxu0 0.0
      %2697 = vmatmul.mubr.f32.gmra.mxu0 %v1328
      %v2698 = vpop.f32.mrf.mxu0
      %v2699 = vadd.f32 0.0, %v2698
      %v2700 = vpop.f32.mrf.mxu0
      %2701 = vdwg.mxu0
      %v2703 = vsel %vm1326, %v2699, 0
      %2705 = vmatprep.subr.mxu0 0.0
      %2706 = vmatpush1.msra.mxu0 0.0
      %2707 = vmatprep.subr.mxu0 0.0
      %2708 = vmatpush1.msra.mxu0 0.0
      %2709 = vmatprep.subr.mxu0 0.0
      %2710 = vmatpush1.msra.mxu0 0.0
      %2711 = vmatprep.subr.mxu0 0.0
      %2712 = vmatpush1.msra.mxu0 0.0
      %2713 = vmatprep.subr.mxu0 0.0
      %2714 = vmatpush1.msra.mxu0 0.0
      %2715 = vmatprep.subr.mxu0 0.0
      %2716 = vmatpush1.msra.mxu0 0.0
      %2717 = vmatprep.subr.mxu0 0.0
      %2718 = vmatpush1.msra.mxu0 0.0
      %2719 = vmatprep.subr.mxu0 0.0
      %2720 = vmatpush1.msra.mxu0 0.0
      %2721 = vmatprep.subr.mxu0 0.0
      %2722 = vmatpush1.msra.mxu0 0.0
      %2723 = vmatprep.subr.mxu0 0.0
      %2724 = vmatpush1.msra.mxu0 0.0
      %2725 = vmatprep.subr.mxu0 0.0
      %2726 = vmatpush1.msra.mxu0 0.0
      %2727 = vmatprep.subr.mxu0 0.0
      %2728 = vmatpush1.msra.mxu0 0.0
      %2729 = vmatprep.subr.mxu0 0.0
      %2730 = vmatpush1.msra.mxu0 %v265
      %2731 = vmatprep.subr.mxu0 0.0
      %2732 = vmatpush1.msra.mxu0 %v264
      %2733 = vmatprep.subr.mxu0 0.0
      %2734 = vmatpush1.msra.mxu0 %v263
      %2735 = vmatprep.subr.mxu0 0.0
      %2736 = vmatpush1.msra.mxu0 %v262
      %2737 = vmatprep.subr.mxu0 0.0
      %2738 = vmatpush2.msra.mxu0 0.0
      %2739 = vmatprep.subr.mxu0 0.0
      %2740 = vmatpush2.msra.mxu0 0.0
      %2741 = vmatprep.subr.mxu0 0.0
      %2742 = vmatpush2.msra.mxu0 0.0
      %2743 = vmatprep.subr.mxu0 0.0
      %2744 = vmatpush2.msra.mxu0 0.0
      %2745 = vmatprep.subr.mxu0 0.0
      %2746 = vmatpush2.msra.mxu0 0.0
      %2747 = vmatprep.subr.mxu0 0.0
      %2748 = vmatpush2.msra.mxu0 0.0
      %2749 = vmatprep.subr.mxu0 0.0
      %2750 = vmatpush2.msra.mxu0 0.0
      %2751 = vmatprep.subr.mxu0 0.0
      %2752 = vmatpush2.msra.mxu0 0.0
      %2753 = vmatprep.subr.mxu0 0.0
      %2754 = vmatpush2.msra.mxu0 0.0
      %2755 = vmatprep.subr.mxu0 0.0
      %2756 = vmatpush2.msra.mxu0 0.0
      %2757 = vmatprep.subr.mxu0 0.0
      %2758 = vmatpush2.msra.mxu0 0.0
      %2759 = vmatprep.subr.mxu0 0.0
      %2760 = vmatpush2.msra.mxu0 0.0
      %2761 = vmatprep.subr.mxu0 0.0
      %2762 = vmatpush2.msra.mxu0 0.0
      %2763 = vmatprep.subr.mxu0 0.0
      %2764 = vmatpush2.msra.mxu0 0.0
      %2765 = vmatprep.subr.mxu0 0.0
      %2766 = vmatpush2.msra.mxu0 0.0
      %2767 = vmatprep.subr.mxu0 0.0
      %2768 = vmatpush2.msra.mxu0 0.0
      %2769 = vmatprep.mubr.f32.mxu0 0.0
      %2770 = vmatmul.mubr.f32.gmra.mxu0 %v2703
      %v2771 = vpop.f32.mrf.mxu0
      %v2772 = vadd.f32 0.0, %v2771
      %v2773 = vpop.f32.mrf.mxu0
      %2774 = vdwg.mxu0
      %v2775 = vmul.f32 %v2772, 0.007843138
      %v2776 = vsub.f32 %v2775, 1.0
      %s2777 = scalar_lea.vmem %s3, 96
      %v2778 = vld [vmem:[%s2777] sm:$0x1]
      %v2779 = vld [vmem:[%s2777 + $0x1] sm:$0x1]
      %v2780 = vld [vmem:[%s2777 + $0x2] sm:$0x1]
      %v2781 = vld [vmem:[%s2777 + $0x3] sm:$0x1]
      %v2782 = vld [vmem:[%s2777 + $0x4] sm:$0x1]
      %v2783 = vld [vmem:[%s2777 + $0x5] sm:$0x1]
      %v2784 = vld [vmem:[%s2777 + $0x6] sm:$0x1]
      %v2785 = vld [vmem:[%s2777 + $0x7] sm:$0x1]
      %v2786 = vld [vmem:[%s2777 + $0x8] sm:$0x1]
      %v2787 = vld [vmem:[%s2777 + $0x9] sm:$0x1]
      %v2788 = vld [vmem:[%s2777 + $0xa] sm:$0x1]
      %v2789 = vld [vmem:[%s2777 + $0xb] sm:$0x1]
      %v2790 = vld [vmem:[%s2777 + $0xc] sm:$0x1]
      %v2791 = vld [vmem:[%s2777 + $0xd] sm:$0x1]
      %v2792 = vld [vmem:[%s2777 + $0xe] sm:$0x1]
      %v2793 = vld [vmem:[%s2777 + $0xf] sm:$0x1]
      %v2794 = vld [vmem:[%s2777 + $0x10] sm:$0x1]
      %v2795 = vld [vmem:[%s2777 + $0x11] sm:$0x1]
      %v2796 = vld [vmem:[%s2777 + $0x12] sm:$0x1]
      %v2797 = vld [vmem:[%s2777 + $0x13] sm:$0x1]
      %v2798 = vld [vmem:[%s2777 + $0x14] sm:$0x1]
      %v2799 = vld [vmem:[%s2777 + $0x15] sm:$0x1]
      %v2800 = vld [vmem:[%s2777 + $0x16] sm:$0x1]
      %v2801 = vld [vmem:[%s2777 + $0x17] sm:$0x1]
      %v2802 = vld [vmem:[%s2777 + $0x18] sm:$0x1]
      %v2803 = vld [vmem:[%s2777 + $0x19] sm:$0x1]
      %v2804 = vld [vmem:[%s2777 + $0x1a] sm:$0x1]
      %v2805 = vld [vmem:[%s2777 + $0x1b] sm:$0x1]
      %v2806 = vld [vmem:[%s2777 + $0x1c] sm:$0x1]
      %v2807 = vld [vmem:[%s2777 + $0x1d] sm:$0x1]
      %v2808 = vld [vmem:[%s2777 + $0x1e] sm:$0x1]
      %v2809 = vld [vmem:[%s2777 + $0x1f] sm:$0x1]
      %v2810 = vld [vmem:[%s2777 + $0x20] sm:$0x1]
      %v2811 = vld [vmem:[%s2777 + $0x21] sm:$0x1]
      %v2812 = vld [vmem:[%s2777 + $0x22] sm:$0x1]
      %v2813 = vld [vmem:[%s2777 + $0x23] sm:$0x1]
      %v2814 = vld [vmem:[%s2777 + $0x24] sm:$0x1]
      %v2815 = vld [vmem:[%s2777 + $0x25] sm:$0x1]
      %v2816 = vld [vmem:[%s2777 + $0x26] sm:$0x1]
      %v2817 = vld [vmem:[%s2777 + $0x27] sm:$0x1]
      %v2818 = vld [vmem:[%s2777 + $0x28] sm:$0x1]
      %v2819 = vld [vmem:[%s2777 + $0x29] sm:$0x1]
      %v2820 = vld [vmem:[%s2777 + $0x2a] sm:$0x1]
      %v2821 = vld [vmem:[%s2777 + $0x2b] sm:$0x1]
      %v2822 = vld [vmem:[%s2777 + $0x2c] sm:$0x1]
      %v2823 = vld [vmem:[%s2777 + $0x2d] sm:$0x1]
      %v2824 = vld [vmem:[%s2777 + $0x2e] sm:$0x1]
      %v2825 = vld [vmem:[%s2777 + $0x2f] sm:$0x1]
      %v2826 = vld [vmem:[%s2777 + $0x30] sm:$0x1]
      %v2827 = vld [vmem:[%s2777 + $0x31] sm:$0x1]
      %v2828 = vld [vmem:[%s2777 + $0x32] sm:$0x1]
      %v2829 = vld [vmem:[%s2777 + $0x33] sm:$0x1]
      %v2830 = vld [vmem:[%s2777 + $0x34] sm:$0x1]
      %v2831 = vld [vmem:[%s2777 + $0x35] sm:$0x1]
      %v2832 = vld [vmem:[%s2777 + $0x36] sm:$0x1]
      %v2833 = vld [vmem:[%s2777 + $0x37] sm:$0x1]
      %v2834 = vld [vmem:[%s2777 + $0x38] sm:$0x1]
      %v2835 = vld [vmem:[%s2777 + $0x39] sm:$0x1]
      %v2836 = vld [vmem:[%s2777 + $0x3a] sm:$0x1]
      %v2837 = vld [vmem:[%s2777 + $0x3b] sm:$0x1]
      %v2838 = vld [vmem:[%s2777 + $0x3c] sm:$0x1]
      %v2839 = vld [vmem:[%s2777 + $0x3d] sm:$0x1]
      %v2840 = vld [vmem:[%s2777 + $0x3e] sm:$0x1]
      %v2841 = vld [vmem:[%s2777 + $0x3f] sm:$0x1]
      %v2842 = vld [vmem:[%s2777 + $0x40] sm:$0x1]
      %v2843 = vld [vmem:[%s2777 + $0x41] sm:$0x1]
      %v2844 = vld [vmem:[%s2777 + $0x42] sm:$0x1]
      %v2845 = vld [vmem:[%s2777 + $0x43] sm:$0x1]
      %v2846 = vld [vmem:[%s2777 + $0x44] sm:$0x1]
      %v2847 = vld [vmem:[%s2777 + $0x45] sm:$0x1]
      %v2848 = vld [vmem:[%s2777 + $0x46] sm:$0x1]
      %v2849 = vld [vmem:[%s2777 + $0x47] sm:$0x1]
      %v2850 = vld [vmem:[%s2777 + $0x48] sm:$0x1]
      %v2851 = vld [vmem:[%s2777 + $0x49] sm:$0x1]
      %v2852 = vld [vmem:[%s2777 + $0x4a] sm:$0x1]
      %v2853 = vld [vmem:[%s2777 + $0x4b] sm:$0x1]
      %v2854 = vld [vmem:[%s2777 + $0x4c] sm:$0x1]
      %v2855 = vld [vmem:[%s2777 + $0x4d] sm:$0x1]
      %v2856 = vld [vmem:[%s2777 + $0x4e] sm:$0x1]
      %v2857 = vld [vmem:[%s2777 + $0x4f] sm:$0x1]
      %v2858 = vld [vmem:[%s2777 + $0x50] sm:$0x1]
      %v2859 = vld [vmem:[%s2777 + $0x51] sm:$0x1]
      %v2860 = vld [vmem:[%s2777 + $0x52] sm:$0x1]
      %v2861 = vld [vmem:[%s2777 + $0x53] sm:$0x1]
      %v2862 = vld [vmem:[%s2777 + $0x54] sm:$0x1]
      %v2863 = vld [vmem:[%s2777 + $0x55] sm:$0x1]
      %v2864 = vld [vmem:[%s2777 + $0x56] sm:$0x1]
      %v2865 = vld [vmem:[%s2777 + $0x57] sm:$0x1]
      %v2866 = vld [vmem:[%s2777 + $0x58] sm:$0x1]
      %v2867 = vld [vmem:[%s2777 + $0x59] sm:$0x1]
      %v2868 = vld [vmem:[%s2777 + $0x5a] sm:$0x1]
      %v2869 = vld [vmem:[%s2777 + $0x5b] sm:$0x1]
      %v2870 = vld [vmem:[%s2777 + $0x5c] sm:$0x1]
      %v2871 = vld [vmem:[%s2777 + $0x5d] sm:$0x1]
      %v2872 = vld [vmem:[%s2777 + $0x5e] sm:$0x1]
      %v2873 = vld [vmem:[%s2777 + $0x5f] sm:$0x1]
      %v2970 = vlaneseq
      %v2971 = vshrl.u32 %v2970, 7
      %v2972 = vsub.s32 0, %v2971
      %v2973 = vrot.slane %v2778, %v2972
      %v2974 = vlaneseq
      %v2975 = vshrl.u32 %v2974, 7
      %v2976 = vsub.s32 0, %v2975
      %v2977 = vrot.slane %v2779, %v2976
      %v2978 = vlaneseq
      %v2979 = vshrl.u32 %v2978, 7
      %v2980 = vsub.s32 0, %v2979
      %v2981 = vrot.slane %v2780, %v2980
      %v2982 = vlaneseq
      %v2983 = vshrl.u32 %v2982, 7
      %v2984 = vsub.s32 0, %v2983
      %v2985 = vrot.slane %v2781, %v2984
      %v2986 = vlaneseq
      %v2987 = vshrl.u32 %v2986, 7
      %v2988 = vsub.s32 0, %v2987
      %v2989 = vrot.slane %v2782, %v2988
      %v2990 = vlaneseq
      %v2991 = vshrl.u32 %v2990, 7
      %v2992 = vsub.s32 0, %v2991
      %v2993 = vrot.slane %v2783, %v2992
      %v2994 = vlaneseq
      %v2995 = vshrl.u32 %v2994, 7
      %v2996 = vsub.s32 0, %v2995
      %v2997 = vrot.slane %v2784, %v2996
      %v2998 = vlaneseq
      %v2999 = vshrl.u32 %v2998, 7
      %v3000 = vsub.s32 0, %v2999
      %v3001 = vrot.slane %v2785, %v3000
      %v3002 = vlaneseq
      %v3003 = vshrl.u32 %v3002, 7
      %v3004 = vsub.s32 0, %v3003
      %v3005 = vrot.slane %v2786, %v3004
      %v3006 = vlaneseq
      %v3007 = vshrl.u32 %v3006, 7
      %v3008 = vsub.s32 0, %v3007
      %v3009 = vrot.slane %v2787, %v3008
      %v3010 = vlaneseq
      %v3011 = vshrl.u32 %v3010, 7
      %v3012 = vsub.s32 0, %v3011
      %v3013 = vrot.slane %v2788, %v3012
      %v3014 = vlaneseq
      %v3015 = vshrl.u32 %v3014, 7
      %v3016 = vsub.s32 0, %v3015
      %v3017 = vrot.slane %v2789, %v3016
      %v3018 = vlaneseq
      %v3019 = vshrl.u32 %v3018, 7
      %v3020 = vsub.s32 0, %v3019
      %v3021 = vrot.slane %v2790, %v3020
      %v3022 = vlaneseq
      %v3023 = vshrl.u32 %v3022, 7
      %v3024 = vsub.s32 0, %v3023
      %v3025 = vrot.slane %v2791, %v3024
      %v3026 = vlaneseq
      %v3027 = vshrl.u32 %v3026, 7
      %v3028 = vsub.s32 0, %v3027
      %v3029 = vrot.slane %v2792, %v3028
      %v3030 = vlaneseq
      %v3031 = vshrl.u32 %v3030, 7
      %v3032 = vsub.s32 0, %v3031
      %v3033 = vrot.slane %v2793, %v3032
      %v3034 = vlaneseq
      %v3035 = vshrl.u32 %v3034, 7
      %v3036 = vsub.s32 0, %v3035
      %v3037 = vrot.slane %v2794, %v3036
      %v3038 = vlaneseq
      %v3039 = vshrl.u32 %v3038, 7
      %v3040 = vsub.s32 0, %v3039
      %v3041 = vrot.slane %v2795, %v3040
      %v3042 = vlaneseq
      %v3043 = vshrl.u32 %v3042, 7
      %v3044 = vsub.s32 0, %v3043
      %v3045 = vrot.slane %v2796, %v3044
      %v3046 = vlaneseq
      %v3047 = vshrl.u32 %v3046, 7
      %v3048 = vsub.s32 0, %v3047
      %v3049 = vrot.slane %v2797, %v3048
      %v3050 = vlaneseq
      %v3051 = vshrl.u32 %v3050, 7
      %v3052 = vsub.s32 0, %v3051
      %v3053 = vrot.slane %v2798, %v3052
      %v3054 = vlaneseq
      %v3055 = vshrl.u32 %v3054, 7
      %v3056 = vsub.s32 0, %v3055
      %v3057 = vrot.slane %v2799, %v3056
      %v3058 = vlaneseq
      %v3059 = vshrl.u32 %v3058, 7
      %v3060 = vsub.s32 0, %v3059
      %v3061 = vrot.slane %v2800, %v3060
      %v3062 = vlaneseq
      %v3063 = vshrl.u32 %v3062, 7
      %v3064 = vsub.s32 0, %v3063
      %v3065 = vrot.slane %v2801, %v3064
      %v3066 = vlaneseq
      %v3067 = vshrl.u32 %v3066, 7
      %v3068 = vsub.s32 0, %v3067
      %v3069 = vrot.slane %v2802, %v3068
      %v3070 = vlaneseq
      %v3071 = vshrl.u32 %v3070, 7
      %v3072 = vsub.s32 0, %v3071
      %v3073 = vrot.slane %v2803, %v3072
      %v3074 = vlaneseq
      %v3075 = vshrl.u32 %v3074, 7
      %v3076 = vsub.s32 0, %v3075
      %v3077 = vrot.slane %v2804, %v3076
      %v3078 = vlaneseq
      %v3079 = vshrl.u32 %v3078, 7
      %v3080 = vsub.s32 0, %v3079
      %v3081 = vrot.slane %v2805, %v3080
      %v3082 = vlaneseq
      %v3083 = vshrl.u32 %v3082, 7
      %v3084 = vsub.s32 0, %v3083
      %v3085 = vrot.slane %v2806, %v3084
      %v3086 = vlaneseq
      %v3087 = vshrl.u32 %v3086, 7
      %v3088 = vsub.s32 0, %v3087
      %v3089 = vrot.slane %v2807, %v3088
      %v3090 = vlaneseq
      %v3091 = vshrl.u32 %v3090, 7
      %v3092 = vsub.s32 0, %v3091
      %v3093 = vrot.slane %v2808, %v3092
      %v3094 = vlaneseq
      %v3095 = vshrl.u32 %v3094, 7
      %v3096 = vsub.s32 0, %v3095
      %v3097 = vrot.slane %v2809, %v3096
      %v3098 = vlaneseq
      %v3099 = vshrl.u32 %v3098, 7
      %v3100 = vsub.s32 0, %v3099
      %v3101 = vrot.slane %v2810, %v3100
      %v3102 = vlaneseq
      %v3103 = vshrl.u32 %v3102, 7
      %v3104 = vsub.s32 0, %v3103
      %v3105 = vrot.slane %v2811, %v3104
      %v3106 = vlaneseq
      %v3107 = vshrl.u32 %v3106, 7
      %v3108 = vsub.s32 0, %v3107
      %v3109 = vrot.slane %v2812, %v3108
      %v3110 = vlaneseq
      %v3111 = vshrl.u32 %v3110, 7
      %v3112 = vsub.s32 0, %v3111
      %v3113 = vrot.slane %v2813, %v3112
      %v3114 = vlaneseq
      %v3115 = vshrl.u32 %v3114, 7
      %v3116 = vsub.s32 0, %v3115
      %v3117 = vrot.slane %v2814, %v3116
      %v3118 = vlaneseq
      %v3119 = vshrl.u32 %v3118, 7
      %v3120 = vsub.s32 0, %v3119
      %v3121 = vrot.slane %v2815, %v3120
      %v3122 = vlaneseq
      %v3123 = vshrl.u32 %v3122, 7
      %v3124 = vsub.s32 0, %v3123
      %v3125 = vrot.slane %v2816, %v3124
      %v3126 = vlaneseq
      %v3127 = vshrl.u32 %v3126, 7
      %v3128 = vsub.s32 0, %v3127
      %v3129 = vrot.slane %v2817, %v3128
      %v3130 = vlaneseq
      %v3131 = vshrl.u32 %v3130, 7
      %v3132 = vsub.s32 0, %v3131
      %v3133 = vrot.slane %v2818, %v3132
      %v3134 = vlaneseq
      %v3135 = vshrl.u32 %v3134, 7
      %v3136 = vsub.s32 0, %v3135
      %v3137 = vrot.slane %v2819, %v3136
      %v3138 = vlaneseq
      %v3139 = vshrl.u32 %v3138, 7
      %v3140 = vsub.s32 0, %v3139
      %v3141 = vrot.slane %v2820, %v3140
      %v3142 = vlaneseq
      %v3143 = vshrl.u32 %v3142, 7
      %v3144 = vsub.s32 0, %v3143
      %v3145 = vrot.slane %v2821, %v3144
      %v3146 = vlaneseq
      %v3147 = vshrl.u32 %v3146, 7
      %v3148 = vsub.s32 0, %v3147
      %v3149 = vrot.slane %v2822, %v3148
      %v3150 = vlaneseq
      %v3151 = vshrl.u32 %v3150, 7
      %v3152 = vsub.s32 0, %v3151
      %v3153 = vrot.slane %v2823, %v3152
      %v3154 = vlaneseq
      %v3155 = vshrl.u32 %v3154, 7
      %v3156 = vsub.s32 0, %v3155
      %v3157 = vrot.slane %v2824, %v3156
      %v3158 = vlaneseq
      %v3159 = vshrl.u32 %v3158, 7
      %v3160 = vsub.s32 0, %v3159
      %v3161 = vrot.slane %v2825, %v3160
      %v3162 = vlaneseq
      %v3163 = vshrl.u32 %v3162, 7
      %v3164 = vsub.s32 0, %v3163
      %v3165 = vrot.slane %v2826, %v3164
      %v3166 = vlaneseq
      %v3167 = vshrl.u32 %v3166, 7
      %v3168 = vsub.s32 0, %v3167
      %v3169 = vrot.slane %v2827, %v3168
      %v3170 = vlaneseq
      %v3171 = vshrl.u32 %v3170, 7
      %v3172 = vsub.s32 0, %v3171
      %v3173 = vrot.slane %v2828, %v3172
      %v3174 = vlaneseq
      %v3175 = vshrl.u32 %v3174, 7
      %v3176 = vsub.s32 0, %v3175
      %v3177 = vrot.slane %v2829, %v3176
      %v3178 = vlaneseq
      %v3179 = vshrl.u32 %v3178, 7
      %v3180 = vsub.s32 0, %v3179
      %v3181 = vrot.slane %v2830, %v3180
      %v3182 = vlaneseq
      %v3183 = vshrl.u32 %v3182, 7
      %v3184 = vsub.s32 0, %v3183
      %v3185 = vrot.slane %v2831, %v3184
      %v3186 = vlaneseq
      %v3187 = vshrl.u32 %v3186, 7
      %v3188 = vsub.s32 0, %v3187
      %v3189 = vrot.slane %v2832, %v3188
      %v3190 = vlaneseq
      %v3191 = vshrl.u32 %v3190, 7
      %v3192 = vsub.s32 0, %v3191
      %v3193 = vrot.slane %v2833, %v3192
      %v3194 = vlaneseq
      %v3195 = vshrl.u32 %v3194, 7
      %v3196 = vsub.s32 0, %v3195
      %v3197 = vrot.slane %v2834, %v3196
      %v3198 = vlaneseq
      %v3199 = vshrl.u32 %v3198, 7
      %v3200 = vsub.s32 0, %v3199
      %v3201 = vrot.slane %v2835, %v3200
      %v3202 = vlaneseq
      %v3203 = vshrl.u32 %v3202, 7
      %v3204 = vsub.s32 0, %v3203
      %v3205 = vrot.slane %v2836, %v3204
      %v3206 = vlaneseq
      %v3207 = vshrl.u32 %v3206, 7
      %v3208 = vsub.s32 0, %v3207
      %v3209 = vrot.slane %v2837, %v3208
      %v3210 = vlaneseq
      %v3211 = vshrl.u32 %v3210, 7
      %v3212 = vsub.s32 0, %v3211
      %v3213 = vrot.slane %v2838, %v3212
      %v3214 = vlaneseq
      %v3215 = vshrl.u32 %v3214, 7
      %v3216 = vsub.s32 0, %v3215
      %v3217 = vrot.slane %v2839, %v3216
      %v3218 = vlaneseq
      %v3219 = vshrl.u32 %v3218, 7
      %v3220 = vsub.s32 0, %v3219
      %v3221 = vrot.slane %v2840, %v3220
      %v3222 = vlaneseq
      %v3223 = vshrl.u32 %v3222, 7
      %v3224 = vsub.s32 0, %v3223
      %v3225 = vrot.slane %v2841, %v3224
      %v3226 = vlaneseq
      %v3227 = vshrl.u32 %v3226, 7
      %v3228 = vsub.s32 0, %v3227
      %v3229 = vrot.slane %v2842, %v3228
      %v3230 = vlaneseq
      %v3231 = vshrl.u32 %v3230, 7
      %v3232 = vsub.s32 0, %v3231
      %v3233 = vrot.slane %v2843, %v3232
      %v3234 = vlaneseq
      %v3235 = vshrl.u32 %v3234, 7
      %v3236 = vsub.s32 0, %v3235
      %v3237 = vrot.slane %v2844, %v3236
      %v3238 = vlaneseq
      %v3239 = vshrl.u32 %v3238, 7
      %v3240 = vsub.s32 0, %v3239
      %v3241 = vrot.slane %v2845, %v3240
      %v3242 = vlaneseq
      %v3243 = vshrl.u32 %v3242, 7
      %v3244 = vsub.s32 0, %v3243
      %v3245 = vrot.slane %v2846, %v3244
      %v3246 = vlaneseq
      %v3247 = vshrl.u32 %v3246, 7
      %v3248 = vsub.s32 0, %v3247
      %v3249 = vrot.slane %v2847, %v3248
      %v3250 = vlaneseq
      %v3251 = vshrl.u32 %v3250, 7
      %v3252 = vsub.s32 0, %v3251
      %v3253 = vrot.slane %v2848, %v3252
      %v3254 = vlaneseq
      %v3255 = vshrl.u32 %v3254, 7
      %v3256 = vsub.s32 0, %v3255
      %v3257 = vrot.slane %v2849, %v3256
      %v3258 = vlaneseq
      %v3259 = vshrl.u32 %v3258, 7
      %v3260 = vsub.s32 0, %v3259
      %v3261 = vrot.slane %v2850, %v3260
      %v3262 = vlaneseq
      %v3263 = vshrl.u32 %v3262, 7
      %v3264 = vsub.s32 0, %v3263
      %v3265 = vrot.slane %v2851, %v3264
      %v3266 = vlaneseq
      %v3267 = vshrl.u32 %v3266, 7
      %v3268 = vsub.s32 0, %v3267
      %v3269 = vrot.slane %v2852, %v3268
      %v3270 = vlaneseq
      %v3271 = vshrl.u32 %v3270, 7
      %v3272 = vsub.s32 0, %v3271
      %v3273 = vrot.slane %v2853, %v3272
      %v3274 = vlaneseq
      %v3275 = vshrl.u32 %v3274, 7
      %v3276 = vsub.s32 0, %v3275
      %v3277 = vrot.slane %v2854, %v3276
      %v3278 = vlaneseq
      %v3279 = vshrl.u32 %v3278, 7
      %v3280 = vsub.s32 0, %v3279
      %v3281 = vrot.slane %v2855, %v3280
      %v3282 = vlaneseq
      %v3283 = vshrl.u32 %v3282, 7
      %v3284 = vsub.s32 0, %v3283
      %v3285 = vrot.slane %v2856, %v3284
      %v3286 = vlaneseq
      %v3287 = vshrl.u32 %v3286, 7
      %v3288 = vsub.s32 0, %v3287
      %v3289 = vrot.slane %v2857, %v3288
      %v3290 = vlaneseq
      %v3291 = vshrl.u32 %v3290, 7
      %v3292 = vsub.s32 0, %v3291
      %v3293 = vrot.slane %v2858, %v3292
      %v3294 = vlaneseq
      %v3295 = vshrl.u32 %v3294, 7
      %v3296 = vsub.s32 0, %v3295
      %v3297 = vrot.slane %v2859, %v3296
      %v3298 = vlaneseq
      %v3299 = vshrl.u32 %v3298, 7
      %v3300 = vsub.s32 0, %v3299
      %v3301 = vrot.slane %v2860, %v3300
      %v3302 = vlaneseq
      %v3303 = vshrl.u32 %v3302, 7
      %v3304 = vsub.s32 0, %v3303
      %v3305 = vrot.slane %v2861, %v3304
      %v3306 = vlaneseq
      %v3307 = vshrl.u32 %v3306, 7
      %v3308 = vsub.s32 0, %v3307
      %v3309 = vrot.slane %v2862, %v3308
      %v3310 = vlaneseq
      %v3311 = vshrl.u32 %v3310, 7
      %v3312 = vsub.s32 0, %v3311
      %v3313 = vrot.slane %v2863, %v3312
      %v3314 = vlaneseq
      %v3315 = vshrl.u32 %v3314, 7
      %v3316 = vsub.s32 0, %v3315
      %v3317 = vrot.slane %v2864, %v3316
      %v3318 = vlaneseq
      %v3319 = vshrl.u32 %v3318, 7
      %v3320 = vsub.s32 0, %v3319
      %v3321 = vrot.slane %v2865, %v3320
      %v3322 = vlaneseq
      %v3323 = vshrl.u32 %v3322, 7
      %v3324 = vsub.s32 0, %v3323
      %v3325 = vrot.slane %v2866, %v3324
      %v3326 = vlaneseq
      %v3327 = vshrl.u32 %v3326, 7
      %v3328 = vsub.s32 0, %v3327
      %v3329 = vrot.slane %v2867, %v3328
      %v3330 = vlaneseq
      %v3331 = vshrl.u32 %v3330, 7
      %v3332 = vsub.s32 0, %v3331
      %v3333 = vrot.slane %v2868, %v3332
      %v3334 = vlaneseq
      %v3335 = vshrl.u32 %v3334, 7
      %v3336 = vsub.s32 0, %v3335
      %v3337 = vrot.slane %v2869, %v3336
      %v3338 = vlaneseq
      %v3339 = vshrl.u32 %v3338, 7
      %v3340 = vsub.s32 0, %v3339
      %v3341 = vrot.slane %v2870, %v3340
      %v3342 = vlaneseq
      %v3343 = vshrl.u32 %v3342, 7
      %v3344 = vsub.s32 0, %v3343
      %v3345 = vrot.slane %v2871, %v3344
      %v3346 = vlaneseq
      %v3347 = vshrl.u32 %v3346, 7
      %v3348 = vsub.s32 0, %v3347
      %v3349 = vrot.slane %v2872, %v3348
      %v3350 = vlaneseq
      %v3351 = vshrl.u32 %v3350, 7
      %v3352 = vsub.s32 0, %v3351
      %v3353 = vrot.slane %v2873, %v3352
      %3354 = vset.pattern.permute.xlu0 0
      %3355 = vperm.xlu0 %3354, %v2973
      %v3356 = vpop.permute.xlu0 %3355
      %3358 = vset.pattern.permute.xlu0 0
      %3359 = vperm.xlu0 %3358, %v2977
      %v3360 = vpop.permute.xlu0 %3359
      %3362 = vset.pattern.permute.xlu0 0
      %3363 = vperm.xlu0 %3362, %v2981
      %v3364 = vpop.permute.xlu0 %3363
      %3366 = vset.pattern.permute.xlu0 0
      %3367 = vperm.xlu0 %3366, %v2985
      %v3368 = vpop.permute.xlu0 %3367
      %3370 = vset.pattern.permute.xlu0 0
      %3371 = vperm.xlu0 %3370, %v2989
      %v3372 = vpop.permute.xlu0 %3371
      %3374 = vset.pattern.permute.xlu0 0
      %3375 = vperm.xlu0 %3374, %v2993
      %v3376 = vpop.permute.xlu0 %3375
      %3378 = vset.pattern.permute.xlu0 0
      %3379 = vperm.xlu0 %3378, %v2997
      %v3380 = vpop.permute.xlu0 %3379
      %3382 = vset.pattern.permute.xlu0 0
      %3383 = vperm.xlu0 %3382, %v3001
      %v3384 = vpop.permute.xlu0 %3383
      %3386 = vset.pattern.permute.xlu0 0
      %3387 = vperm.xlu0 %3386, %v3005
      %v3388 = vpop.permute.xlu0 %3387
      %3390 = vset.pattern.permute.xlu0 0
      %3391 = vperm.xlu0 %3390, %v3009
      %v3392 = vpop.permute.xlu0 %3391
      %3394 = vset.pattern.permute.xlu0 0
      %3395 = vperm.xlu0 %3394, %v3013
      %v3396 = vpop.permute.xlu0 %3395
      %3398 = vset.pattern.permute.xlu0 0
      %3399 = vperm.xlu0 %3398, %v3017
      %v3400 = vpop.permute.xlu0 %3399
      %3402 = vset.pattern.permute.xlu0 0
      %3403 = vperm.xlu0 %3402, %v3021
      %v3404 = vpop.permute.xlu0 %3403
      %3406 = vset.pattern.permute.xlu0 0
      %3407 = vperm.xlu0 %3406, %v3025
      %v3408 = vpop.permute.xlu0 %3407
      %3410 = vset.pattern.permute.xlu0 0
      %3411 = vperm.xlu0 %3410, %v3029
      %v3412 = vpop.permute.xlu0 %3411
      %3414 = vset.pattern.permute.xlu0 0
      %3415 = vperm.xlu0 %3414, %v3033
      %v3416 = vpop.permute.xlu0 %3415
      %3418 = vset.pattern.permute.xlu0 0
      %3419 = vperm.xlu0 %3418, %v3037
      %v3420 = vpop.permute.xlu0 %3419
      %3422 = vset.pattern.permute.xlu0 0
      %3423 = vperm.xlu0 %3422, %v3041
      %v3424 = vpop.permute.xlu0 %3423
      %3426 = vset.pattern.permute.xlu0 0
      %3427 = vperm.xlu0 %3426, %v3045
      %v3428 = vpop.permute.xlu0 %3427
      %3430 = vset.pattern.permute.xlu0 0
      %3431 = vperm.xlu0 %3430, %v3049
      %v3432 = vpop.permute.xlu0 %3431
      %3434 = vset.pattern.permute.xlu0 0
      %3435 = vperm.xlu0 %3434, %v3053
      %v3436 = vpop.permute.xlu0 %3435
      %3438 = vset.pattern.permute.xlu0 0
      %3439 = vperm.xlu0 %3438, %v3057
      %v3440 = vpop.permute.xlu0 %3439
      %3442 = vset.pattern.permute.xlu0 0
      %3443 = vperm.xlu0 %3442, %v3061
      %v3444 = vpop.permute.xlu0 %3443
      %3446 = vset.pattern.permute.xlu0 0
      %3447 = vperm.xlu0 %3446, %v3065
      %v3448 = vpop.permute.xlu0 %3447
      %3450 = vset.pattern.permute.xlu0 0
      %3451 = vperm.xlu0 %3450, %v3069
      %v3452 = vpop.permute.xlu0 %3451
      %3454 = vset.pattern.permute.xlu0 0
      %3455 = vperm.xlu0 %3454, %v3073
      %v3456 = vpop.permute.xlu0 %3455
      %3458 = vset.pattern.permute.xlu0 0
      %3459 = vperm.xlu0 %3458, %v3077
      %v3460 = vpop.permute.xlu0 %3459
      %3462 = vset.pattern.permute.xlu0 0
      %3463 = vperm.xlu0 %3462, %v3081
      %v3464 = vpop.permute.xlu0 %3463
      %3466 = vset.pattern.permute.xlu0 0
      %3467 = vperm.xlu0 %3466, %v3085
      %v3468 = vpop.permute.xlu0 %3467
      %3470 = vset.pattern.permute.xlu0 0
      %3471 = vperm.xlu0 %3470, %v3089
      %v3472 = vpop.permute.xlu0 %3471
      %3474 = vset.pattern.permute.xlu0 0
      %3475 = vperm.xlu0 %3474, %v3093
      %v3476 = vpop.permute.xlu0 %3475
      %3478 = vset.pattern.permute.xlu0 0
      %3479 = vperm.xlu0 %3478, %v3097
      %v3480 = vpop.permute.xlu0 %3479
      %3482 = vset.pattern.permute.xlu0 0
      %3483 = vperm.xlu0 %3482, %v3101
      %v3484 = vpop.permute.xlu0 %3483
      %3486 = vset.pattern.permute.xlu0 0
      %3487 = vperm.xlu0 %3486, %v3105
      %v3488 = vpop.permute.xlu0 %3487
      %3490 = vset.pattern.permute.xlu0 0
      %3491 = vperm.xlu0 %3490, %v3109
      %v3492 = vpop.permute.xlu0 %3491
      %3494 = vset.pattern.permute.xlu0 0
      %3495 = vperm.xlu0 %3494, %v3113
      %v3496 = vpop.permute.xlu0 %3495
      %3498 = vset.pattern.permute.xlu0 0
      %3499 = vperm.xlu0 %3498, %v3117
      %v3500 = vpop.permute.xlu0 %3499
      %3502 = vset.pattern.permute.xlu0 0
      %3503 = vperm.xlu0 %3502, %v3121
      %v3504 = vpop.permute.xlu0 %3503
      %3506 = vset.pattern.permute.xlu0 0
      %3507 = vperm.xlu0 %3506, %v3125
      %v3508 = vpop.permute.xlu0 %3507
      %3510 = vset.pattern.permute.xlu0 0
      %3511 = vperm.xlu0 %3510, %v3129
      %v3512 = vpop.permute.xlu0 %3511
      %3514 = vset.pattern.permute.xlu0 0
      %3515 = vperm.xlu0 %3514, %v3133
      %v3516 = vpop.permute.xlu0 %3515
      %3518 = vset.pattern.permute.xlu0 0
      %3519 = vperm.xlu0 %3518, %v3137
      %v3520 = vpop.permute.xlu0 %3519
      %3522 = vset.pattern.permute.xlu0 0
      %3523 = vperm.xlu0 %3522, %v3141
      %v3524 = vpop.permute.xlu0 %3523
      %3526 = vset.pattern.permute.xlu0 0
      %3527 = vperm.xlu0 %3526, %v3145
      %v3528 = vpop.permute.xlu0 %3527
      %3530 = vset.pattern.permute.xlu0 0
      %3531 = vperm.xlu0 %3530, %v3149
      %v3532 = vpop.permute.xlu0 %3531
      %3534 = vset.pattern.permute.xlu0 0
      %3535 = vperm.xlu0 %3534, %v3153
      %v3536 = vpop.permute.xlu0 %3535
      %3538 = vset.pattern.permute.xlu0 0
      %3539 = vperm.xlu0 %3538, %v3157
      %v3540 = vpop.permute.xlu0 %3539
      %3542 = vset.pattern.permute.xlu0 0
      %3543 = vperm.xlu0 %3542, %v3161
      %v3544 = vpop.permute.xlu0 %3543
      %3546 = vset.pattern.permute.xlu0 0
      %3547 = vperm.xlu0 %3546, %v3165
      %v3548 = vpop.permute.xlu0 %3547
      %3550 = vset.pattern.permute.xlu0 0
      %3551 = vperm.xlu0 %3550, %v3169
      %v3552 = vpop.permute.xlu0 %3551
      %3554 = vset.pattern.permute.xlu0 0
      %3555 = vperm.xlu0 %3554, %v3173
      %v3556 = vpop.permute.xlu0 %3555
      %3558 = vset.pattern.permute.xlu0 0
      %3559 = vperm.xlu0 %3558, %v3177
      %v3560 = vpop.permute.xlu0 %3559
      %3562 = vset.pattern.permute.xlu0 0
      %3563 = vperm.xlu0 %3562, %v3181
      %v3564 = vpop.permute.xlu0 %3563
      %3566 = vset.pattern.permute.xlu0 0
      %3567 = vperm.xlu0 %3566, %v3185
      %v3568 = vpop.permute.xlu0 %3567
      %3570 = vset.pattern.permute.xlu0 0
      %3571 = vperm.xlu0 %3570, %v3189
      %v3572 = vpop.permute.xlu0 %3571
      %3574 = vset.pattern.permute.xlu0 0
      %3575 = vperm.xlu0 %3574, %v3193
      %v3576 = vpop.permute.xlu0 %3575
      %3578 = vset.pattern.permute.xlu0 0
      %3579 = vperm.xlu0 %3578, %v3197
      %v3580 = vpop.permute.xlu0 %3579
      %3582 = vset.pattern.permute.xlu0 0
      %3583 = vperm.xlu0 %3582, %v3201
      %v3584 = vpop.permute.xlu0 %3583
      %3586 = vset.pattern.permute.xlu0 0
      %3587 = vperm.xlu0 %3586, %v3205
      %v3588 = vpop.permute.xlu0 %3587
      %3590 = vset.pattern.permute.xlu0 0
      %3591 = vperm.xlu0 %3590, %v3209
      %v3592 = vpop.permute.xlu0 %3591
      %3594 = vset.pattern.permute.xlu0 0
      %3595 = vperm.xlu0 %3594, %v3213
      %v3596 = vpop.permute.xlu0 %3595
      %3598 = vset.pattern.permute.xlu0 0
      %3599 = vperm.xlu0 %3598, %v3217
      %v3600 = vpop.permute.xlu0 %3599
      %3602 = vset.pattern.permute.xlu0 0
      %3603 = vperm.xlu0 %3602, %v3221
      %v3604 = vpop.permute.xlu0 %3603
      %3606 = vset.pattern.permute.xlu0 0
      %3607 = vperm.xlu0 %3606, %v3225
      %v3608 = vpop.permute.xlu0 %3607
      %3610 = vset.pattern.permute.xlu0 0
      %3611 = vperm.xlu0 %3610, %v3229
      %v3612 = vpop.permute.xlu0 %3611
      %3614 = vset.pattern.permute.xlu0 0
      %3615 = vperm.xlu0 %3614, %v3233
      %v3616 = vpop.permute.xlu0 %3615
      %3618 = vset.pattern.permute.xlu0 0
      %3619 = vperm.xlu0 %3618, %v3237
      %v3620 = vpop.permute.xlu0 %3619
      %3622 = vset.pattern.permute.xlu0 0
      %3623 = vperm.xlu0 %3622, %v3241
      %v3624 = vpop.permute.xlu0 %3623
      %3626 = vset.pattern.permute.xlu0 0
      %3627 = vperm.xlu0 %3626, %v3245
      %v3628 = vpop.permute.xlu0 %3627
      %3630 = vset.pattern.permute.xlu0 0
      %3631 = vperm.xlu0 %3630, %v3249
      %v3632 = vpop.permute.xlu0 %3631
      %3634 = vset.pattern.permute.xlu0 0
      %3635 = vperm.xlu0 %3634, %v3253
      %v3636 = vpop.permute.xlu0 %3635
      %3638 = vset.pattern.permute.xlu0 0
      %3639 = vperm.xlu0 %3638, %v3257
      %v3640 = vpop.permute.xlu0 %3639
      %3642 = vset.pattern.permute.xlu0 0
      %3643 = vperm.xlu0 %3642, %v3261
      %v3644 = vpop.permute.xlu0 %3643
      %3646 = vset.pattern.permute.xlu0 0
      %3647 = vperm.xlu0 %3646, %v3265
      %v3648 = vpop.permute.xlu0 %3647
      %3650 = vset.pattern.permute.xlu0 0
      %3651 = vperm.xlu0 %3650, %v3269
      %v3652 = vpop.permute.xlu0 %3651
      %3654 = vset.pattern.permute.xlu0 0
      %3655 = vperm.xlu0 %3654, %v3273
      %v3656 = vpop.permute.xlu0 %3655
      %3658 = vset.pattern.permute.xlu0 0
      %3659 = vperm.xlu0 %3658, %v3277
      %v3660 = vpop.permute.xlu0 %3659
      %3662 = vset.pattern.permute.xlu0 0
      %3663 = vperm.xlu0 %3662, %v3281
      %v3664 = vpop.permute.xlu0 %3663
      %3666 = vset.pattern.permute.xlu0 0
      %3667 = vperm.xlu0 %3666, %v3285
      %v3668 = vpop.permute.xlu0 %3667
      %3670 = vset.pattern.permute.xlu0 0
      %3671 = vperm.xlu0 %3670, %v3289
      %v3672 = vpop.permute.xlu0 %3671
      %3674 = vset.pattern.permute.xlu0 0
      %3675 = vperm.xlu0 %3674, %v3293
      %v3676 = vpop.permute.xlu0 %3675
      %3678 = vset.pattern.permute.xlu0 0
      %3679 = vperm.xlu0 %3678, %v3297
      %v3680 = vpop.permute.xlu0 %3679
      %3682 = vset.pattern.permute.xlu0 0
      %3683 = vperm.xlu0 %3682, %v3301
      %v3684 = vpop.permute.xlu0 %3683
      %3686 = vset.pattern.permute.xlu0 0
      %3687 = vperm.xlu0 %3686, %v3305
      %v3688 = vpop.permute.xlu0 %3687
      %3690 = vset.pattern.permute.xlu0 0
      %3691 = vperm.xlu0 %3690, %v3309
      %v3692 = vpop.permute.xlu0 %3691
      %3694 = vset.pattern.permute.xlu0 0
      %3695 = vperm.xlu0 %3694, %v3313
      %v3696 = vpop.permute.xlu0 %3695
      %3698 = vset.pattern.permute.xlu0 0
      %3699 = vperm.xlu0 %3698, %v3317
      %v3700 = vpop.permute.xlu0 %3699
      %3702 = vset.pattern.permute.xlu0 0
      %3703 = vperm.xlu0 %3702, %v3321
      %v3704 = vpop.permute.xlu0 %3703
      %3706 = vset.pattern.permute.xlu0 0
      %3707 = vperm.xlu0 %3706, %v3325
      %v3708 = vpop.permute.xlu0 %3707
      %3710 = vset.pattern.permute.xlu0 0
      %3711 = vperm.xlu0 %3710, %v3329
      %v3712 = vpop.permute.xlu0 %3711
      %3714 = vset.pattern.permute.xlu0 0
      %3715 = vperm.xlu0 %3714, %v3333
      %v3716 = vpop.permute.xlu0 %3715
      %3718 = vset.pattern.permute.xlu0 0
      %3719 = vperm.xlu0 %3718, %v3337
      %v3720 = vpop.permute.xlu0 %3719
      %3722 = vset.pattern.permute.xlu0 0
      %3723 = vperm.xlu0 %3722, %v3341
      %v3724 = vpop.permute.xlu0 %3723
      %3726 = vset.pattern.permute.xlu0 0
      %3727 = vperm.xlu0 %3726, %v3345
      %v3728 = vpop.permute.xlu0 %3727
      %3730 = vset.pattern.permute.xlu0 0
      %3731 = vperm.xlu0 %3730, %v3349
      %v3732 = vpop.permute.xlu0 %3731
      %3734 = vset.pattern.permute.xlu0 0
      %3735 = vperm.xlu0 %3734, %v3353
      %v3736 = vpop.permute.xlu0 %3735
      %v3738 = vmul.f32 %v2776, %v3356
      %v3739 = vmul.f32 %v2776, %v3360
      %v3740 = vmul.f32 %v2776, %v3364
      %v3741 = vmul.f32 %v2776, %v3368
      %v3742 = vmul.f32 %v2776, %v3372
      %v3743 = vmul.f32 %v2776, %v3376
      %v3744 = vmul.f32 %v2776, %v3380
      %v3745 = vmul.f32 %v2776, %v3384
      %v3746 = vmul.f32 %v2776, %v3388
      %v3747 = vmul.f32 %v2776, %v3392
      %v3748 = vmul.f32 %v2776, %v3396
      %v3749 = vmul.f32 %v2776, %v3400
      %v3750 = vmul.f32 %v2776, %v3404
      %v3751 = vmul.f32 %v2776, %v3408
      %v3752 = vmul.f32 %v2776, %v3412
      %v3753 = vmul.f32 %v2776, %v3416
      %v3754 = vmul.f32 %v2776, %v3420
      %v3755 = vmul.f32 %v2776, %v3424
      %v3756 = vmul.f32 %v2776, %v3428
      %v3757 = vmul.f32 %v2776, %v3432
      %v3758 = vmul.f32 %v2776, %v3436
      %v3759 = vmul.f32 %v2776, %v3440
      %v3760 = vmul.f32 %v2776, %v3444
      %v3761 = vmul.f32 %v2776, %v3448
      %v3762 = vmul.f32 %v2776, %v3452
      %v3763 = vmul.f32 %v2776, %v3456
      %v3764 = vmul.f32 %v2776, %v3460
      %v3765 = vmul.f32 %v2776, %v3464
      %v3766 = vmul.f32 %v2776, %v3468
      %v3767 = vmul.f32 %v2776, %v3472
      %v3768 = vmul.f32 %v2776, %v3476
      %v3769 = vmul.f32 %v2776, %v3480
      %v3770 = vmul.f32 %v2776, %v3484
      %v3771 = vmul.f32 %v2776, %v3488
      %v3772 = vmul.f32 %v2776, %v3492
      %v3773 = vmul.f32 %v2776, %v3496
      %v3774 = vmul.f32 %v2776, %v3500
      %v3775 = vmul.f32 %v2776, %v3504
      %v3776 = vmul.f32 %v2776, %v3508
      %v3777 = vmul.f32 %v2776, %v3512
      %v3778 = vmul.f32 %v2776, %v3516
      %v3779 = vmul.f32 %v2776, %v3520
      %v3780 = vmul.f32 %v2776, %v3524
      %v3781 = vmul.f32 %v2776, %v3528
      %v3782 = vmul.f32 %v2776, %v3532
      %v3783 = vmul.f32 %v2776, %v3536
      %v3784 = vmul.f32 %v2776, %v3540
      %v3785 = vmul.f32 %v2776, %v3544
      %v3786 = vmul.f32 %v2776, %v3548
      %v3787 = vmul.f32 %v2776, %v3552
      %v3788 = vmul.f32 %v2776, %v3556
      %v3789 = vmul.f32 %v2776, %v3560
      %v3790 = vmul.f32 %v2776, %v3564
      %v3791 = vmul.f32 %v2776, %v3568
      %v3792 = vmul.f32 %v2776, %v3572
      %v3793 = vmul.f32 %v2776, %v3576
      %v3794 = vmul.f32 %v2776, %v3580
      %v3795 = vmul.f32 %v2776, %v3584
      %v3796 = vmul.f32 %v2776, %v3588
      %v3797 = vmul.f32 %v2776, %v3592
      %v3798 = vmul.f32 %v2776, %v3596
      %v3799 = vmul.f32 %v2776, %v3600
      %v3800 = vmul.f32 %v2776, %v3604
      %v3801 = vmul.f32 %v2776, %v3608
      %v3802 = vmul.f32 %v2776, %v3612
      %v3803 = vmul.f32 %v2776, %v3616
      %v3804 = vmul.f32 %v2776, %v3620
      %v3805 = vmul.f32 %v2776, %v3624
      %v3806 = vmul.f32 %v2776, %v3628
      %v3807 = vmul.f32 %v2776, %v3632
      %v3808 = vmul.f32 %v2776, %v3636
      %v3809 = vmul.f32 %v2776, %v3640
      %v3810 = vmul.f32 %v2776, %v3644
      %v3811 = vmul.f32 %v2776, %v3648
      %v3812 = vmul.f32 %v2776, %v3652
      %v3813 = vmul.f32 %v2776, %v3656
      %v3814 = vmul.f32 %v2776, %v3660
      %v3815 = vmul.f32 %v2776, %v3664
      %v3816 = vmul.f32 %v2776, %v3668
      %v3817 = vmul.f32 %v2776, %v3672
      %v3818 = vmul.f32 %v2776, %v3676
      %v3819 = vmul.f32 %v2776, %v3680
      %v3820 = vmul.f32 %v2776, %v3684
      %v3821 = vmul.f32 %v2776, %v3688
      %v3822 = vmul.f32 %v2776, %v3692
      %v3823 = vmul.f32 %v2776, %v3696
      %v3824 = vmul.f32 %v2776, %v3700
      %v3825 = vmul.f32 %v2776, %v3704
      %v3826 = vmul.f32 %v2776, %v3708
      %v3827 = vmul.f32 %v2776, %v3712
      %v3828 = vmul.f32 %v2776, %v3716
      %v3829 = vmul.f32 %v2776, %v3720
      %v3830 = vmul.f32 %v2776, %v3724
      %v3831 = vmul.f32 %v2776, %v3728
      %v3832 = vmul.f32 %v2776, %v3732
      %v3833 = vmul.f32 %v2776, %v3736
      %v3834 = vadd.f32 %v2531, %v3738
      %v3835 = vadd.f32 %v2532, %v3739
      %v3836 = vadd.f32 %v2533, %v3740
      %v3837 = vadd.f32 %v2534, %v3741
      %v3838 = vadd.f32 %v2535, %v3742
      %v3839 = vadd.f32 %v2536, %v3743
      %v3840 = vadd.f32 %v2537, %v3744
      %v3841 = vadd.f32 %v2538, %v3745
      %v3842 = vadd.f32 %v2539, %v3746
      %v3843 = vadd.f32 %v2540, %v3747
      %v3844 = vadd.f32 %v2541, %v3748
      %v3845 = vadd.f32 %v2542, %v3749
      %v3846 = vadd.f32 %v2543, %v3750
      %v3847 = vadd.f32 %v2544, %v3751
      %v3848 = vadd.f32 %v2545, %v3752
      %v3849 = vadd.f32 %v2546, %v3753
      %v3850 = vadd.f32 %v2547, %v3754
      %v3851 = vadd.f32 %v2548, %v3755
      %v3852 = vadd.f32 %v2549, %v3756
      %v3853 = vadd.f32 %v2550, %v3757
      %v3854 = vadd.f32 %v2551, %v3758
      %v3855 = vadd.f32 %v2552, %v3759
      %v3856 = vadd.f32 %v2553, %v3760
      %v3857 = vadd.f32 %v2554, %v3761
      %v3858 = vadd.f32 %v2555, %v3762
      %v3859 = vadd.f32 %v2556, %v3763
      %v3860 = vadd.f32 %v2557, %v3764
      %v3861 = vadd.f32 %v2558, %v3765
      %v3862 = vadd.f32 %v2559, %v3766
      %v3863 = vadd.f32 %v2560, %v3767
      %v3864 = vadd.f32 %v2561, %v3768
      %v3865 = vadd.f32 %v2562, %v3769
      %v3866 = vadd.f32 %v2563, %v3770
      %v3867 = vadd.f32 %v2564, %v3771
      %v3868 = vadd.f32 %v2565, %v3772
      %v3869 = vadd.f32 %v2566, %v3773
      %v3870 = vadd.f32 %v2567, %v3774
      %v3871 = vadd.f32 %v2568, %v3775
      %v3872 = vadd.f32 %v2569, %v3776
      %v3873 = vadd.f32 %v2570, %v3777
      %v3874 = vadd.f32 %v2571, %v3778
      %v3875 = vadd.f32 %v2572, %v3779
      %v3876 = vadd.f32 %v2573, %v3780
      %v3877 = vadd.f32 %v2574, %v3781
      %v3878 = vadd.f32 %v2575, %v3782
      %v3879 = vadd.f32 %v2576, %v3783
      %v3880 = vadd.f32 %v2577, %v3784
      %v3881 = vadd.f32 %v2578, %v3785
      %v3882 = vadd.f32 %v2579, %v3786
      %v3883 = vadd.f32 %v2580, %v3787
      %v3884 = vadd.f32 %v2581, %v3788
      %v3885 = vadd.f32 %v2582, %v3789
      %v3886 = vadd.f32 %v2583, %v3790
      %v3887 = vadd.f32 %v2584, %v3791
      %v3888 = vadd.f32 %v2585, %v3792
      %v3889 = vadd.f32 %v2586, %v3793
      %v3890 = vadd.f32 %v2587, %v3794
      %v3891 = vadd.f32 %v2588, %v3795
      %v3892 = vadd.f32 %v2589, %v3796
      %v3893 = vadd.f32 %v2590, %v3797
      %v3894 = vadd.f32 %v2591, %v3798
      %v3895 = vadd.f32 %v2592, %v3799
      %v3896 = vadd.f32 %v2593, %v3800
      %v3897 = vadd.f32 %v2594, %v3801
      %v3898 = vadd.f32 %v2595, %v3802
      %v3899 = vadd.f32 %v2596, %v3803
      %v3900 = vadd.f32 %v2597, %v3804
      %v3901 = vadd.f32 %v2598, %v3805
      %v3902 = vadd.f32 %v2599, %v3806
      %v3903 = vadd.f32 %v2600, %v3807
      %v3904 = vadd.f32 %v2601, %v3808
      %v3905 = vadd.f32 %v2602, %v3809
      %v3906 = vadd.f32 %v2603, %v3810
      %v3907 = vadd.f32 %v2604, %v3811
      %v3908 = vadd.f32 %v2605, %v3812
      %v3909 = vadd.f32 %v2606, %v3813
      %v3910 = vadd.f32 %v2607, %v3814
      %v3911 = vadd.f32 %v2608, %v3815
      %v3912 = vadd.f32 %v2609, %v3816
      %v3913 = vadd.f32 %v2610, %v3817
      %v3914 = vadd.f32 %v2611, %v3818
      %v3915 = vadd.f32 %v2612, %v3819
      %v3916 = vadd.f32 %v2613, %v3820
      %v3917 = vadd.f32 %v2614, %v3821
      %v3918 = vadd.f32 %v2615, %v3822
      %v3919 = vadd.f32 %v2616, %v3823
      %v3920 = vadd.f32 %v2617, %v3824
      %v3921 = vadd.f32 %v2618, %v3825
      %v3922 = vadd.f32 %v2619, %v3826
      %v3923 = vadd.f32 %v2620, %v3827
      %v3924 = vadd.f32 %v2621, %v3828
      %v3925 = vadd.f32 %v2622, %v3829
      %v3926 = vadd.f32 %v2623, %v3830
      %v3927 = vadd.f32 %v2624, %v3831
      %v3928 = vadd.f32 %v2625, %v3832
      %v3929 = vadd.f32 %v2626, %v3833
      %s3930 = scalar_lea.vmem %s251, 64
      %v3931 = vld [vmem:[%s3930] sm:$0xff]
      %v3932 = vld [vmem:[%s3930 + $0x8] sm:$0xff]
      %v3933 = vld [vmem:[%s3930 + $0x10] sm:$0xff]
      %v3934 = vld [vmem:[%s3930 + $0x18] sm:$0xff]
      %3935 = vmatprep.subr.mxu0 0.0
      %3936 = vmatpush1.msra.mxu0 0.0
      %3937 = vmatprep.subr.mxu0 0.0
      %3938 = vmatpush1.msra.mxu0 0.0
      %3939 = vmatprep.subr.mxu0 0.0
      %3940 = vmatpush1.msra.mxu0 0.0
      %3941 = vmatprep.subr.mxu0 0.0
      %3942 = vmatpush1.msra.mxu0 0.0
      %3943 = vmatprep.subr.mxu0 0.0
      %3944 = vmatpush1.msra.mxu0 0.0
      %3945 = vmatprep.subr.mxu0 0.0
      %3946 = vmatpush1.msra.mxu0 0.0
      %3947 = vmatprep.subr.mxu0 0.0
      %3948 = vmatpush1.msra.mxu0 0.0
      %3949 = vmatprep.subr.mxu0 0.0
      %3950 = vmatpush1.msra.mxu0 0.0
      %3951 = vmatprep.subr.mxu0 0.0
      %3952 = vmatpush1.msra.mxu0 0.0
      %3953 = vmatprep.subr.mxu0 0.0
      %3954 = vmatpush1.msra.mxu0 0.0
      %3955 = vmatprep.subr.mxu0 0.0
      %3956 = vmatpush1.msra.mxu0 0.0
      %3957 = vmatprep.subr.mxu0 0.0
      %3958 = vmatpush1.msra.mxu0 0.0
      %3959 = vmatprep.subr.mxu0 0.0
      %3960 = vmatpush1.msra.mxu0 %v3934
      %3961 = vmatprep.subr.mxu0 0.0
      %3962 = vmatpush1.msra.mxu0 %v3933
      %3963 = vmatprep.subr.mxu0 0.0
      %3964 = vmatpush1.msra.mxu0 %v3932
      %3965 = vmatprep.subr.mxu0 0.0
      %3966 = vmatpush1.msra.mxu0 %v3931
      %3967 = vmatprep.subr.mxu0 0.0
      %3968 = vmatpush2.msra.mxu0 0.0
      %3969 = vmatprep.subr.mxu0 0.0
      %3970 = vmatpush2.msra.mxu0 0.0
      %3971 = vmatprep.subr.mxu0 0.0
      %3972 = vmatpush2.msra.mxu0 0.0
      %3973 = vmatprep.subr.mxu0 0.0
      %3974 = vmatpush2.msra.mxu0 0.0
      %3975 = vmatprep.subr.mxu0 0.0
      %3976 = vmatpush2.msra.mxu0 0.0
      %3977 = vmatprep.subr.mxu0 0.0
      %3978 = vmatpush2.msra.mxu0 0.0
      %3979 = vmatprep.subr.mxu0 0.0
      %3980 = vmatpush2.msra.mxu0 0.0
      %3981 = vmatprep.subr.mxu0 0.0
      %3982 = vmatpush2.msra.mxu0 0.0
      %3983 = vmatprep.subr.mxu0 0.0
      %3984 = vmatpush2.msra.mxu0 0.0
      %3985 = vmatprep.subr.mxu0 0.0
      %3986 = vmatpush2.msra.mxu0 0.0
      %3987 = vmatprep.subr.mxu0 0.0
      %3988 = vmatpush2.msra.mxu0 0.0
      %3989 = vmatprep.subr.mxu0 0.0
      %3990 = vmatpush2.msra.mxu0 0.0
      %3991 = vmatprep.subr.mxu0 0.0
      %3992 = vmatpush2.msra.mxu0 0.0
      %3993 = vmatprep.subr.mxu0 0.0
      %3994 = vmatpush2.msra.mxu0 0.0
      %3995 = vmatprep.subr.mxu0 0.0
      %3996 = vmatpush2.msra.mxu0 0.0
      %3997 = vmatprep.subr.mxu0 0.0
      %3998 = vmatpush2.msra.mxu0 0.0
      %3999 = vmatprep.mubr.f32.mxu0 0.0
      %4000 = vmatmul.mubr.f32.gmra.mxu0 %v1328
      %v4001 = vpop.f32.mrf.mxu0
      %v4002 = vadd.f32 0.0, %v4001
      %v4003 = vpop.f32.mrf.mxu0
      %4004 = vdwg.mxu0
      %v4006 = vsel %vm1326, %v4002, 0
      %4008 = vmatprep.subr.mxu0 0.0
      %4009 = vmatpush1.msra.mxu0 0.0
      %4010 = vmatprep.subr.mxu0 0.0
      %4011 = vmatpush1.msra.mxu0 0.0
      %4012 = vmatprep.subr.mxu0 0.0
      %4013 = vmatpush1.msra.mxu0 0.0
      %4014 = vmatprep.subr.mxu0 0.0
      %4015 = vmatpush1.msra.mxu0 0.0
      %4016 = vmatprep.subr.mxu0 0.0
      %4017 = vmatpush1.msra.mxu0 0.0
      %4018 = vmatprep.subr.mxu0 0.0
      %4019 = vmatpush1.msra.mxu0 0.0
      %4020 = vmatprep.subr.mxu0 0.0
      %4021 = vmatpush1.msra.mxu0 0.0
      %4022 = vmatprep.subr.mxu0 0.0
      %4023 = vmatpush1.msra.mxu0 0.0
      %4024 = vmatprep.subr.mxu0 0.0
      %4025 = vmatpush1.msra.mxu0 0.0
      %4026 = vmatprep.subr.mxu0 0.0
      %4027 = vmatpush1.msra.mxu0 0.0
      %4028 = vmatprep.subr.mxu0 0.0
      %4029 = vmatpush1.msra.mxu0 0.0
      %4030 = vmatprep.subr.mxu0 0.0
      %4031 = vmatpush1.msra.mxu0 0.0
      %4032 = vmatprep.subr.mxu0 0.0
      %4033 = vmatpush1.msra.mxu0 %v265
      %4034 = vmatprep.subr.mxu0 0.0
      %4035 = vmatpush1.msra.mxu0 %v264
      %4036 = vmatprep.subr.mxu0 0.0
      %4037 = vmatpush1.msra.mxu0 %v263
      %4038 = vmatprep.subr.mxu0 0.0
      %4039 = vmatpush1.msra.mxu0 %v262
      %4040 = vmatprep.subr.mxu0 0.0
      %4041 = vmatpush2.msra.mxu0 0.0
      %4042 = vmatprep.subr.mxu0 0.0
      %4043 = vmatpush2.msra.mxu0 0.0
      %4044 = vmatprep.subr.mxu0 0.0
      %4045 = vmatpush2.msra.mxu0 0.0
      %4046 = vmatprep.subr.mxu0 0.0
      %4047 = vmatpush2.msra.mxu0 0.0
      %4048 = vmatprep.subr.mxu0 0.0
      %4049 = vmatpush2.msra.mxu0 0.0
      %4050 = vmatprep.subr.mxu0 0.0
      %4051 = vmatpush2.msra.mxu0 0.0
      %4052 = vmatprep.subr.mxu0 0.0
      %4053 = vmatpush2.msra.mxu0 0.0
      %4054 = vmatprep.subr.mxu0 0.0
      %4055 = vmatpush2.msra.mxu0 0.0
      %4056 = vmatprep.subr.mxu0 0.0
      %4057 = vmatpush2.msra.mxu0 0.0
      %4058 = vmatprep.subr.mxu0 0.0
      %4059 = vmatpush2.msra.mxu0 0.0
      %4060 = vmatprep.subr.mxu0 0.0
      %4061 = vmatpush2.msra.mxu0 0.0
      %4062 = vmatprep.subr.mxu0 0.0
      %4063 = vmatpush2.msra.mxu0 0.0
      %4064 = vmatprep.subr.mxu0 0.0
      %4065 = vmatpush2.msra.mxu0 0.0
      %4066 = vmatprep.subr.mxu0 0.0
      %4067 = vmatpush2.msra.mxu0 0.0
      %4068 = vmatprep.subr.mxu0 0.0
      %4069 = vmatpush2.msra.mxu0 0.0
      %4070 = vmatprep.subr.mxu0 0.0
      %4071 = vmatpush2.msra.mxu0 0.0
      %4072 = vmatprep.mubr.f32.mxu0 0.0
      %4073 = vmatmul.mubr.f32.gmra.mxu0 %v4006
      %v4074 = vpop.f32.mrf.mxu0
      %v4075 = vadd.f32 0.0, %v4074
      %v4076 = vpop.f32.mrf.mxu0
      %4077 = vdwg.mxu0
      %v4078 = vmul.f32 %v4075, 0.007843138
      %v4079 = vsub.f32 %v4078, 1.0
      %s4080 = scalar_lea.vmem %s3, 192
      %v4081 = vld [vmem:[%s4080] sm:$0x1]
      %v4082 = vld [vmem:[%s4080 + $0x1] sm:$0x1]
      %v4083 = vld [vmem:[%s4080 + $0x2] sm:$0x1]
      %v4084 = vld [vmem:[%s4080 + $0x3] sm:$0x1]
      %v4085 = vld [vmem:[%s4080 + $0x4] sm:$0x1]
      %v4086 = vld [vmem:[%s4080 + $0x5] sm:$0x1]
      %v4087 = vld [vmem:[%s4080 + $0x6] sm:$0x1]
      %v4088 = vld [vmem:[%s4080 + $0x7] sm:$0x1]
      %v4089 = vld [vmem:[%s4080 + $0x8] sm:$0x1]
      %v4090 = vld [vmem:[%s4080 + $0x9] sm:$0x1]
      %v4091 = vld [vmem:[%s4080 + $0xa] sm:$0x1]
      %v4092 = vld [vmem:[%s4080 + $0xb] sm:$0x1]
      %v4093 = vld [vmem:[%s4080 + $0xc] sm:$0x1]
      %v4094 = vld [vmem:[%s4080 + $0xd] sm:$0x1]
      %v4095 = vld [vmem:[%s4080 + $0xe] sm:$0x1]
      %v4096 = vld [vmem:[%s4080 + $0xf] sm:$0x1]
      %v4097 = vld [vmem:[%s4080 + $0x10] sm:$0x1]
      %v4098 = vld [vmem:[%s4080 + $0x11] sm:$0x1]
      %v4099 = vld [vmem:[%s4080 + $0x12] sm:$0x1]
      %v4100 = vld [vmem:[%s4080 + $0x13] sm:$0x1]
      %v4101 = vld [vmem:[%s4080 + $0x14] sm:$0x1]
      %v4102 = vld [vmem:[%s4080 + $0x15] sm:$0x1]
      %v4103 = vld [vmem:[%s4080 + $0x16] sm:$0x1]
      %v4104 = vld [vmem:[%s4080 + $0x17] sm:$0x1]
      %v4105 = vld [vmem:[%s4080 + $0x18] sm:$0x1]
      %v4106 = vld [vmem:[%s4080 + $0x19] sm:$0x1]
      %v4107 = vld [vmem:[%s4080 + $0x1a] sm:$0x1]
      %v4108 = vld [vmem:[%s4080 + $0x1b] sm:$0x1]
      %v4109 = vld [vmem:[%s4080 + $0x1c] sm:$0x1]
      %v4110 = vld [vmem:[%s4080 + $0x1d] sm:$0x1]
      %v4111 = vld [vmem:[%s4080 + $0x1e] sm:$0x1]
      %v4112 = vld [vmem:[%s4080 + $0x1f] sm:$0x1]
      %v4113 = vld [vmem:[%s4080 + $0x20] sm:$0x1]
      %v4114 = vld [vmem:[%s4080 + $0x21] sm:$0x1]
      %v4115 = vld [vmem:[%s4080 + $0x22] sm:$0x1]
      %v4116 = vld [vmem:[%s4080 + $0x23] sm:$0x1]
      %v4117 = vld [vmem:[%s4080 + $0x24] sm:$0x1]
      %v4118 = vld [vmem:[%s4080 + $0x25] sm:$0x1]
      %v4119 = vld [vmem:[%s4080 + $0x26] sm:$0x1]
      %v4120 = vld [vmem:[%s4080 + $0x27] sm:$0x1]
      %v4121 = vld [vmem:[%s4080 + $0x28] sm:$0x1]
      %v4122 = vld [vmem:[%s4080 + $0x29] sm:$0x1]
      %v4123 = vld [vmem:[%s4080 + $0x2a] sm:$0x1]
      %v4124 = vld [vmem:[%s4080 + $0x2b] sm:$0x1]
      %v4125 = vld [vmem:[%s4080 + $0x2c] sm:$0x1]
      %v4126 = vld [vmem:[%s4080 + $0x2d] sm:$0x1]
      %v4127 = vld [vmem:[%s4080 + $0x2e] sm:$0x1]
      %v4128 = vld [vmem:[%s4080 + $0x2f] sm:$0x1]
      %v4129 = vld [vmem:[%s4080 + $0x30] sm:$0x1]
      %v4130 = vld [vmem:[%s4080 + $0x31] sm:$0x1]
      %v4131 = vld [vmem:[%s4080 + $0x32] sm:$0x1]
      %v4132 = vld [vmem:[%s4080 + $0x33] sm:$0x1]
      %v4133 = vld [vmem:[%s4080 + $0x34] sm:$0x1]
      %v4134 = vld [vmem:[%s4080 + $0x35] sm:$0x1]
      %v4135 = vld [vmem:[%s4080 + $0x36] sm:$0x1]
      %v4136 = vld [vmem:[%s4080 + $0x37] sm:$0x1]
      %v4137 = vld [vmem:[%s4080 + $0x38] sm:$0x1]
      %v4138 = vld [vmem:[%s4080 + $0x39] sm:$0x1]
      %v4139 = vld [vmem:[%s4080 + $0x3a] sm:$0x1]
      %v4140 = vld [vmem:[%s4080 + $0x3b] sm:$0x1]
      %v4141 = vld [vmem:[%s4080 + $0x3c] sm:$0x1]
      %v4142 = vld [vmem:[%s4080 + $0x3d] sm:$0x1]
      %v4143 = vld [vmem:[%s4080 + $0x3e] sm:$0x1]
      %v4144 = vld [vmem:[%s4080 + $0x3f] sm:$0x1]
      %v4145 = vld [vmem:[%s4080 + $0x40] sm:$0x1]
      %v4146 = vld [vmem:[%s4080 + $0x41] sm:$0x1]
      %v4147 = vld [vmem:[%s4080 + $0x42] sm:$0x1]
      %v4148 = vld [vmem:[%s4080 + $0x43] sm:$0x1]
      %v4149 = vld [vmem:[%s4080 + $0x44] sm:$0x1]
      %v4150 = vld [vmem:[%s4080 + $0x45] sm:$0x1]
      %v4151 = vld [vmem:[%s4080 + $0x46] sm:$0x1]
      %v4152 = vld [vmem:[%s4080 + $0x47] sm:$0x1]
      %v4153 = vld [vmem:[%s4080 + $0x48] sm:$0x1]
      %v4154 = vld [vmem:[%s4080 + $0x49] sm:$0x1]
      %v4155 = vld [vmem:[%s4080 + $0x4a] sm:$0x1]
      %v4156 = vld [vmem:[%s4080 + $0x4b] sm:$0x1]
      %v4157 = vld [vmem:[%s4080 + $0x4c] sm:$0x1]
      %v4158 = vld [vmem:[%s4080 + $0x4d] sm:$0x1]
      %v4159 = vld [vmem:[%s4080 + $0x4e] sm:$0x1]
      %v4160 = vld [vmem:[%s4080 + $0x4f] sm:$0x1]
      %v4161 = vld [vmem:[%s4080 + $0x50] sm:$0x1]
      %v4162 = vld [vmem:[%s4080 + $0x51] sm:$0x1]
      %v4163 = vld [vmem:[%s4080 + $0x52] sm:$0x1]
      %v4164 = vld [vmem:[%s4080 + $0x53] sm:$0x1]
      %v4165 = vld [vmem:[%s4080 + $0x54] sm:$0x1]
      %v4166 = vld [vmem:[%s4080 + $0x55] sm:$0x1]
      %v4167 = vld [vmem:[%s4080 + $0x56] sm:$0x1]
      %v4168 = vld [vmem:[%s4080 + $0x57] sm:$0x1]
      %v4169 = vld [vmem:[%s4080 + $0x58] sm:$0x1]
      %v4170 = vld [vmem:[%s4080 + $0x59] sm:$0x1]
      %v4171 = vld [vmem:[%s4080 + $0x5a] sm:$0x1]
      %v4172 = vld [vmem:[%s4080 + $0x5b] sm:$0x1]
      %v4173 = vld [vmem:[%s4080 + $0x5c] sm:$0x1]
      %v4174 = vld [vmem:[%s4080 + $0x5d] sm:$0x1]
      %v4175 = vld [vmem:[%s4080 + $0x5e] sm:$0x1]
      %v4176 = vld [vmem:[%s4080 + $0x5f] sm:$0x1]
      %v4273 = vlaneseq
      %v4274 = vshrl.u32 %v4273, 7
      %v4275 = vsub.s32 0, %v4274
      %v4276 = vrot.slane %v4081, %v4275
      %v4277 = vlaneseq
      %v4278 = vshrl.u32 %v4277, 7
      %v4279 = vsub.s32 0, %v4278
      %v4280 = vrot.slane %v4082, %v4279
      %v4281 = vlaneseq
      %v4282 = vshrl.u32 %v4281, 7
      %v4283 = vsub.s32 0, %v4282
      %v4284 = vrot.slane %v4083, %v4283
      %v4285 = vlaneseq
      %v4286 = vshrl.u32 %v4285, 7
      %v4287 = vsub.s32 0, %v4286
      %v4288 = vrot.slane %v4084, %v4287
      %v4289 = vlaneseq
      %v4290 = vshrl.u32 %v4289, 7
      %v4291 = vsub.s32 0, %v4290
      %v4292 = vrot.slane %v4085, %v4291
      %v4293 = vlaneseq
      %v4294 = vshrl.u32 %v4293, 7
      %v4295 = vsub.s32 0, %v4294
      %v4296 = vrot.slane %v4086, %v4295
      %v4297 = vlaneseq
      %v4298 = vshrl.u32 %v4297, 7
      %v4299 = vsub.s32 0, %v4298
      %v4300 = vrot.slane %v4087, %v4299
      %v4301 = vlaneseq
      %v4302 = vshrl.u32 %v4301, 7
      %v4303 = vsub.s32 0, %v4302
      %v4304 = vrot.slane %v4088, %v4303
      %v4305 = vlaneseq
      %v4306 = vshrl.u32 %v4305, 7
      %v4307 = vsub.s32 0, %v4306
      %v4308 = vrot.slane %v4089, %v4307
      %v4309 = vlaneseq
      %v4310 = vshrl.u32 %v4309, 7
      %v4311 = vsub.s32 0, %v4310
      %v4312 = vrot.slane %v4090, %v4311
      %v4313 = vlaneseq
      %v4314 = vshrl.u32 %v4313, 7
      %v4315 = vsub.s32 0, %v4314
      %v4316 = vrot.slane %v4091, %v4315
      %v4317 = vlaneseq
      %v4318 = vshrl.u32 %v4317, 7
      %v4319 = vsub.s32 0, %v4318
      %v4320 = vrot.slane %v4092, %v4319
      %v4321 = vlaneseq
      %v4322 = vshrl.u32 %v4321, 7
      %v4323 = vsub.s32 0, %v4322
      %v4324 = vrot.slane %v4093, %v4323
      %v4325 = vlaneseq
      %v4326 = vshrl.u32 %v4325, 7
      %v4327 = vsub.s32 0, %v4326
      %v4328 = vrot.slane %v4094, %v4327
      %v4329 = vlaneseq
      %v4330 = vshrl.u32 %v4329, 7
      %v4331 = vsub.s32 0, %v4330
      %v4332 = vrot.slane %v4095, %v4331
      %v4333 = vlaneseq
      %v4334 = vshrl.u32 %v4333, 7
      %v4335 = vsub.s32 0, %v4334
      %v4336 = vrot.slane %v4096, %v4335
      %v4337 = vlaneseq
      %v4338 = vshrl.u32 %v4337, 7
      %v4339 = vsub.s32 0, %v4338
      %v4340 = vrot.slane %v4097, %v4339
      %v4341 = vlaneseq
      %v4342 = vshrl.u32 %v4341, 7
      %v4343 = vsub.s32 0, %v4342
      %v4344 = vrot.slane %v4098, %v4343
      %v4345 = vlaneseq
      %v4346 = vshrl.u32 %v4345, 7
      %v4347 = vsub.s32 0, %v4346
      %v4348 = vrot.slane %v4099, %v4347
      %v4349 = vlaneseq
      %v4350 = vshrl.u32 %v4349, 7
      %v4351 = vsub.s32 0, %v4350
      %v4352 = vrot.slane %v4100, %v4351
      %v4353 = vlaneseq
      %v4354 = vshrl.u32 %v4353, 7
      %v4355 = vsub.s32 0, %v4354
      %v4356 = vrot.slane %v4101, %v4355
      %v4357 = vlaneseq
      %v4358 = vshrl.u32 %v4357, 7
      %v4359 = vsub.s32 0, %v4358
      %v4360 = vrot.slane %v4102, %v4359
      %v4361 = vlaneseq
      %v4362 = vshrl.u32 %v4361, 7
      %v4363 = vsub.s32 0, %v4362
      %v4364 = vrot.slane %v4103, %v4363
      %v4365 = vlaneseq
      %v4366 = vshrl.u32 %v4365, 7
      %v4367 = vsub.s32 0, %v4366
      %v4368 = vrot.slane %v4104, %v4367
      %v4369 = vlaneseq
      %v4370 = vshrl.u32 %v4369, 7
      %v4371 = vsub.s32 0, %v4370
      %v4372 = vrot.slane %v4105, %v4371
      %v4373 = vlaneseq
      %v4374 = vshrl.u32 %v4373, 7
      %v4375 = vsub.s32 0, %v4374
      %v4376 = vrot.slane %v4106, %v4375
      %v4377 = vlaneseq
      %v4378 = vshrl.u32 %v4377, 7
      %v4379 = vsub.s32 0, %v4378
      %v4380 = vrot.slane %v4107, %v4379
      %v4381 = vlaneseq
      %v4382 = vshrl.u32 %v4381, 7
      %v4383 = vsub.s32 0, %v4382
      %v4384 = vrot.slane %v4108, %v4383
      %v4385 = vlaneseq
      %v4386 = vshrl.u32 %v4385, 7
      %v4387 = vsub.s32 0, %v4386
      %v4388 = vrot.slane %v4109, %v4387
      %v4389 = vlaneseq
      %v4390 = vshrl.u32 %v4389, 7
      %v4391 = vsub.s32 0, %v4390
      %v4392 = vrot.slane %v4110, %v4391
      %v4393 = vlaneseq
      %v4394 = vshrl.u32 %v4393, 7
      %v4395 = vsub.s32 0, %v4394
      %v4396 = vrot.slane %v4111, %v4395
      %v4397 = vlaneseq
      %v4398 = vshrl.u32 %v4397, 7
      %v4399 = vsub.s32 0, %v4398
      %v4400 = vrot.slane %v4112, %v4399
      %v4401 = vlaneseq
      %v4402 = vshrl.u32 %v4401, 7
      %v4403 = vsub.s32 0, %v4402
      %v4404 = vrot.slane %v4113, %v4403
      %v4405 = vlaneseq
      %v4406 = vshrl.u32 %v4405, 7
      %v4407 = vsub.s32 0, %v4406
      %v4408 = vrot.slane %v4114, %v4407
      %v4409 = vlaneseq
      %v4410 = vshrl.u32 %v4409, 7
      %v4411 = vsub.s32 0, %v4410
      %v4412 = vrot.slane %v4115, %v4411
      %v4413 = vlaneseq
      %v4414 = vshrl.u32 %v4413, 7
      %v4415 = vsub.s32 0, %v4414
      %v4416 = vrot.slane %v4116, %v4415
      %v4417 = vlaneseq
      %v4418 = vshrl.u32 %v4417, 7
      %v4419 = vsub.s32 0, %v4418
      %v4420 = vrot.slane %v4117, %v4419
      %v4421 = vlaneseq
      %v4422 = vshrl.u32 %v4421, 7
      %v4423 = vsub.s32 0, %v4422
      %v4424 = vrot.slane %v4118, %v4423
      %v4425 = vlaneseq
      %v4426 = vshrl.u32 %v4425, 7
      %v4427 = vsub.s32 0, %v4426
      %v4428 = vrot.slane %v4119, %v4427
      %v4429 = vlaneseq
      %v4430 = vshrl.u32 %v4429, 7
      %v4431 = vsub.s32 0, %v4430
      %v4432 = vrot.slane %v4120, %v4431
      %v4433 = vlaneseq
      %v4434 = vshrl.u32 %v4433, 7
      %v4435 = vsub.s32 0, %v4434
      %v4436 = vrot.slane %v4121, %v4435
      %v4437 = vlaneseq
      %v4438 = vshrl.u32 %v4437, 7
      %v4439 = vsub.s32 0, %v4438
      %v4440 = vrot.slane %v4122, %v4439
      %v4441 = vlaneseq
      %v4442 = vshrl.u32 %v4441, 7
      %v4443 = vsub.s32 0, %v4442
      %v4444 = vrot.slane %v4123, %v4443
      %v4445 = vlaneseq
      %v4446 = vshrl.u32 %v4445, 7
      %v4447 = vsub.s32 0, %v4446
      %v4448 = vrot.slane %v4124, %v4447
      %v4449 = vlaneseq
      %v4450 = vshrl.u32 %v4449, 7
      %v4451 = vsub.s32 0, %v4450
      %v4452 = vrot.slane %v4125, %v4451
      %v4453 = vlaneseq
      %v4454 = vshrl.u32 %v4453, 7
      %v4455 = vsub.s32 0, %v4454
      %v4456 = vrot.slane %v4126, %v4455
      %v4457 = vlaneseq
      %v4458 = vshrl.u32 %v4457, 7
      %v4459 = vsub.s32 0, %v4458
      %v4460 = vrot.slane %v4127, %v4459
      %v4461 = vlaneseq
      %v4462 = vshrl.u32 %v4461, 7
      %v4463 = vsub.s32 0, %v4462
      %v4464 = vrot.slane %v4128, %v4463
      %v4465 = vlaneseq
      %v4466 = vshrl.u32 %v4465, 7
      %v4467 = vsub.s32 0, %v4466
      %v4468 = vrot.slane %v4129, %v4467
      %v4469 = vlaneseq
      %v4470 = vshrl.u32 %v4469, 7
      %v4471 = vsub.s32 0, %v4470
      %v4472 = vrot.slane %v4130, %v4471
      %v4473 = vlaneseq
      %v4474 = vshrl.u32 %v4473, 7
      %v4475 = vsub.s32 0, %v4474
      %v4476 = vrot.slane %v4131, %v4475
      %v4477 = vlaneseq
      %v4478 = vshrl.u32 %v4477, 7
      %v4479 = vsub.s32 0, %v4478
      %v4480 = vrot.slane %v4132, %v4479
      %v4481 = vlaneseq
      %v4482 = vshrl.u32 %v4481, 7
      %v4483 = vsub.s32 0, %v4482
      %v4484 = vrot.slane %v4133, %v4483
      %v4485 = vlaneseq
      %v4486 = vshrl.u32 %v4485, 7
      %v4487 = vsub.s32 0, %v4486
      %v4488 = vrot.slane %v4134, %v4487
      %v4489 = vlaneseq
      %v4490 = vshrl.u32 %v4489, 7
      %v4491 = vsub.s32 0, %v4490
      %v4492 = vrot.slane %v4135, %v4491
      %v4493 = vlaneseq
      %v4494 = vshrl.u32 %v4493, 7
      %v4495 = vsub.s32 0, %v4494
      %v4496 = vrot.slane %v4136, %v4495
      %v4497 = vlaneseq
      %v4498 = vshrl.u32 %v4497, 7
      %v4499 = vsub.s32 0, %v4498
      %v4500 = vrot.slane %v4137, %v4499
      %v4501 = vlaneseq
      %v4502 = vshrl.u32 %v4501, 7
      %v4503 = vsub.s32 0, %v4502
      %v4504 = vrot.slane %v4138, %v4503
      %v4505 = vlaneseq
      %v4506 = vshrl.u32 %v4505, 7
      %v4507 = vsub.s32 0, %v4506
      %v4508 = vrot.slane %v4139, %v4507
      %v4509 = vlaneseq
      %v4510 = vshrl.u32 %v4509, 7
      %v4511 = vsub.s32 0, %v4510
      %v4512 = vrot.slane %v4140, %v4511
      %v4513 = vlaneseq
      %v4514 = vshrl.u32 %v4513, 7
      %v4515 = vsub.s32 0, %v4514
      %v4516 = vrot.slane %v4141, %v4515
      %v4517 = vlaneseq
      %v4518 = vshrl.u32 %v4517, 7
      %v4519 = vsub.s32 0, %v4518
      %v4520 = vrot.slane %v4142, %v4519
      %v4521 = vlaneseq
      %v4522 = vshrl.u32 %v4521, 7
      %v4523 = vsub.s32 0, %v4522
      %v4524 = vrot.slane %v4143, %v4523
      %v4525 = vlaneseq
      %v4526 = vshrl.u32 %v4525, 7
      %v4527 = vsub.s32 0, %v4526
      %v4528 = vrot.slane %v4144, %v4527
      %v4529 = vlaneseq
      %v4530 = vshrl.u32 %v4529, 7
      %v4531 = vsub.s32 0, %v4530
      %v4532 = vrot.slane %v4145, %v4531
      %v4533 = vlaneseq
      %v4534 = vshrl.u32 %v4533, 7
      %v4535 = vsub.s32 0, %v4534
      %v4536 = vrot.slane %v4146, %v4535
      %v4537 = vlaneseq
      %v4538 = vshrl.u32 %v4537, 7
      %v4539 = vsub.s32 0, %v4538
      %v4540 = vrot.slane %v4147, %v4539
      %v4541 = vlaneseq
      %v4542 = vshrl.u32 %v4541, 7
      %v4543 = vsub.s32 0, %v4542
      %v4544 = vrot.slane %v4148, %v4543
      %v4545 = vlaneseq
      %v4546 = vshrl.u32 %v4545, 7
      %v4547 = vsub.s32 0, %v4546
      %v4548 = vrot.slane %v4149, %v4547
      %v4549 = vlaneseq
      %v4550 = vshrl.u32 %v4549, 7
      %v4551 = vsub.s32 0, %v4550
      %v4552 = vrot.slane %v4150, %v4551
      %v4553 = vlaneseq
      %v4554 = vshrl.u32 %v4553, 7
      %v4555 = vsub.s32 0, %v4554
      %v4556 = vrot.slane %v4151, %v4555
      %v4557 = vlaneseq
      %v4558 = vshrl.u32 %v4557, 7
      %v4559 = vsub.s32 0, %v4558
      %v4560 = vrot.slane %v4152, %v4559
      %v4561 = vlaneseq
      %v4562 = vshrl.u32 %v4561, 7
      %v4563 = vsub.s32 0, %v4562
      %v4564 = vrot.slane %v4153, %v4563
      %v4565 = vlaneseq
      %v4566 = vshrl.u32 %v4565, 7
      %v4567 = vsub.s32 0, %v4566
      %v4568 = vrot.slane %v4154, %v4567
      %v4569 = vlaneseq
      %v4570 = vshrl.u32 %v4569, 7
      %v4571 = vsub.s32 0, %v4570
      %v4572 = vrot.slane %v4155, %v4571
      %v4573 = vlaneseq
      %v4574 = vshrl.u32 %v4573, 7
      %v4575 = vsub.s32 0, %v4574
      %v4576 = vrot.slane %v4156, %v4575
      %v4577 = vlaneseq
      %v4578 = vshrl.u32 %v4577, 7
      %v4579 = vsub.s32 0, %v4578
      %v4580 = vrot.slane %v4157, %v4579
      %v4581 = vlaneseq
      %v4582 = vshrl.u32 %v4581, 7
      %v4583 = vsub.s32 0, %v4582
      %v4584 = vrot.slane %v4158, %v4583
      %v4585 = vlaneseq
      %v4586 = vshrl.u32 %v4585, 7
      %v4587 = vsub.s32 0, %v4586
      %v4588 = vrot.slane %v4159, %v4587
      %v4589 = vlaneseq
      %v4590 = vshrl.u32 %v4589, 7
      %v4591 = vsub.s32 0, %v4590
      %v4592 = vrot.slane %v4160, %v4591
      %v4593 = vlaneseq
      %v4594 = vshrl.u32 %v4593, 7
      %v4595 = vsub.s32 0, %v4594
      %v4596 = vrot.slane %v4161, %v4595
      %v4597 = vlaneseq
      %v4598 = vshrl.u32 %v4597, 7
      %v4599 = vsub.s32 0, %v4598
      %v4600 = vrot.slane %v4162, %v4599
      %v4601 = vlaneseq
      %v4602 = vshrl.u32 %v4601, 7
      %v4603 = vsub.s32 0, %v4602
      %v4604 = vrot.slane %v4163, %v4603
      %v4605 = vlaneseq
      %v4606 = vshrl.u32 %v4605, 7
      %v4607 = vsub.s32 0, %v4606
      %v4608 = vrot.slane %v4164, %v4607
      %v4609 = vlaneseq
      %v4610 = vshrl.u32 %v4609, 7
      %v4611 = vsub.s32 0, %v4610
      %v4612 = vrot.slane %v4165, %v4611
      %v4613 = vlaneseq
      %v4614 = vshrl.u32 %v4613, 7
      %v4615 = vsub.s32 0, %v4614
      %v4616 = vrot.slane %v4166, %v4615
      %v4617 = vlaneseq
      %v4618 = vshrl.u32 %v4617, 7
      %v4619 = vsub.s32 0, %v4618
      %v4620 = vrot.slane %v4167, %v4619
      %v4621 = vlaneseq
      %v4622 = vshrl.u32 %v4621, 7
      %v4623 = vsub.s32 0, %v4622
      %v4624 = vrot.slane %v4168, %v4623
      %v4625 = vlaneseq
      %v4626 = vshrl.u32 %v4625, 7
      %v4627 = vsub.s32 0, %v4626
      %v4628 = vrot.slane %v4169, %v4627
      %v4629 = vlaneseq
      %v4630 = vshrl.u32 %v4629, 7
      %v4631 = vsub.s32 0, %v4630
      %v4632 = vrot.slane %v4170, %v4631
      %v4633 = vlaneseq
      %v4634 = vshrl.u32 %v4633, 7
      %v4635 = vsub.s32 0, %v4634
      %v4636 = vrot.slane %v4171, %v4635
      %v4637 = vlaneseq
      %v4638 = vshrl.u32 %v4637, 7
      %v4639 = vsub.s32 0, %v4638
      %v4640 = vrot.slane %v4172, %v4639
      %v4641 = vlaneseq
      %v4642 = vshrl.u32 %v4641, 7
      %v4643 = vsub.s32 0, %v4642
      %v4644 = vrot.slane %v4173, %v4643
      %v4645 = vlaneseq
      %v4646 = vshrl.u32 %v4645, 7
      %v4647 = vsub.s32 0, %v4646
      %v4648 = vrot.slane %v4174, %v4647
      %v4649 = vlaneseq
      %v4650 = vshrl.u32 %v4649, 7
      %v4651 = vsub.s32 0, %v4650
      %v4652 = vrot.slane %v4175, %v4651
      %v4653 = vlaneseq
      %v4654 = vshrl.u32 %v4653, 7
      %v4655 = vsub.s32 0, %v4654
      %v4656 = vrot.slane %v4176, %v4655
      %4657 = vset.pattern.permute.xlu0 0
      %4658 = vperm.xlu0 %4657, %v4276
      %v4659 = vpop.permute.xlu0 %4658
      %4661 = vset.pattern.permute.xlu0 0
      %4662 = vperm.xlu0 %4661, %v4280
      %v4663 = vpop.permute.xlu0 %4662
      %4665 = vset.pattern.permute.xlu0 0
      %4666 = vperm.xlu0 %4665, %v4284
      %v4667 = vpop.permute.xlu0 %4666
      %4669 = vset.pattern.permute.xlu0 0
      %4670 = vperm.xlu0 %4669, %v4288
      %v4671 = vpop.permute.xlu0 %4670
      %4673 = vset.pattern.permute.xlu0 0
      %4674 = vperm.xlu0 %4673, %v4292
      %v4675 = vpop.permute.xlu0 %4674
      %4677 = vset.pattern.permute.xlu0 0
      %4678 = vperm.xlu0 %4677, %v4296
      %v4679 = vpop.permute.xlu0 %4678
      %4681 = vset.pattern.permute.xlu0 0
      %4682 = vperm.xlu0 %4681, %v4300
      %v4683 = vpop.permute.xlu0 %4682
      %4685 = vset.pattern.permute.xlu0 0
      %4686 = vperm.xlu0 %4685, %v4304
      %v4687 = vpop.permute.xlu0 %4686
      %4689 = vset.pattern.permute.xlu0 0
      %4690 = vperm.xlu0 %4689, %v4308
      %v4691 = vpop.permute.xlu0 %4690
      %4693 = vset.pattern.permute.xlu0 0
      %4694 = vperm.xlu0 %4693, %v4312
      %v4695 = vpop.permute.xlu0 %4694
      %4697 = vset.pattern.permute.xlu0 0
      %4698 = vperm.xlu0 %4697, %v4316
      %v4699 = vpop.permute.xlu0 %4698
      %4701 = vset.pattern.permute.xlu0 0
      %4702 = vperm.xlu0 %4701, %v4320
      %v4703 = vpop.permute.xlu0 %4702
      %4705 = vset.pattern.permute.xlu0 0
      %4706 = vperm.xlu0 %4705, %v4324
      %v4707 = vpop.permute.xlu0 %4706
      %4709 = vset.pattern.permute.xlu0 0
      %4710 = vperm.xlu0 %4709, %v4328
      %v4711 = vpop.permute.xlu0 %4710
      %4713 = vset.pattern.permute.xlu0 0
      %4714 = vperm.xlu0 %4713, %v4332
      %v4715 = vpop.permute.xlu0 %4714
      %4717 = vset.pattern.permute.xlu0 0
      %4718 = vperm.xlu0 %4717, %v4336
      %v4719 = vpop.permute.xlu0 %4718
      %4721 = vset.pattern.permute.xlu0 0
      %4722 = vperm.xlu0 %4721, %v4340
      %v4723 = vpop.permute.xlu0 %4722
      %4725 = vset.pattern.permute.xlu0 0
      %4726 = vperm.xlu0 %4725, %v4344
      %v4727 = vpop.permute.xlu0 %4726
      %4729 = vset.pattern.permute.xlu0 0
      %4730 = vperm.xlu0 %4729, %v4348
      %v4731 = vpop.permute.xlu0 %4730
      %4733 = vset.pattern.permute.xlu0 0
      %4734 = vperm.xlu0 %4733, %v4352
      %v4735 = vpop.permute.xlu0 %4734
      %4737 = vset.pattern.permute.xlu0 0
      %4738 = vperm.xlu0 %4737, %v4356
      %v4739 = vpop.permute.xlu0 %4738
      %4741 = vset.pattern.permute.xlu0 0
      %4742 = vperm.xlu0 %4741, %v4360
      %v4743 = vpop.permute.xlu0 %4742
      %4745 = vset.pattern.permute.xlu0 0
      %4746 = vperm.xlu0 %4745, %v4364
      %v4747 = vpop.permute.xlu0 %4746
      %4749 = vset.pattern.permute.xlu0 0
      %4750 = vperm.xlu0 %4749, %v4368
      %v4751 = vpop.permute.xlu0 %4750
      %4753 = vset.pattern.permute.xlu0 0
      %4754 = vperm.xlu0 %4753, %v4372
      %v4755 = vpop.permute.xlu0 %4754
      %4757 = vset.pattern.permute.xlu0 0
      %4758 = vperm.xlu0 %4757, %v4376
      %v4759 = vpop.permute.xlu0 %4758
      %4761 = vset.pattern.permute.xlu0 0
      %4762 = vperm.xlu0 %4761, %v4380
      %v4763 = vpop.permute.xlu0 %4762
      %4765 = vset.pattern.permute.xlu0 0
      %4766 = vperm.xlu0 %4765, %v4384
      %v4767 = vpop.permute.xlu0 %4766
      %4769 = vset.pattern.permute.xlu0 0
      %4770 = vperm.xlu0 %4769, %v4388
      %v4771 = vpop.permute.xlu0 %4770
      %4773 = vset.pattern.permute.xlu0 0
      %4774 = vperm.xlu0 %4773, %v4392
      %v4775 = vpop.permute.xlu0 %4774
      %4777 = vset.pattern.permute.xlu0 0
      %4778 = vperm.xlu0 %4777, %v4396
      %v4779 = vpop.permute.xlu0 %4778
      %4781 = vset.pattern.permute.xlu0 0
      %4782 = vperm.xlu0 %4781, %v4400
      %v4783 = vpop.permute.xlu0 %4782
      %4785 = vset.pattern.permute.xlu0 0
      %4786 = vperm.xlu0 %4785, %v4404
      %v4787 = vpop.permute.xlu0 %4786
      %4789 = vset.pattern.permute.xlu0 0
      %4790 = vperm.xlu0 %4789, %v4408
      %v4791 = vpop.permute.xlu0 %4790
      %4793 = vset.pattern.permute.xlu0 0
      %4794 = vperm.xlu0 %4793, %v4412
      %v4795 = vpop.permute.xlu0 %4794
      %4797 = vset.pattern.permute.xlu0 0
      %4798 = vperm.xlu0 %4797, %v4416
      %v4799 = vpop.permute.xlu0 %4798
      %4801 = vset.pattern.permute.xlu0 0
      %4802 = vperm.xlu0 %4801, %v4420
      %v4803 = vpop.permute.xlu0 %4802
      %4805 = vset.pattern.permute.xlu0 0
      %4806 = vperm.xlu0 %4805, %v4424
      %v4807 = vpop.permute.xlu0 %4806
      %4809 = vset.pattern.permute.xlu0 0
      %4810 = vperm.xlu0 %4809, %v4428
      %v4811 = vpop.permute.xlu0 %4810
      %4813 = vset.pattern.permute.xlu0 0
      %4814 = vperm.xlu0 %4813, %v4432
      %v4815 = vpop.permute.xlu0 %4814
      %4817 = vset.pattern.permute.xlu0 0
      %4818 = vperm.xlu0 %4817, %v4436
      %v4819 = vpop.permute.xlu0 %4818
      %4821 = vset.pattern.permute.xlu0 0
      %4822 = vperm.xlu0 %4821, %v4440
      %v4823 = vpop.permute.xlu0 %4822
      %4825 = vset.pattern.permute.xlu0 0
      %4826 = vperm.xlu0 %4825, %v4444
      %v4827 = vpop.permute.xlu0 %4826
      %4829 = vset.pattern.permute.xlu0 0
      %4830 = vperm.xlu0 %4829, %v4448
      %v4831 = vpop.permute.xlu0 %4830
      %4833 = vset.pattern.permute.xlu0 0
      %4834 = vperm.xlu0 %4833, %v4452
      %v4835 = vpop.permute.xlu0 %4834
      %4837 = vset.pattern.permute.xlu0 0
      %4838 = vperm.xlu0 %4837, %v4456
      %v4839 = vpop.permute.xlu0 %4838
      %4841 = vset.pattern.permute.xlu0 0
      %4842 = vperm.xlu0 %4841, %v4460
      %v4843 = vpop.permute.xlu0 %4842
      %4845 = vset.pattern.permute.xlu0 0
      %4846 = vperm.xlu0 %4845, %v4464
      %v4847 = vpop.permute.xlu0 %4846
      %4849 = vset.pattern.permute.xlu0 0
      %4850 = vperm.xlu0 %4849, %v4468
      %v4851 = vpop.permute.xlu0 %4850
      %4853 = vset.pattern.permute.xlu0 0
      %4854 = vperm.xlu0 %4853, %v4472
      %v4855 = vpop.permute.xlu0 %4854
      %4857 = vset.pattern.permute.xlu0 0
      %4858 = vperm.xlu0 %4857, %v4476
      %v4859 = vpop.permute.xlu0 %4858
      %4861 = vset.pattern.permute.xlu0 0
      %4862 = vperm.xlu0 %4861, %v4480
      %v4863 = vpop.permute.xlu0 %4862
      %4865 = vset.pattern.permute.xlu0 0
      %4866 = vperm.xlu0 %4865, %v4484
      %v4867 = vpop.permute.xlu0 %4866
      %4869 = vset.pattern.permute.xlu0 0
      %4870 = vperm.xlu0 %4869, %v4488
      %v4871 = vpop.permute.xlu0 %4870
      %4873 = vset.pattern.permute.xlu0 0
      %4874 = vperm.xlu0 %4873, %v4492
      %v4875 = vpop.permute.xlu0 %4874
      %4877 = vset.pattern.permute.xlu0 0
      %4878 = vperm.xlu0 %4877, %v4496
      %v4879 = vpop.permute.xlu0 %4878
      %4881 = vset.pattern.permute.xlu0 0
      %4882 = vperm.xlu0 %4881, %v4500
      %v4883 = vpop.permute.xlu0 %4882
      %4885 = vset.pattern.permute.xlu0 0
      %4886 = vperm.xlu0 %4885, %v4504
      %v4887 = vpop.permute.xlu0 %4886
      %4889 = vset.pattern.permute.xlu0 0
      %4890 = vperm.xlu0 %4889, %v4508
      %v4891 = vpop.permute.xlu0 %4890
      %4893 = vset.pattern.permute.xlu0 0
      %4894 = vperm.xlu0 %4893, %v4512
      %v4895 = vpop.permute.xlu0 %4894
      %4897 = vset.pattern.permute.xlu0 0
      %4898 = vperm.xlu0 %4897, %v4516
      %v4899 = vpop.permute.xlu0 %4898
      %4901 = vset.pattern.permute.xlu0 0
      %4902 = vperm.xlu0 %4901, %v4520
      %v4903 = vpop.permute.xlu0 %4902
      %4905 = vset.pattern.permute.xlu0 0
      %4906 = vperm.xlu0 %4905, %v4524
      %v4907 = vpop.permute.xlu0 %4906
      %4909 = vset.pattern.permute.xlu0 0
      %4910 = vperm.xlu0 %4909, %v4528
      %v4911 = vpop.permute.xlu0 %4910
      %4913 = vset.pattern.permute.xlu0 0
      %4914 = vperm.xlu0 %4913, %v4532
      %v4915 = vpop.permute.xlu0 %4914
      %4917 = vset.pattern.permute.xlu0 0
      %4918 = vperm.xlu0 %4917, %v4536
      %v4919 = vpop.permute.xlu0 %4918
      %4921 = vset.pattern.permute.xlu0 0
      %4922 = vperm.xlu0 %4921, %v4540
      %v4923 = vpop.permute.xlu0 %4922
      %4925 = vset.pattern.permute.xlu0 0
      %4926 = vperm.xlu0 %4925, %v4544
      %v4927 = vpop.permute.xlu0 %4926
      %4929 = vset.pattern.permute.xlu0 0
      %4930 = vperm.xlu0 %4929, %v4548
      %v4931 = vpop.permute.xlu0 %4930
      %4933 = vset.pattern.permute.xlu0 0
      %4934 = vperm.xlu0 %4933, %v4552
      %v4935 = vpop.permute.xlu0 %4934
      %4937 = vset.pattern.permute.xlu0 0
      %4938 = vperm.xlu0 %4937, %v4556
      %v4939 = vpop.permute.xlu0 %4938
      %4941 = vset.pattern.permute.xlu0 0
      %4942 = vperm.xlu0 %4941, %v4560
      %v4943 = vpop.permute.xlu0 %4942
      %4945 = vset.pattern.permute.xlu0 0
      %4946 = vperm.xlu0 %4945, %v4564
      %v4947 = vpop.permute.xlu0 %4946
      %4949 = vset.pattern.permute.xlu0 0
      %4950 = vperm.xlu0 %4949, %v4568
      %v4951 = vpop.permute.xlu0 %4950
      %4953 = vset.pattern.permute.xlu0 0
      %4954 = vperm.xlu0 %4953, %v4572
      %v4955 = vpop.permute.xlu0 %4954
      %4957 = vset.pattern.permute.xlu0 0
      %4958 = vperm.xlu0 %4957, %v4576
      %v4959 = vpop.permute.xlu0 %4958
      %4961 = vset.pattern.permute.xlu0 0
      %4962 = vperm.xlu0 %4961, %v4580
      %v4963 = vpop.permute.xlu0 %4962
      %4965 = vset.pattern.permute.xlu0 0
      %4966 = vperm.xlu0 %4965, %v4584
      %v4967 = vpop.permute.xlu0 %4966
      %4969 = vset.pattern.permute.xlu0 0
      %4970 = vperm.xlu0 %4969, %v4588
      %v4971 = vpop.permute.xlu0 %4970
      %4973 = vset.pattern.permute.xlu0 0
      %4974 = vperm.xlu0 %4973, %v4592
      %v4975 = vpop.permute.xlu0 %4974
      %4977 = vset.pattern.permute.xlu0 0
      %4978 = vperm.xlu0 %4977, %v4596
      %v4979 = vpop.permute.xlu0 %4978
      %4981 = vset.pattern.permute.xlu0 0
      %4982 = vperm.xlu0 %4981, %v4600
      %v4983 = vpop.permute.xlu0 %4982
      %4985 = vset.pattern.permute.xlu0 0
      %4986 = vperm.xlu0 %4985, %v4604
      %v4987 = vpop.permute.xlu0 %4986
      %4989 = vset.pattern.permute.xlu0 0
      %4990 = vperm.xlu0 %4989, %v4608
      %v4991 = vpop.permute.xlu0 %4990
      %4993 = vset.pattern.permute.xlu0 0
      %4994 = vperm.xlu0 %4993, %v4612
      %v4995 = vpop.permute.xlu0 %4994
      %4997 = vset.pattern.permute.xlu0 0
      %4998 = vperm.xlu0 %4997, %v4616
      %v4999 = vpop.permute.xlu0 %4998
      %5001 = vset.pattern.permute.xlu0 0
      %5002 = vperm.xlu0 %5001, %v4620
      %v5003 = vpop.permute.xlu0 %5002
      %5005 = vset.pattern.permute.xlu0 0
      %5006 = vperm.xlu0 %5005, %v4624
      %v5007 = vpop.permute.xlu0 %5006
      %5009 = vset.pattern.permute.xlu0 0
      %5010 = vperm.xlu0 %5009, %v4628
      %v5011 = vpop.permute.xlu0 %5010
      %5013 = vset.pattern.permute.xlu0 0
      %5014 = vperm.xlu0 %5013, %v4632
      %v5015 = vpop.permute.xlu0 %5014
      %5017 = vset.pattern.permute.xlu0 0
      %5018 = vperm.xlu0 %5017, %v4636
      %v5019 = vpop.permute.xlu0 %5018
      %5021 = vset.pattern.permute.xlu0 0
      %5022 = vperm.xlu0 %5021, %v4640
      %v5023 = vpop.permute.xlu0 %5022
      %5025 = vset.pattern.permute.xlu0 0
      %5026 = vperm.xlu0 %5025, %v4644
      %v5027 = vpop.permute.xlu0 %5026
      %5029 = vset.pattern.permute.xlu0 0
      %5030 = vperm.xlu0 %5029, %v4648
      %v5031 = vpop.permute.xlu0 %5030
      %5033 = vset.pattern.permute.xlu0 0
      %5034 = vperm.xlu0 %5033, %v4652
      %v5035 = vpop.permute.xlu0 %5034
      %5037 = vset.pattern.permute.xlu0 0
      %5038 = vperm.xlu0 %5037, %v4656
      %v5039 = vpop.permute.xlu0 %5038
      %v5041 = vmul.f32 %v4079, %v4659
      %v5042 = vmul.f32 %v4079, %v4663
      %v5043 = vmul.f32 %v4079, %v4667
      %v5044 = vmul.f32 %v4079, %v4671
      %v5045 = vmul.f32 %v4079, %v4675
      %v5046 = vmul.f32 %v4079, %v4679
      %v5047 = vmul.f32 %v4079, %v4683
      %v5048 = vmul.f32 %v4079, %v4687
      %v5049 = vmul.f32 %v4079, %v4691
      %v5050 = vmul.f32 %v4079, %v4695
      %v5051 = vmul.f32 %v4079, %v4699
      %v5052 = vmul.f32 %v4079, %v4703
      %v5053 = vmul.f32 %v4079, %v4707
      %v5054 = vmul.f32 %v4079, %v4711
      %v5055 = vmul.f32 %v4079, %v4715
      %v5056 = vmul.f32 %v4079, %v4719
      %v5057 = vmul.f32 %v4079, %v4723
      %v5058 = vmul.f32 %v4079, %v4727
      %v5059 = vmul.f32 %v4079, %v4731
      %v5060 = vmul.f32 %v4079, %v4735
      %v5061 = vmul.f32 %v4079, %v4739
      %v5062 = vmul.f32 %v4079, %v4743
      %v5063 = vmul.f32 %v4079, %v4747
      %v5064 = vmul.f32 %v4079, %v4751
      %v5065 = vmul.f32 %v4079, %v4755
      %v5066 = vmul.f32 %v4079, %v4759
      %v5067 = vmul.f32 %v4079, %v4763
      %v5068 = vmul.f32 %v4079, %v4767
      %v5069 = vmul.f32 %v4079, %v4771
      %v5070 = vmul.f32 %v4079, %v4775
      %v5071 = vmul.f32 %v4079, %v4779
      %v5072 = vmul.f32 %v4079, %v4783
      %v5073 = vmul.f32 %v4079, %v4787
      %v5074 = vmul.f32 %v4079, %v4791
      %v5075 = vmul.f32 %v4079, %v4795
      %v5076 = vmul.f32 %v4079, %v4799
      %v5077 = vmul.f32 %v4079, %v4803
      %v5078 = vmul.f32 %v4079, %v4807
      %v5079 = vmul.f32 %v4079, %v4811
      %v5080 = vmul.f32 %v4079, %v4815
      %v5081 = vmul.f32 %v4079, %v4819
      %v5082 = vmul.f32 %v4079, %v4823
      %v5083 = vmul.f32 %v4079, %v4827
      %v5084 = vmul.f32 %v4079, %v4831
      %v5085 = vmul.f32 %v4079, %v4835
      %v5086 = vmul.f32 %v4079, %v4839
      %v5087 = vmul.f32 %v4079, %v4843
      %v5088 = vmul.f32 %v4079, %v4847
      %v5089 = vmul.f32 %v4079, %v4851
      %v5090 = vmul.f32 %v4079, %v4855
      %v5091 = vmul.f32 %v4079, %v4859
      %v5092 = vmul.f32 %v4079, %v4863
      %v5093 = vmul.f32 %v4079, %v4867
      %v5094 = vmul.f32 %v4079, %v4871
      %v5095 = vmul.f32 %v4079, %v4875
      %v5096 = vmul.f32 %v4079, %v4879
      %v5097 = vmul.f32 %v4079, %v4883
      %v5098 = vmul.f32 %v4079, %v4887
      %v5099 = vmul.f32 %v4079, %v4891
      %v5100 = vmul.f32 %v4079, %v4895
      %v5101 = vmul.f32 %v4079, %v4899
      %v5102 = vmul.f32 %v4079, %v4903
      %v5103 = vmul.f32 %v4079, %v4907
      %v5104 = vmul.f32 %v4079, %v4911
      %v5105 = vmul.f32 %v4079, %v4915
      %v5106 = vmul.f32 %v4079, %v4919
      %v5107 = vmul.f32 %v4079, %v4923
      %v5108 = vmul.f32 %v4079, %v4927
      %v5109 = vmul.f32 %v4079, %v4931
      %v5110 = vmul.f32 %v4079, %v4935
      %v5111 = vmul.f32 %v4079, %v4939
      %v5112 = vmul.f32 %v4079, %v4943
      %v5113 = vmul.f32 %v4079, %v4947
      %v5114 = vmul.f32 %v4079, %v4951
      %v5115 = vmul.f32 %v4079, %v4955
      %v5116 = vmul.f32 %v4079, %v4959
      %v5117 = vmul.f32 %v4079, %v4963
      %v5118 = vmul.f32 %v4079, %v4967
      %v5119 = vmul.f32 %v4079, %v4971
      %v5120 = vmul.f32 %v4079, %v4975
      %v5121 = vmul.f32 %v4079, %v4979
      %v5122 = vmul.f32 %v4079, %v4983
      %v5123 = vmul.f32 %v4079, %v4987
      %v5124 = vmul.f32 %v4079, %v4991
      %v5125 = vmul.f32 %v4079, %v4995
      %v5126 = vmul.f32 %v4079, %v4999
      %v5127 = vmul.f32 %v4079, %v5003
      %v5128 = vmul.f32 %v4079, %v5007
      %v5129 = vmul.f32 %v4079, %v5011
      %v5130 = vmul.f32 %v4079, %v5015
      %v5131 = vmul.f32 %v4079, %v5019
      %v5132 = vmul.f32 %v4079, %v5023
      %v5133 = vmul.f32 %v4079, %v5027
      %v5134 = vmul.f32 %v4079, %v5031
      %v5135 = vmul.f32 %v4079, %v5035
      %v5136 = vmul.f32 %v4079, %v5039
      %v5137 = vadd.f32 %v3834, %v5041
      %v5138 = vadd.f32 %v3835, %v5042
      %v5139 = vadd.f32 %v3836, %v5043
      %v5140 = vadd.f32 %v3837, %v5044
      %v5141 = vadd.f32 %v3838, %v5045
      %v5142 = vadd.f32 %v3839, %v5046
      %v5143 = vadd.f32 %v3840, %v5047
      %v5144 = vadd.f32 %v3841, %v5048
      %v5145 = vadd.f32 %v3842, %v5049
      %v5146 = vadd.f32 %v3843, %v5050
      %v5147 = vadd.f32 %v3844, %v5051
      %v5148 = vadd.f32 %v3845, %v5052
      %v5149 = vadd.f32 %v3846, %v5053
      %v5150 = vadd.f32 %v3847, %v5054
      %v5151 = vadd.f32 %v3848, %v5055
      %v5152 = vadd.f32 %v3849, %v5056
      %v5153 = vadd.f32 %v3850, %v5057
      %v5154 = vadd.f32 %v3851, %v5058
      %v5155 = vadd.f32 %v3852, %v5059
      %v5156 = vadd.f32 %v3853, %v5060
      %v5157 = vadd.f32 %v3854, %v5061
      %v5158 = vadd.f32 %v3855, %v5062
      %v5159 = vadd.f32 %v3856, %v5063
      %v5160 = vadd.f32 %v3857, %v5064
      %v5161 = vadd.f32 %v3858, %v5065
      %v5162 = vadd.f32 %v3859, %v5066
      %v5163 = vadd.f32 %v3860, %v5067
      %v5164 = vadd.f32 %v3861, %v5068
      %v5165 = vadd.f32 %v3862, %v5069
      %v5166 = vadd.f32 %v3863, %v5070
      %v5167 = vadd.f32 %v3864, %v5071
      %v5168 = vadd.f32 %v3865, %v5072
      %v5169 = vadd.f32 %v3866, %v5073
      %v5170 = vadd.f32 %v3867, %v5074
      %v5171 = vadd.f32 %v3868, %v5075
      %v5172 = vadd.f32 %v3869, %v5076
      %v5173 = vadd.f32 %v3870, %v5077
      %v5174 = vadd.f32 %v3871, %v5078
      %v5175 = vadd.f32 %v3872, %v5079
      %v5176 = vadd.f32 %v3873, %v5080
      %v5177 = vadd.f32 %v3874, %v5081
      %v5178 = vadd.f32 %v3875, %v5082
      %v5179 = vadd.f32 %v3876, %v5083
      %v5180 = vadd.f32 %v3877, %v5084
      %v5181 = vadd.f32 %v3878, %v5085
      %v5182 = vadd.f32 %v3879, %v5086
      %v5183 = vadd.f32 %v3880, %v5087
      %v5184 = vadd.f32 %v3881, %v5088
      %v5185 = vadd.f32 %v3882, %v5089
      %v5186 = vadd.f32 %v3883, %v5090
      %v5187 = vadd.f32 %v3884, %v5091
      %v5188 = vadd.f32 %v3885, %v5092
      %v5189 = vadd.f32 %v3886, %v5093
      %v5190 = vadd.f32 %v3887, %v5094
      %v5191 = vadd.f32 %v3888, %v5095
      %v5192 = vadd.f32 %v3889, %v5096
      %v5193 = vadd.f32 %v3890, %v5097
      %v5194 = vadd.f32 %v3891, %v5098
      %v5195 = vadd.f32 %v3892, %v5099
      %v5196 = vadd.f32 %v3893, %v5100
      %v5197 = vadd.f32 %v3894, %v5101
      %v5198 = vadd.f32 %v3895, %v5102
      %v5199 = vadd.f32 %v3896, %v5103
      %v5200 = vadd.f32 %v3897, %v5104
      %v5201 = vadd.f32 %v3898, %v5105
      %v5202 = vadd.f32 %v3899, %v5106
      %v5203 = vadd.f32 %v3900, %v5107
      %v5204 = vadd.f32 %v3901, %v5108
      %v5205 = vadd.f32 %v3902, %v5109
      %v5206 = vadd.f32 %v3903, %v5110
      %v5207 = vadd.f32 %v3904, %v5111
      %v5208 = vadd.f32 %v3905, %v5112
      %v5209 = vadd.f32 %v3906, %v5113
      %v5210 = vadd.f32 %v3907, %v5114
      %v5211 = vadd.f32 %v3908, %v5115
      %v5212 = vadd.f32 %v3909, %v5116
      %v5213 = vadd.f32 %v3910, %v5117
      %v5214 = vadd.f32 %v3911, %v5118
      %v5215 = vadd.f32 %v3912, %v5119
      %v5216 = vadd.f32 %v3913, %v5120
      %v5217 = vadd.f32 %v3914, %v5121
      %v5218 = vadd.f32 %v3915, %v5122
      %v5219 = vadd.f32 %v3916, %v5123
      %v5220 = vadd.f32 %v3917, %v5124
      %v5221 = vadd.f32 %v3918, %v5125
      %v5222 = vadd.f32 %v3919, %v5126
      %v5223 = vadd.f32 %v3920, %v5127
      %v5224 = vadd.f32 %v3921, %v5128
      %v5225 = vadd.f32 %v3922, %v5129
      %v5226 = vadd.f32 %v3923, %v5130
      %v5227 = vadd.f32 %v3924, %v5131
      %v5228 = vadd.f32 %v3925, %v5132
      %v5229 = vadd.f32 %v3926, %v5133
      %v5230 = vadd.f32 %v3927, %v5134
      %v5231 = vadd.f32 %v3928, %v5135
      %v5232 = vadd.f32 %v3929, %v5136
      %v5233 = vpack.c.bf16 %v5137, %v5137
      %v5234 = vpack.c.bf16 %v5138, %v5138
      %v5235 = vpack.c.bf16 %v5139, %v5139
      %v5236 = vpack.c.bf16 %v5140, %v5140
      %v5237 = vpack.c.bf16 %v5141, %v5141
      %v5238 = vpack.c.bf16 %v5142, %v5142
      %v5239 = vpack.c.bf16 %v5143, %v5143
      %v5240 = vpack.c.bf16 %v5144, %v5144
      %v5241 = vpack.c.bf16 %v5145, %v5145
      %v5242 = vpack.c.bf16 %v5146, %v5146
      %v5243 = vpack.c.bf16 %v5147, %v5147
      %v5244 = vpack.c.bf16 %v5148, %v5148
      %v5245 = vpack.c.bf16 %v5149, %v5149
      %v5246 = vpack.c.bf16 %v5150, %v5150
      %v5247 = vpack.c.bf16 %v5151, %v5151
      %v5248 = vpack.c.bf16 %v5152, %v5152
      %v5249 = vpack.c.bf16 %v5153, %v5153
      %v5250 = vpack.c.bf16 %v5154, %v5154
      %v5251 = vpack.c.bf16 %v5155, %v5155
      %v5252 = vpack.c.bf16 %v5156, %v5156
      %v5253 = vpack.c.bf16 %v5157, %v5157
      %v5254 = vpack.c.bf16 %v5158, %v5158
      %v5255 = vpack.c.bf16 %v5159, %v5159
      %v5256 = vpack.c.bf16 %v5160, %v5160
      %v5257 = vpack.c.bf16 %v5161, %v5161
      %v5258 = vpack.c.bf16 %v5162, %v5162
      %v5259 = vpack.c.bf16 %v5163, %v5163
      %v5260 = vpack.c.bf16 %v5164, %v5164
      %v5261 = vpack.c.bf16 %v5165, %v5165
      %v5262 = vpack.c.bf16 %v5166, %v5166
      %v5263 = vpack.c.bf16 %v5167, %v5167
      %v5264 = vpack.c.bf16 %v5168, %v5168
      %v5265 = vpack.c.bf16 %v5169, %v5169
      %v5266 = vpack.c.bf16 %v5170, %v5170
      %v5267 = vpack.c.bf16 %v5171, %v5171
      %v5268 = vpack.c.bf16 %v5172, %v5172
      %v5269 = vpack.c.bf16 %v5173, %v5173
      %v5270 = vpack.c.bf16 %v5174, %v5174
      %v5271 = vpack.c.bf16 %v5175, %v5175
      %v5272 = vpack.c.bf16 %v5176, %v5176
      %v5273 = vpack.c.bf16 %v5177, %v5177
      %v5274 = vpack.c.bf16 %v5178, %v5178
      %v5275 = vpack.c.bf16 %v5179, %v5179
      %v5276 = vpack.c.bf16 %v5180, %v5180
      %v5277 = vpack.c.bf16 %v5181, %v5181
      %v5278 = vpack.c.bf16 %v5182, %v5182
      %v5279 = vpack.c.bf16 %v5183, %v5183
      %v5280 = vpack.c.bf16 %v5184, %v5184
      %v5281 = vpack.c.bf16 %v5185, %v5185
      %v5282 = vpack.c.bf16 %v5186, %v5186
      %v5283 = vpack.c.bf16 %v5187, %v5187
      %v5284 = vpack.c.bf16 %v5188, %v5188
      %v5285 = vpack.c.bf16 %v5189, %v5189
      %v5286 = vpack.c.bf16 %v5190, %v5190
      %v5287 = vpack.c.bf16 %v5191, %v5191
      %v5288 = vpack.c.bf16 %v5192, %v5192
      %v5289 = vpack.c.bf16 %v5193, %v5193
      %v5290 = vpack.c.bf16 %v5194, %v5194
      %v5291 = vpack.c.bf16 %v5195, %v5195
      %v5292 = vpack.c.bf16 %v5196, %v5196
      %v5293 = vpack.c.bf16 %v5197, %v5197
      %v5294 = vpack.c.bf16 %v5198, %v5198
      %v5295 = vpack.c.bf16 %v5199, %v5199
      %v5296 = vpack.c.bf16 %v5200, %v5200
      %v5297 = vpack.c.bf16 %v5201, %v5201
      %v5298 = vpack.c.bf16 %v5202, %v5202
      %v5299 = vpack.c.bf16 %v5203, %v5203
      %v5300 = vpack.c.bf16 %v5204, %v5204
      %v5301 = vpack.c.bf16 %v5205, %v5205
      %v5302 = vpack.c.bf16 %v5206, %v5206
      %v5303 = vpack.c.bf16 %v5207, %v5207
      %v5304 = vpack.c.bf16 %v5208, %v5208
      %v5305 = vpack.c.bf16 %v5209, %v5209
      %v5306 = vpack.c.bf16 %v5210, %v5210
      %v5307 = vpack.c.bf16 %v5211, %v5211
      %v5308 = vpack.c.bf16 %v5212, %v5212
      %v5309 = vpack.c.bf16 %v5213, %v5213
      %v5310 = vpack.c.bf16 %v5214, %v5214
      %v5311 = vpack.c.bf16 %v5215, %v5215
      %v5312 = vpack.c.bf16 %v5216, %v5216
      %v5313 = vpack.c.bf16 %v5217, %v5217
      %v5314 = vpack.c.bf16 %v5218, %v5218
      %v5315 = vpack.c.bf16 %v5219, %v5219
      %v5316 = vpack.c.bf16 %v5220, %v5220
      %v5317 = vpack.c.bf16 %v5221, %v5221
      %v5318 = vpack.c.bf16 %v5222, %v5222
      %v5319 = vpack.c.bf16 %v5223, %v5223
      %v5320 = vpack.c.bf16 %v5224, %v5224
      %v5321 = vpack.c.bf16 %v5225, %v5225
      %v5322 = vpack.c.bf16 %v5226, %v5226
      %v5323 = vpack.c.bf16 %v5227, %v5227
      %v5324 = vpack.c.bf16 %v5228, %v5228
      %v5325 = vpack.c.bf16 %v5229, %v5229
      %v5326 = vpack.c.bf16 %v5230, %v5230
      %v5327 = vpack.c.bf16 %v5231, %v5231
      %v5328 = vpack.c.bf16 %v5232, %v5232
      %vm5329 = vcmask 60416
      %5330 = vst.msk [vmem:[%s260] sm:$0xf] %vm5329, %v5233
      %5331 = vst.msk [vmem:[%s260 + $0x4] sm:$0xf] %vm5329, %v5234
      %5332 = vst.msk [vmem:[%s260 + $0x8] sm:$0xf] %vm5329, %v5235
      %5333 = vst.msk [vmem:[%s260 + $0xc] sm:$0xf] %vm5329, %v5236
      %5334 = vst.msk [vmem:[%s260 + $0x10] sm:$0xf] %vm5329, %v5237
      %5335 = vst.msk [vmem:[%s260 + $0x14] sm:$0xf] %vm5329, %v5238
      %5336 = vst.msk [vmem:[%s260 + $0x18] sm:$0xf] %vm5329, %v5239
      %5337 = vst.msk [vmem:[%s260 + $0x1c] sm:$0xf] %vm5329, %v5240
      %5338 = vst.msk [vmem:[%s260 + $0x20] sm:$0xf] %vm5329, %v5241
      %5339 = vst.msk [vmem:[%s260 + $0x24] sm:$0xf] %vm5329, %v5242
      %5340 = vst.msk [vmem:[%s260 + $0x28] sm:$0xf] %vm5329, %v5243
      %5341 = vst.msk [vmem:[%s260 + $0x2c] sm:$0xf] %vm5329, %v5244
      %5342 = vst.msk [vmem:[%s260 + $0x30] sm:$0xf] %vm5329, %v5245
      %5343 = vst.msk [vmem:[%s260 + $0x34] sm:$0xf] %vm5329, %v5246
      %5344 = vst.msk [vmem:[%s260 + $0x38] sm:$0xf] %vm5329, %v5247
      %5345 = vst.msk [vmem:[%s260 + $0x3c] sm:$0xf] %vm5329, %v5248
      %5346 = vst.msk [vmem:[%s260 + $0x40] sm:$0xf] %vm5329, %v5249
      %5347 = vst.msk [vmem:[%s260 + $0x44] sm:$0xf] %vm5329, %v5250
      %5348 = vst.msk [vmem:[%s260 + $0x48] sm:$0xf] %vm5329, %v5251
      %5349 = vst.msk [vmem:[%s260 + $0x4c] sm:$0xf] %vm5329, %v5252
      %5350 = vst.msk [vmem:[%s260 + $0x50] sm:$0xf] %vm5329, %v5253
      %5351 = vst.msk [vmem:[%s260 + $0x54] sm:$0xf] %vm5329, %v5254
      %5352 = vst.msk [vmem:[%s260 + $0x58] sm:$0xf] %vm5329, %v5255
      %5353 = vst.msk [vmem:[%s260 + $0x5c] sm:$0xf] %vm5329, %v5256
      %5354 = vst.msk [vmem:[%s260 + $0x60] sm:$0xf] %vm5329, %v5257
      %5355 = vst.msk [vmem:[%s260 + $0x64] sm:$0xf] %vm5329, %v5258
      %5356 = vst.msk [vmem:[%s260 + $0x68] sm:$0xf] %vm5329, %v5259
      %5357 = vst.msk [vmem:[%s260 + $0x6c] sm:$0xf] %vm5329, %v5260
      %5358 = vst.msk [vmem:[%s260 + $0x70] sm:$0xf] %vm5329, %v5261
      %5359 = vst.msk [vmem:[%s260 + $0x74] sm:$0xf] %vm5329, %v5262
      %5360 = vst.msk [vmem:[%s260 + $0x78] sm:$0xf] %vm5329, %v5263
      %5361 = vst.msk [vmem:[%s260 + $0x7c] sm:$0xf] %vm5329, %v5264
      %5362 = vst.msk [vmem:[%s260 + $0x80] sm:$0xf] %vm5329, %v5265
      %5363 = vst.msk [vmem:[%s260 + $0x84] sm:$0xf] %vm5329, %v5266
      %5364 = vst.msk [vmem:[%s260 + $0x88] sm:$0xf] %vm5329, %v5267
      %5365 = vst.msk [vmem:[%s260 + $0x8c] sm:$0xf] %vm5329, %v5268
      %5366 = vst.msk [vmem:[%s260 + $0x90] sm:$0xf] %vm5329, %v5269
      %5367 = vst.msk [vmem:[%s260 + $0x94] sm:$0xf] %vm5329, %v5270
      %5368 = vst.msk [vmem:[%s260 + $0x98] sm:$0xf] %vm5329, %v5271
      %5369 = vst.msk [vmem:[%s260 + $0x9c] sm:$0xf] %vm5329, %v5272
      %5370 = vst.msk [vmem:[%s260 + $0xa0] sm:$0xf] %vm5329, %v5273
      %5371 = vst.msk [vmem:[%s260 + $0xa4] sm:$0xf] %vm5329, %v5274
      %5372 = vst.msk [vmem:[%s260 + $0xa8] sm:$0xf] %vm5329, %v5275
      %5373 = vst.msk [vmem:[%s260 + $0xac] sm:$0xf] %vm5329, %v5276
      %5374 = vst.msk [vmem:[%s260 + $0xb0] sm:$0xf] %vm5329, %v5277
      %5375 = vst.msk [vmem:[%s260 + $0xb4] sm:$0xf] %vm5329, %v5278
      %5376 = vst.msk [vmem:[%s260 + $0xb8] sm:$0xf] %vm5329, %v5279
      %5377 = vst.msk [vmem:[%s260 + $0xbc] sm:$0xf] %vm5329, %v5280
      %5378 = vst.msk [vmem:[%s260 + $0xc0] sm:$0xf] %vm5329, %v5281
      %5379 = vst.msk [vmem:[%s260 + $0xc4] sm:$0xf] %vm5329, %v5282
      %5380 = vst.msk [vmem:[%s260 + $0xc8] sm:$0xf] %vm5329, %v5283
      %5381 = vst.msk [vmem:[%s260 + $0xcc] sm:$0xf] %vm5329, %v5284
      %5382 = vst.msk [vmem:[%s260 + $0xd0] sm:$0xf] %vm5329, %v5285
      %5383 = vst.msk [vmem:[%s260 + $0xd4] sm:$0xf] %vm5329, %v5286
      %5384 = vst.msk [vmem:[%s260 + $0xd8] sm:$0xf] %vm5329, %v5287
      %5385 = vst.msk [vmem:[%s260 + $0xdc] sm:$0xf] %vm5329, %v5288
      %5386 = vst.msk [vmem:[%s260 + $0xe0] sm:$0xf] %vm5329, %v5289
      %5387 = vst.msk [vmem:[%s260 + $0xe4] sm:$0xf] %vm5329, %v5290
      %5388 = vst.msk [vmem:[%s260 + $0xe8] sm:$0xf] %vm5329, %v5291
      %5389 = vst.msk [vmem:[%s260 + $0xec] sm:$0xf] %vm5329, %v5292
      %5390 = vst.msk [vmem:[%s260 + $0xf0] sm:$0xf] %vm5329, %v5293
      %5391 = vst.msk [vmem:[%s260 + $0xf4] sm:$0xf] %vm5329, %v5294
      %5392 = vst.msk [vmem:[%s260 + $0xf8] sm:$0xf] %vm5329, %v5295
      %5393 = vst.msk [vmem:[%s260 + $0xfc] sm:$0xf] %vm5329, %v5296
      %5394 = vst.msk [vmem:[%s260 + $0x100] sm:$0xf] %vm5329, %v5297
      %5395 = vst.msk [vmem:[%s260 + $0x104] sm:$0xf] %vm5329, %v5298
      %5396 = vst.msk [vmem:[%s260 + $0x108] sm:$0xf] %vm5329, %v5299
      %5397 = vst.msk [vmem:[%s260 + $0x10c] sm:$0xf] %vm5329, %v5300
      %5398 = vst.msk [vmem:[%s260 + $0x110] sm:$0xf] %vm5329, %v5301
      %5399 = vst.msk [vmem:[%s260 + $0x114] sm:$0xf] %vm5329, %v5302
      %5400 = vst.msk [vmem:[%s260 + $0x118] sm:$0xf] %vm5329, %v5303
      %5401 = vst.msk [vmem:[%s260 + $0x11c] sm:$0xf] %vm5329, %v5304
      %5402 = vst.msk [vmem:[%s260 + $0x120] sm:$0xf] %vm5329, %v5305
      %5403 = vst.msk [vmem:[%s260 + $0x124] sm:$0xf] %vm5329, %v5306
      %5404 = vst.msk [vmem:[%s260 + $0x128] sm:$0xf] %vm5329, %v5307
      %5405 = vst.msk [vmem:[%s260 + $0x12c] sm:$0xf] %vm5329, %v5308
      %5406 = vst.msk [vmem:[%s260 + $0x130] sm:$0xf] %vm5329, %v5309
      %5407 = vst.msk [vmem:[%s260 + $0x134] sm:$0xf] %vm5329, %v5310
      %5408 = vst.msk [vmem:[%s260 + $0x138] sm:$0xf] %vm5329, %v5311
      %5409 = vst.msk [vmem:[%s260 + $0x13c] sm:$0xf] %vm5329, %v5312
      %5410 = vst.msk [vmem:[%s260 + $0x140] sm:$0xf] %vm5329, %v5313
      %5411 = vst.msk [vmem:[%s260 + $0x144] sm:$0xf] %vm5329, %v5314
      %5412 = vst.msk [vmem:[%s260 + $0x148] sm:$0xf] %vm5329, %v5315
      %5413 = vst.msk [vmem:[%s260 + $0x14c] sm:$0xf] %vm5329, %v5316
      %5414 = vst.msk [vmem:[%s260 + $0x150] sm:$0xf] %vm5329, %v5317
      %5415 = vst.msk [vmem:[%s260 + $0x154] sm:$0xf] %vm5329, %v5318
      %5416 = vst.msk [vmem:[%s260 + $0x158] sm:$0xf] %vm5329, %v5319
      %5417 = vst.msk [vmem:[%s260 + $0x15c] sm:$0xf] %vm5329, %v5320
      %5418 = vst.msk [vmem:[%s260 + $0x160] sm:$0xf] %vm5329, %v5321
      %5419 = vst.msk [vmem:[%s260 + $0x164] sm:$0xf] %vm5329, %v5322
      %5420 = vst.msk [vmem:[%s260 + $0x168] sm:$0xf] %vm5329, %v5323
      %5421 = vst.msk [vmem:[%s260 + $0x16c] sm:$0xf] %vm5329, %v5324
      %5422 = vst.msk [vmem:[%s260 + $0x170] sm:$0xf] %vm5329, %v5325
      %5423 = vst.msk [vmem:[%s260 + $0x174] sm:$0xf] %vm5329, %v5326
      %5424 = vst.msk [vmem:[%s260 + $0x178] sm:$0xf] %vm5329, %v5327
      %5425 = vst.msk [vmem:[%s260 + $0x17c] sm:$0xf] %vm5329, %v5328
      %p5426 = scmp.lt.s32.totalorder %s20, 1
      %s5427 = scalar_select %p5426, %s20, 1
      %p5428 = scmp.lt.s32.totalorder %s21, 0
      %s5429 = scalar_select %p5428, %s21, 0
      %s5430 = smul.addr %s5427, 96
      %s5431 = sadd.s32 %s5429, %s5430
      %s5432 = smul.addr %s5431, 4
      %s5433 = scalar_lea.vmem %s5, %s5432
      // Predicated region
      $region41: #{tpu_custom_call.1} parent=39 // pred_check
        %p5434 = pneg %p160
      $region42: #{tpu_custom_call.1} parent=39 // pred_check_branch
        %5436 = sbr.rel (%p5434) target = $region44
      $region43: #{tpu_custom_call.1} parent=39 // pred_region
        _
      $region44: #{tpu_custom_call.1} parent=39 // pred_fallthru
        _
    $region40: #{tpu_custom_call.1} parent=5 // pred_fallthru
      _
    %p5437 = scmp.le.s32.totalorder 2, %s11
    // Predicated region
    $region45: #{tpu_custom_call.1} parent=5 // pred_check
      %p5438 = pneg %p5437
    $region46: #{tpu_custom_call.1} parent=5 // pred_check_branch
      %5440 = sbr.rel (%p5438) target = $region48
    $region47: #{tpu_custom_call.1} parent=5 // pred_region
      %s5441 = ssub.s32 %s11, 2
      // Predicated region
      $region49: #{tpu_custom_call.1} parent=47 // pred_check
        %p5442 = pneg %p166
      $region50: #{tpu_custom_call.1} parent=47 // pred_check_branch
        %5444 = sbr.rel (%p5442) target = $region52
      $region51: #{tpu_custom_call.1} parent=47 // pred_region
        %p5445 = scmp.lt.s32.totalorder %s22, 1
        %s5446 = scalar_select %p5445, %s22, 1
        %p5447 = scmp.lt.s32.totalorder %s23, 0
        %s5448 = scalar_select %p5447, %s23, 0
        %s5449 = smul.addr %s5446, 96
        %s5450 = sadd.s32 %s5448, %s5449
        %s5451 = smul.addr %s5450, 4
        %s5452 = scalar_lea.vmem %s5, %s5451
      $region52: #{tpu_custom_call.1} parent=47 // pred_fallthru
        _
    $region48: #{tpu_custom_call.1} parent=5 // pred_fallthru
      _
  $region6: #{tpu_custom_call.1} parent=0 // loop_footer
    %s15 = sadd.s32 1, %s11
  $region7: #{tpu_custom_call.1} parent=0 // loop_footer_branch
    %10 = sbr.rel target = $region3
  $region8: #{tpu_custom_call.1} parent=0 // loop_exit
    _

</llo_original>
